<compile_context>
chip_gen: v6e
topology: v6e:2x2x1
jax: 0.10.0
libtpu: 0.0.40
codegen_flags: <defaults>
</compile_context>

<pallas_src>
import functools

import jax
import jax.numpy as jnp
from jax.experimental import pallas as pl
from jax.experimental.pallas import tpu as pltpu


# VGG19 "features" truncated at index 34 (conv5_4, no trailing ReLU),
# matching nn.Sequential(*list(vgg19.features.children())[:35]).
#   ("conv", cin, cout, apply_relu) | ("pool",)
VGG19_54_CFG = [
    ("conv", 3, 64, True), ("conv", 64, 64, True), ("pool",),
    ("conv", 64, 128, True), ("conv", 128, 128, True), ("pool",),
    ("conv", 128, 256, True), ("conv", 256, 256, True),
    ("conv", 256, 256, True), ("conv", 256, 256, True), ("pool",),
    ("conv", 256, 512, True), ("conv", 512, 512, True),
    ("conv", 512, 512, True), ("conv", 512, 512, True), ("pool",),
    ("conv", 512, 512, True), ("conv", 512, 512, True),
    ("conv", 512, 512, True), ("conv", 512, 512, False),   # conv5_4: no ReLU
]

_VMEM_LIMIT = 48 * 1024 * 1024          # <= v7x 64 MiB physical VMEM


def _pow2_128(x):
    """Smallest 128 * 2^k that is >= x."""
    v = 128
    while v < x:
        v *= 2
    return v


# ---------------------------------------------------------------------------
# Pallas kernels
# ---------------------------------------------------------------------------
def _conv3x3_kernel(xa_ref, xb_ref, w_ref, b_ref, o_ref, win_ref, *, wp, relu):
    """3x3 conv on a flat padded activation tile via 9 accumulated matmuls.

    xa_ref: (TB, Cin)   rows [i*TB, (i+1)*TB) of the flat padded input
    xb_ref: (hb, Cin)   lookahead rows [(i+1)*TB, (i+1)*TB + hb)  (halo)
    w_ref : (9, Cin, Cout), b_ref: (1, Cout) f32
    o_ref : (TB, Cout)
    win_ref: VMEM scratch (TB + hb, Cin) — contiguous window of input rows.
    """
    tb = xa_ref.shape[0]
    hb = xb_ref.shape[0]
    # Assemble the contiguous window (main block + halo) in VMEM.
    win_ref[0:tb, :] = xa_ref[...]
    win_ref[tb:tb + hb, :] = xb_ref[...]

    acc = None
    for dy in range(3):
        for dx in range(3):
            off = dy * wp + dx                       # static tap offset
            tap = jnp.dot(win_ref[off:off + tb, :], w_ref[dy * 3 + dx],
                          preferred_element_type=jnp.float32)
            acc = tap if acc is None else acc + tap
    acc = acc + b_ref[...]                           # (TB, Cout) + (1, Cout)
    if relu:
        acc = jnp.maximum(acc, 0.0)
    o_ref[...] = acc.astype(o_ref.dtype)


def _maxpool_kernel(x_ref, o_ref):
    """2x2/stride-2 max pool on a row tile.

    x_ref: (2*TH, Wo, 2*C)  — two input image rows per output row, column
                              pairs folded into the lane dim.
    o_ref: (TH, Wo, C)
    """
    th, wo, c = o_ref.shape
    v = x_ref[...]                                   # (2*th, wo, 2*c)
    m = jnp.maximum(v[:, :, :c], v[:, :, c:])        # max over column pair
    m = m.reshape(th, 2, wo, c)
    o_ref[...] = jnp.maximum(m[:, 0], m[:, 1])       # max over row pair


# ---------------------------------------------------------------------------
# Wrappers
# ---------------------------------------------------------------------------
def conv3x3(x, w, b, relu, compute_dtype=jnp.bfloat16):
    """3x3 conv, padding=1, stride=1.  x: (N,H,W,Cin), w: (3,3,Cin,Cout)."""
    N, H, W, Cin = x.shape
    Cout = w.shape[-1]
    Hp, Wp = H + 2, W + 2
    M = N * Hp * Wp                                   # flat padded length

    # Halo block must cover the largest tap offset 2*(W+2)+2.
    hb = _pow2_128(2 * Wp + 2)
    # Main row tile: big (fills the MXU, amortizes grid-step overhead), but
    # bounded by the problem size; always a pow2 multiple of 128 so hb | TB.
    if Cin >= 256:
        target = 512
    elif Cin >= 64:
        target = 1024
    else:
        target = 2048
    TB = max(hb, min(target, _pow2_128(M)))
    nb = pl.cdiv(M, TB)
    Mp = (nb + 1) * TB                                # +1 block of lookahead

    # Zero-pad spatially (1 px halo) + flatten row-major + pad to Mp rows.
    xflat = jnp.pad(x.astype(compute_dtype),
                    ((0, 0), (1, 1), (1, 1), (0, 0))).reshape(M, Cin)
    xflat = jnp.pad(xflat, ((0, Mp - M), (0, 0)))
    w9 = w.astype(compute_dtype).reshape(9, Cin, Cout)
    b2 = b.astype(jnp.float32).reshape(1, Cout)

    ratio = TB // hb
    itemsize = jnp.dtype(compute_dtype).itemsize
    flops = 2 * nb * TB * 9 * Cin * Cout
    bytes_accessed = int((Mp * Cin + 9 * Cin * Cout + nb * TB * Cout)
                         * itemsize + 4 * Cout)

    out = pl.pallas_call(
        functools.partial(_conv3x3_kernel, wp=Wp, relu=relu),
        out_shape=jax.ShapeDtypeStruct((nb * TB, Cout), compute_dtype),
        grid=(nb,),
        in_specs=[
            pl.BlockSpec((TB, Cin), lambda i: (i, 0)),                 # main
            pl.BlockSpec((hb, Cin), lambda i: ((i + 1) * ratio, 0)),   # halo
            pl.BlockSpec((9, Cin, Cout), lambda i: (0, 0, 0)),         # weights
            pl.BlockSpec((1, Cout), lambda i: (0, 0)),                 # bias
        ],
        out_specs=pl.BlockSpec((TB, Cout), lambda i: (i, 0)),
        scratch_shapes=[pltpu.VMEM((TB + hb, Cin), compute_dtype)],
        compiler_params=pltpu.CompilerParams(
            dimension_semantics=("parallel",),
            vmem_limit_bytes=_VMEM_LIMIT),
        cost_estimate=pl.CostEstimate(flops=int(flops), transcendentals=0,
                                      bytes_accessed=bytes_accessed),
    )(xflat, xflat, w9, b2)

    # Valid outputs live at padded coords (h, w) with h < H, w < W; the
    # garbage rows/cols (and the M-padding tail) are sliced away here.
    out = out[:M].reshape(N, Hp, Wp, Cout)[:, :H, :W, :]
    return out


def maxpool2x2(x):
    """2x2 max pool, stride 2.  x: (N,H,W,C) -> (N,H//2,W//2,C)."""
    N, H, W, C = x.shape
    Ho, Wo = H // 2, W // 2
    x = x[:, :2 * Ho, :2 * Wo, :]                    # floor (PyTorch semantics)
    # Free row-major regroup: column pairs folded into the lane dimension.
    xr = x.reshape(N * 2 * Ho, Wo, 2 * C)
    R = N * Ho

    row_bytes = 4 * Wo * C * x.dtype.itemsize        # input bytes / output row
    cap = max(1, (2 * 1024 * 1024) // row_bytes)     # ~2 MiB input block
    th = 1
    for d in range(min(cap, R), 0, -1):
        if R % d == 0:
            th = d
            break

    out = pl.pallas_call(
        _maxpool_kernel,
        out_shape=jax.ShapeDtypeStruct((R, Wo, C), x.dtype),
        grid=(R // th,),
        in_specs=[pl.BlockSpec((2 * th, Wo, 2 * C), lambda i: (i, 0, 0))],
        out_specs=pl.BlockSpec((th, Wo, C), lambda i: (i, 0, 0)),
        compiler_params=pltpu.CompilerParams(
            dimension_semantics=("parallel",),
            vmem_limit_bytes=_VMEM_LIMIT),
    )(xr)
    return out.reshape(N, Ho, Wo, C)


def init_params(key):
    """Deterministic He-style random weights for every conv layer (HWIO)."""
    params = []
    for layer in VGG19_54_CFG:
        if layer[0] != "conv":
            continue
        _, cin, cout, _ = layer
        key, kw = jax.random.split(key)
        fan_in = 9 * cin
        w = jax.random.normal(kw, (3, 3, cin, cout), jnp.float32) \
            * (2.0 / fan_in) ** 0.5
        b = jnp.zeros((cout,), jnp.float32)
        params.append((w, b))
    return params


def feature_extractor(img_nchw, params, compute_dtype=jnp.bfloat16):
    """Equivalent of FeatureExtractor.forward.  img_nchw: (N, 1, H, W)."""
    x = jnp.transpose(img_nchw, (0, 2, 3, 1))        # NCHW -> NHWC
    x = jnp.concatenate([x, x, x], axis=-1)          # cat([img]*3, dim=1)

    pi = 0
    for layer in VGG19_54_CFG:
        if layer[0] == "conv":
            w, b = params[pi]
            pi += 1
            x = conv3x3(x, w, b, relu=layer[3], compute_dtype=compute_dtype)
        else:
            x = maxpool2x2(x)

    return jnp.transpose(x, (0, 3, 1, 2)).astype(jnp.float32)   # NHWC -> NCHW


# ---------------------------------------------------------------------------
# Pure-JAX references (for self-checking the kernels)
# ---------------------------------------------------------------------------
def _conv3x3_ref(x, w, b, relu):
    y = jax.lax.conv_general_dilated(
        x, w, window_strides=(1, 1), padding="SAME",
        dimension_numbers=("NHWC", "HWIO", "NHWC"))
    y = y + b
    return jnp.maximum(y, 0.0) if relu else y


def _maxpool_ref(x):
    return jax.lax.reduce_window(x, -jnp.inf, jax.lax.max,
                                 (1, 2, 2, 1), (1, 2, 2, 1), "VALID")


if __name__ == "__main__":
    key = jax.random.PRNGKey(0)
    kx, kp, k1, k2, k3 = jax.random.split(key, 5)

    # ---- unit checks (f32) of the two kernels against pure-JAX references ---
    xc = jax.random.normal(k1, (2, 9, 11, 16), jnp.float32)
    wc = jax.random.normal(k2, (3, 3, 16, 32), jnp.float32) * 0.1
    bc = jax.random.normal(k3, (32,), jnp.float32)

    got = conv3x3(xc, wc, bc, relu=True, compute_dtype=jnp.float32)
    ref = _conv3x3_ref(xc, wc, bc, relu=True)
    err = jnp.max(jnp.abs(got - ref)) / (jnp.max(jnp.abs(ref)) + 1e-6)
    assert bool(err < 5e-2), f"conv3x3 mismatch, rel err={float(err)}"

    gotp = maxpool2x2(xc)
    refp = _maxpool_ref(xc[:, :8, :10, :])
    assert bool(jnp.allclose(gotp, refp)), "maxpool2x2 mismatch"

    # ---- full FeatureExtractor forward (bf16 MXU path) ----------------------
    # Small, shape-consistent input: batch=2, 1 channel, 16x16 spatial
    # (the module triplicates the channel dim before the 3-channel VGG stem).
    img = jax.random.normal(kx, (2, 1, 16, 16), jnp.float32)
    params = init_params(kp)

    fwd = jax.jit(functools.partial(feature_extractor,
                                    compute_dtype=jnp.bfloat16))
    out = jax.block_until_ready(fwd(img, params))

    # 16x16 through 4 max-pools -> 1x1 spatial, 512 channels (conv5_4 output).
    assert out.shape == (2, 512, 1, 1), out.shape
    assert bool(jnp.isfinite(out).all())
    print("KERNEL_OK")
</pallas_src>

<mosaic_0001>
module attributes {stable_mosaic.version = 11 : i64} {
  func.func @_conv3x3_kernel(%arg0: i32, %arg1: memref<512x16xf32, #tpu.memory_space<vmem>>, %arg2: memref<128x16xf32, #tpu.memory_space<vmem>>, %arg3: memref<9x16x32xf32, #tpu.memory_space<vmem>>, %arg4: memref<1x32xf32, #tpu.memory_space<vmem>>, %arg5: memref<512x32xf32, #tpu.memory_space<vmem>>, %arg6: memref<640x16xf32, #tpu.memory_space<vmem>>) attributes {dimension_semantics = [#tpu.dimension_semantics<parallel>], iteration_bounds = array<i64: 1>, scalar_prefetch = 0 : i64, scratch_operands = 1 : i64, tpu.core_type = #tpu.core_type<tc>, window_params = [{transform_indices = @transform_0, window_bounds = array<i64: 512, 16>}, {transform_indices = @transform_1, window_bounds = array<i64: 128, 16>}, {pipeline_mode = #tpu.pipeline_mode<synchronous>, transform_indices = @transform_2, window_bounds = array<i64: 9, 16, 32>}, {pipeline_mode = #tpu.pipeline_mode<synchronous>, transform_indices = @transform_3, window_bounds = array<i64: 1, 32>}, {transform_indices = @transform_4, window_bounds = array<i64: 512, 32>}]} {
    %c0 = arith.constant 0 : index
    %c0_0 = arith.constant 0 : index
    %0 = vector.load %arg1[%c0, %c0_0] : memref<512x16xf32, #tpu.memory_space<vmem>>, vector<512x16xf32>
    %c0_1 = arith.constant 0 : index
    %c0_2 = arith.constant 0 : index
    %1 = vector.load %arg6[%c0_1, %c0_2] : memref<640x16xf32, #tpu.memory_space<vmem>>, vector<512x16xf32>
    tpu.vector_store %arg6[%c0_1, %c0_2], %0 {strides = array<i32>} : memref<640x16xf32, #tpu.memory_space<vmem>>, vector<512x16xf32>,
    %c0_3 = arith.constant 0 : index
    %c0_4 = arith.constant 0 : index
    %2 = vector.load %arg2[%c0_3, %c0_4] : memref<128x16xf32, #tpu.memory_space<vmem>>, vector<128x16xf32>
    %c512 = arith.constant 512 : index
    %c0_5 = arith.constant 0 : index
    %3 = vector.load %arg6[%c512, %c0_5] : memref<640x16xf32, #tpu.memory_space<vmem>>, vector<128x16xf32>
    tpu.vector_store %arg6[%c512, %c0_5], %2 {strides = array<i32>} : memref<640x16xf32, #tpu.memory_space<vmem>>, vector<128x16xf32>,
    %c0_6 = arith.constant 0 : index
    %c0_7 = arith.constant 0 : index
    %4 = vector.load %arg6[%c0_6, %c0_7] : memref<640x16xf32, #tpu.memory_space<vmem>>, vector<512x16xf32>
    %c0_8 = arith.constant 0 : index
    %c0_9 = arith.constant 0 : index
    %c0_10 = arith.constant 0 : index
    %5 = vector.load %arg3[%c0_8, %c0_9, %c0_10] : memref<9x16x32xf32, #tpu.memory_space<vmem>>, vector<1x16x32xf32>
    %6 = vector.shape_cast %5 : vector<1x16x32xf32> to vector<16x32xf32>
    %cst = arith.constant dense<0.000000e+00> : vector<512x32xf32>
    %7 = tpu.matmul %4, %6, %cst {dimension_numbers = #tpu.dot_dimension_numbers<[1], [0], [0], [1], [0, 0, 1, 1], [], []>} : vector<512x16xf32>, vector<16x32xf32>, vector<512x32xf32> -> vector<512x32xf32>
    %c1 = arith.constant 1 : index
    %c0_11 = arith.constant 0 : index
    %8 = vector.load %arg6[%c1, %c0_11] : memref<640x16xf32, #tpu.memory_space<vmem>>, vector<512x16xf32>
    %c1_12 = arith.constant 1 : index
    %c0_13 = arith.constant 0 : index
    %c0_14 = arith.constant 0 : index
    %9 = vector.load %arg3[%c1_12, %c0_13, %c0_14] : memref<9x16x32xf32, #tpu.memory_space<vmem>>, vector<1x16x32xf32>
    %10 = vector.shape_cast %9 : vector<1x16x32xf32> to vector<16x32xf32>
    %cst_15 = arith.constant dense<0.000000e+00> : vector<512x32xf32>
    %11 = tpu.matmul %8, %10, %cst_15 {dimension_numbers = #tpu.dot_dimension_numbers<[1], [0], [0], [1], [0, 0, 1, 1], [], []>} : vector<512x16xf32>, vector<16x32xf32>, vector<512x32xf32> -> vector<512x32xf32>
    %12 = arith.addf %7, %11 : vector<512x32xf32>
    %c2 = arith.constant 2 : index
    %c0_16 = arith.constant 0 : index
    %13 = vector.load %arg6[%c2, %c0_16] : memref<640x16xf32, #tpu.memory_space<vmem>>, vector<512x16xf32>
    %c2_17 = arith.constant 2 : index
    %c0_18 = arith.constant 0 : index
    %c0_19 = arith.constant 0 : index
    %14 = vector.load %arg3[%c2_17, %c0_18, %c0_19] : memref<9x16x32xf32, #tpu.memory_space<vmem>>, vector<1x16x32xf32>
    %15 = vector.shape_cast %14 : vector<1x16x32xf32> to vector<16x32xf32>
    %cst_20 = arith.constant dense<0.000000e+00> : vector<512x32xf32>
    %16 = tpu.matmul %13, %15, %cst_20 {dimension_numbers = #tpu.dot_dimension_numbers<[1], [0], [0], [1], [0, 0, 1, 1], [], []>} : vector<512x16xf32>, vector<16x32xf32>, vector<512x32xf32> -> vector<512x32xf32>
    %17 = arith.addf %12, %16 : vector<512x32xf32>
    %c13 = arith.constant 13 : index
    %c0_21 = arith.constant 0 : index
    %18 = vector.load %arg6[%c13, %c0_21] : memref<640x16xf32, #tpu.memory_space<vmem>>, vector<512x16xf32>
    %c3 = arith.constant 3 : index
    %c0_22 = arith.constant 0 : index
    %c0_23 = arith.constant 0 : index
    %19 = vector.load %arg3[%c3, %c0_22, %c0_23] : memref<9x16x32xf32, #tpu.memory_space<vmem>>, vector<1x16x32xf32>
    %20 = vector.shape_cast %19 : vector<1x16x32xf32> to vector<16x32xf32>
    %cst_24 = arith.constant dense<0.000000e+00> : vector<512x32xf32>
    %21 = tpu.matmul %18, %20, %cst_24 {dimension_numbers = #tpu.dot_dimension_numbers<[1], [0], [0], [1], [0, 0, 1, 1], [], []>} : vector<512x16xf32>, vector<16x32xf32>, vector<512x32xf32> -> vector<512x32xf32>
    %22 = arith.addf %17, %21 : vector<512x32xf32>
    %c14 = arith.constant 14 : index
    %c0_25 = arith.constant 0 : index
    %23 = vector.load %arg6[%c14, %c0_25] : memref<640x16xf32, #tpu.memory_space<vmem>>, vector<512x16xf32>
    %c4 = arith.constant 4 : index
    %c0_26 = arith.constant 0 : index
    %c0_27 = arith.constant 0 : index
    %24 = vector.load %arg3[%c4, %c0_26, %c0_27] : memref<9x16x32xf32, #tpu.memory_space<vmem>>, vector<1x16x32xf32>
    %25 = vector.shape_cast %24 : vector<1x16x32xf32> to vector<16x32xf32>
    %cst_28 = arith.constant dense<0.000000e+00> : vector<512x32xf32>
    %26 = tpu.matmul %23, %25, %cst_28 {dimension_numbers = #tpu.dot_dimension_numbers<[1], [0], [0], [1], [0, 0, 1, 1], [], []>} : vector<512x16xf32>, vector<16x32xf32>, vector<512x32xf32> -> vector<512x32xf32>
    %27 = arith.addf %22, %26 : vector<512x32xf32>
    %c15 = arith.constant 15 : index
    %c0_29 = arith.constant 0 : index
    %28 = vector.load %arg6[%c15, %c0_29] : memref<640x16xf32, #tpu.memory_space<vmem>>, vector<512x16xf32>
    %c5 = arith.constant 5 : index
    %c0_30 = arith.constant 0 : index
    %c0_31 = arith.constant 0 : index
    %29 = vector.load %arg3[%c5, %c0_30, %c0_31] : memref<9x16x32xf32, #tpu.memory_space<vmem>>, vector<1x16x32xf32>
    %30 = vector.shape_cast %29 : vector<1x16x32xf32> to vector<16x32xf32>
    %cst_32 = arith.constant dense<0.000000e+00> : vector<512x32xf32>
    %31 = tpu.matmul %28, %30, %cst_32 {dimension_numbers = #tpu.dot_dimension_numbers<[1], [0], [0], [1], [0, 0, 1, 1], [], []>} : vector<512x16xf32>, vector<16x32xf32>, vector<512x32xf32> -> vector<512x32xf32>
    %32 = arith.addf %27, %31 : vector<512x32xf32>
    %c26 = arith.constant 26 : index
    %c0_33 = arith.constant 0 : index
    %33 = vector.load %arg6[%c26, %c0_33] : memref<640x16xf32, #tpu.memory_space<vmem>>, vector<512x16xf32>
    %c6 = arith.constant 6 : index
    %c0_34 = arith.constant 0 : index
    %c0_35 = arith.constant 0 : index
    %34 = vector.load %arg3[%c6, %c0_34, %c0_35] : memref<9x16x32xf32, #tpu.memory_space<vmem>>, vector<1x16x32xf32>
    %35 = vector.shape_cast %34 : vector<1x16x32xf32> to vector<16x32xf32>
    %cst_36 = arith.constant dense<0.000000e+00> : vector<512x32xf32>
    %36 = tpu.matmul %33, %35, %cst_36 {dimension_numbers = #tpu.dot_dimension_numbers<[1], [0], [0], [1], [0, 0, 1, 1], [], []>} : vector<512x16xf32>, vector<16x32xf32>, vector<512x32xf32> -> vector<512x32xf32>
    %37 = arith.addf %32, %36 : vector<512x32xf32>
    %c27 = arith.constant 27 : index
    %c0_37 = arith.constant 0 : index
    %38 = vector.load %arg6[%c27, %c0_37] : memref<640x16xf32, #tpu.memory_space<vmem>>, vector<512x16xf32>
    %c7 = arith.constant 7 : index
    %c0_38 = arith.constant 0 : index
    %c0_39 = arith.constant 0 : index
    %39 = vector.load %arg3[%c7, %c0_38, %c0_39] : memref<9x16x32xf32, #tpu.memory_space<vmem>>, vector<1x16x32xf32>
    %40 = vector.shape_cast %39 : vector<1x16x32xf32> to vector<16x32xf32>
    %cst_40 = arith.constant dense<0.000000e+00> : vector<512x32xf32>
    %41 = tpu.matmul %38, %40, %cst_40 {dimension_numbers = #tpu.dot_dimension_numbers<[1], [0], [0], [1], [0, 0, 1, 1], [], []>} : vector<512x16xf32>, vector<16x32xf32>, vector<512x32xf32> -> vector<512x32xf32>
    %42 = arith.addf %37, %41 : vector<512x32xf32>
    %c28 = arith.constant 28 : index
    %c0_41 = arith.constant 0 : index
    %43 = vector.load %arg6[%c28, %c0_41] : memref<640x16xf32, #tpu.memory_space<vmem>>, vector<512x16xf32>
    %c8 = arith.constant 8 : index
    %c0_42 = arith.constant 0 : index
    %c0_43 = arith.constant 0 : index
    %44 = vector.load %arg3[%c8, %c0_42, %c0_43] : memref<9x16x32xf32, #tpu.memory_space<vmem>>, vector<1x16x32xf32>
    %45 = vector.shape_cast %44 : vector<1x16x32xf32> to vector<16x32xf32>
    %cst_44 = arith.constant dense<0.000000e+00> : vector<512x32xf32>
    %46 = tpu.matmul %43, %45, %cst_44 {dimension_numbers = #tpu.dot_dimension_numbers<[1], [0], [0], [1], [0, 0, 1, 1], [], []>} : vector<512x16xf32>, vector<16x32xf32>, vector<512x32xf32> -> vector<512x32xf32>
    %47 = arith.addf %42, %46 : vector<512x32xf32>
    %c0_45 = arith.constant 0 : index
    %c0_46 = arith.constant 0 : index
    %48 = vector.load %arg4[%c0_45, %c0_46] : memref<1x32xf32, #tpu.memory_space<vmem>>, vector<1x32xf32>
    %49 = vector.broadcast %48 : vector<1x32xf32> to vector<512x32xf32>
    %50 = arith.addf %47, %49 : vector<512x32xf32>
    %cst_47 = arith.constant 0.000000e+00 : f32
    %51 = vector.broadcast %cst_47 : f32 to vector<512x32xf32>
    %52 = arith.maximumf %50, %51 : vector<512x32xf32>
    %c0_48 = arith.constant 0 : index
    %c0_49 = arith.constant 0 : index
    %53 = vector.load %arg5[%c0_48, %c0_49] : memref<512x32xf32, #tpu.memory_space<vmem>>, vector<512x32xf32>
    tpu.vector_store %arg5[%c0_48, %c0_49], %52 {strides = array<i32>} : memref<512x32xf32, #tpu.memory_space<vmem>>, vector<512x32xf32>,
    return
  }
  func.func @transform_0(%arg0: i32) -> (i32, i32) {
    %c0_i32 = arith.constant 0 : i32
    %c0_i32_0 = arith.constant 0 : i32
    return %arg0, %c0_i32 : i32, i32
  }
  func.func @transform_1(%arg0: i32) -> (i32, i32) {
    %c1_i32 = arith.constant 1 : i32
    %0 = arith.addi %arg0, %c1_i32 : i32
    %c4_i32 = arith.constant 4 : i32
    %1 = arith.muli %0, %c4_i32 : i32
    %c0_i32 = arith.constant 0 : i32
    %c0_i32_0 = arith.constant 0 : i32
    return %1, %c0_i32 : i32, i32
  }
  func.func @transform_2(%arg0: i32) -> (i32, i32, i32) {
    %c0_i32 = arith.constant 0 : i32
    %c0_i32_0 = arith.constant 0 : i32
    %c0_i32_1 = arith.constant 0 : i32
    %c0_i32_2 = arith.constant 0 : i32
    return %c0_i32, %c0_i32_0, %c0_i32_1 : i32, i32, i32
  }
  func.func @transform_3(%arg0: i32) -> (i32, i32) {
    %c0_i32 = arith.constant 0 : i32
    %c0_i32_0 = arith.constant 0 : i32
    %c0_i32_1 = arith.constant 0 : i32
    return %c0_i32, %c0_i32_0 : i32, i32
  }
  func.func @transform_4(%arg0: i32) -> (i32, i32) {
    %c0_i32 = arith.constant 0 : i32
    %c0_i32_0 = arith.constant 0 : i32
    return %arg0, %c0_i32 : i32, i32
  }
}

</mosaic_0001>

<llo_original>
// kernel: tpu_custom_call.1
$region0: #{tpu_custom_call.1}
  #allocation0 [shape = 'u32[]', space=smem, size = 0x4, offset = 0x4, fixed_abs, tag = 'smem constant byte address 0x4 - core index']
  #allocation1 [shape = 'u32[144,128]{1,0:T(1,128)}', space=vmem, size = 0x12000, scoped, tag = 'internal scratch']
  #allocation2 [shape = 'f32[640,16]{1,0:T(8,128)}', space=vmem, size = 0x50000, scoped, tag = 'scratch operand']
  %s0 = inlined_call_operand.vmem [shape: f32[1024,16], index: 0, kind: input, shape index: {}]
  %s1 = inlined_call_operand.vmem [shape: f32[1024,16], index: 1, kind: input, shape index: {}]
  %s2 = inlined_call_operand.vmem [shape: f32[9,16,32], index: 2, kind: input, shape index: {}]
  %s3 = inlined_call_operand.vmem [shape: f32[1,32], index: 3, kind: input, shape index: {}]
  %s4 = inlined_call_operand.vmem [shape: f32[512,32], index: 4, kind: output, shape index: {}]
  %s5 = sld [smem:[#allocation0]]
  $region26: #{tpu_custom_call.1} parent=0
    _
  %s7 = ssub.s32 1, %s5
  %s8 = scalar_select 0, %s7, %s5
  // Predicated region
  $region2: #{tpu_custom_call.1} parent=0 // pred_check
    _
  $region3: #{tpu_custom_call.1} parent=0 // pred_check_branch
    %10 = sbr.rel (0) target = $region5
  $region4: #{tpu_custom_call.1} parent=0 // pred_region
    _
  $region5: #{tpu_custom_call.1} parent=0 // pred_fallthru
    _
  // Predicated region
  $region6: #{tpu_custom_call.1} parent=0 // pred_check
    _
  $region7: #{tpu_custom_call.1} parent=0 // pred_check_branch
    %12 = sbr.rel (0) target = $region9
  $region8: #{tpu_custom_call.1} parent=0 // pred_region
    %s13 = sadd.s32 0, 1
    %s14 = smul.u32 %s13, 4
    %s15 = smul.u32 16, %s14
    %p16 = scmp.lt.s32.totalorder %s15, 127
    %s17 = scalar_select %p16, %s15, 127
    %s18 = smul.addr %s17, 8
    %s19 = scalar_lea.vmem %s1, %s18
    %s20 = sadd.s32 0, 1
    %s21 = smul.u32 %s20, 4
    %s22 = smul.u32 16, %s21
  $region9: #{tpu_custom_call.1} parent=0 // pred_fallthru
    _
  // Predicated region
  $region10: #{tpu_custom_call.1} parent=0 // pred_check
    _
  $region11: #{tpu_custom_call.1} parent=0 // pred_check_branch
    %24 = sbr.rel (0) target = $region13
  $region12: #{tpu_custom_call.1} parent=0 // pred_region
    _
  $region13: #{tpu_custom_call.1} parent=0 // pred_fallthru
    _
  // Predicated region
  $region14: #{tpu_custom_call.1} parent=0 // pred_check
    _
  $region15: #{tpu_custom_call.1} parent=0 // pred_check_branch
    %26 = sbr.rel (0) target = $region17
  $region16: #{tpu_custom_call.1} parent=0 // pred_region
    _
  $region17: #{tpu_custom_call.1} parent=0 // pred_fallthru
    _
  %s27 = sadd.s32 0, 1
  %s28 = smul.u32 %s27, 4
  %s29 = smul.u32 16, %s28
  %p30 = scmp.lt.s32.totalorder %s29, 127
  %s31 = scalar_select %p30, %s29, 127
  %s32 = smul.addr %s31, 8
  %s33 = scalar_lea.vmem %s1, %s32
  %s34 = sadd.s32 0, 1
  %s35 = smul.u32 %s34, 4
  %s36 = smul.u32 16, %s35
  %p37 = scmp.lt.s32.totalorder %s36, 127
  %s38 = scalar_select %p37, %s36, 127
  %s39 = smul.addr %s38, 8
  %s40 = scalar_lea.vmem %s1, %s39
  %s41 = sadd.s32 0, 1
  %s42 = smul.u32 %s41, 4
  %s43 = smul.u32 16, %s42
  %v44 = vld [vmem:[%s0] sm:$0xff]
  %v45 = vld [vmem:[%s0 + $0x8] sm:$0xff]
  %v46 = vld [vmem:[%s0 + $0x10] sm:$0xff]
  %v47 = vld [vmem:[%s0 + $0x18] sm:$0xff]
  %v48 = vld [vmem:[%s0 + $0x20] sm:$0xff]
  %v49 = vld [vmem:[%s0 + $0x28] sm:$0xff]
  %v50 = vld [vmem:[%s0 + $0x30] sm:$0xff]
  %v51 = vld [vmem:[%s0 + $0x38] sm:$0xff]
  %v52 = vld [vmem:[%s0 + $0x40] sm:$0xff]
  %v53 = vld [vmem:[%s0 + $0x48] sm:$0xff]
  %v54 = vld [vmem:[%s0 + $0x50] sm:$0xff]
  %v55 = vld [vmem:[%s0 + $0x58] sm:$0xff]
  %v56 = vld [vmem:[%s0 + $0x60] sm:$0xff]
  %v57 = vld [vmem:[%s0 + $0x68] sm:$0xff]
  %v58 = vld [vmem:[%s0 + $0x70] sm:$0xff]
  %v59 = vld [vmem:[%s0 + $0x78] sm:$0xff]
  %v60 = vld [vmem:[%s0 + $0x80] sm:$0xff]
  %v61 = vld [vmem:[%s0 + $0x88] sm:$0xff]
  %v62 = vld [vmem:[%s0 + $0x90] sm:$0xff]
  %v63 = vld [vmem:[%s0 + $0x98] sm:$0xff]
  %v64 = vld [vmem:[%s0 + $0xa0] sm:$0xff]
  %v65 = vld [vmem:[%s0 + $0xa8] sm:$0xff]
  %v66 = vld [vmem:[%s0 + $0xb0] sm:$0xff]
  %v67 = vld [vmem:[%s0 + $0xb8] sm:$0xff]
  %v68 = vld [vmem:[%s0 + $0xc0] sm:$0xff]
  %v69 = vld [vmem:[%s0 + $0xc8] sm:$0xff]
  %v70 = vld [vmem:[%s0 + $0xd0] sm:$0xff]
  %v71 = vld [vmem:[%s0 + $0xd8] sm:$0xff]
  %v72 = vld [vmem:[%s0 + $0xe0] sm:$0xff]
  %v73 = vld [vmem:[%s0 + $0xe8] sm:$0xff]
  %v74 = vld [vmem:[%s0 + $0xf0] sm:$0xff]
  %v75 = vld [vmem:[%s0 + $0xf8] sm:$0xff]
  %v76 = vld [vmem:[%s0 + $0x100] sm:$0xff]
  %v77 = vld [vmem:[%s0 + $0x108] sm:$0xff]
  %v78 = vld [vmem:[%s0 + $0x110] sm:$0xff]
  %v79 = vld [vmem:[%s0 + $0x118] sm:$0xff]
  %v80 = vld [vmem:[%s0 + $0x120] sm:$0xff]
  %v81 = vld [vmem:[%s0 + $0x128] sm:$0xff]
  %v82 = vld [vmem:[%s0 + $0x130] sm:$0xff]
  %v83 = vld [vmem:[%s0 + $0x138] sm:$0xff]
  %v84 = vld [vmem:[%s0 + $0x140] sm:$0xff]
  %v85 = vld [vmem:[%s0 + $0x148] sm:$0xff]
  %v86 = vld [vmem:[%s0 + $0x150] sm:$0xff]
  %v87 = vld [vmem:[%s0 + $0x158] sm:$0xff]
  %v88 = vld [vmem:[%s0 + $0x160] sm:$0xff]
  %v89 = vld [vmem:[%s0 + $0x168] sm:$0xff]
  %v90 = vld [vmem:[%s0 + $0x170] sm:$0xff]
  %v91 = vld [vmem:[%s0 + $0x178] sm:$0xff]
  %v92 = vld [vmem:[%s0 + $0x180] sm:$0xff]
  %v93 = vld [vmem:[%s0 + $0x188] sm:$0xff]
  %v94 = vld [vmem:[%s0 + $0x190] sm:$0xff]
  %v95 = vld [vmem:[%s0 + $0x198] sm:$0xff]
  %v96 = vld [vmem:[%s0 + $0x1a0] sm:$0xff]
  %v97 = vld [vmem:[%s0 + $0x1a8] sm:$0xff]
  %v98 = vld [vmem:[%s0 + $0x1b0] sm:$0xff]
  %v99 = vld [vmem:[%s0 + $0x1b8] sm:$0xff]
  %v100 = vld [vmem:[%s0 + $0x1c0] sm:$0xff]
  %v101 = vld [vmem:[%s0 + $0x1c8] sm:$0xff]
  %v102 = vld [vmem:[%s0 + $0x1d0] sm:$0xff]
  %v103 = vld [vmem:[%s0 + $0x1d8] sm:$0xff]
  %v104 = vld [vmem:[%s0 + $0x1e0] sm:$0xff]
  %v105 = vld [vmem:[%s0 + $0x1e8] sm:$0xff]
  %v106 = vld [vmem:[%s0 + $0x1f0] sm:$0xff]
  %v107 = vld [vmem:[%s0 + $0x1f8] sm:$0xff]
  %vm108 = vcmask 130048
  %109 = vst.msk [vmem:[#allocation2] sm:$0xff] %vm108, %v44
  %110 = vst.msk [vmem:[#allocation2 + $0x8] sm:$0xff] %vm108, %v45
  %111 = vst.msk [vmem:[#allocation2 + $0x10] sm:$0xff] %vm108, %v46
  %112 = vst.msk [vmem:[#allocation2 + $0x18] sm:$0xff] %vm108, %v47
  %113 = vst.msk [vmem:[#allocation2 + $0x20] sm:$0xff] %vm108, %v48
  %114 = vst.msk [vmem:[#allocation2 + $0x28] sm:$0xff] %vm108, %v49
  %115 = vst.msk [vmem:[#allocation2 + $0x30] sm:$0xff] %vm108, %v50
  %116 = vst.msk [vmem:[#allocation2 + $0x38] sm:$0xff] %vm108, %v51
  %117 = vst.msk [vmem:[#allocation2 + $0x40] sm:$0xff] %vm108, %v52
  %118 = vst.msk [vmem:[#allocation2 + $0x48] sm:$0xff] %vm108, %v53
  %119 = vst.msk [vmem:[#allocation2 + $0x50] sm:$0xff] %vm108, %v54
  %120 = vst.msk [vmem:[#allocation2 + $0x58] sm:$0xff] %vm108, %v55
  %121 = vst.msk [vmem:[#allocation2 + $0x60] sm:$0xff] %vm108, %v56
  %122 = vst.msk [vmem:[#allocation2 + $0x68] sm:$0xff] %vm108, %v57
  %123 = vst.msk [vmem:[#allocation2 + $0x70] sm:$0xff] %vm108, %v58
  %124 = vst.msk [vmem:[#allocation2 + $0x78] sm:$0xff] %vm108, %v59
  %125 = vst.msk [vmem:[#allocation2 + $0x80] sm:$0xff] %vm108, %v60
  %126 = vst.msk [vmem:[#allocation2 + $0x88] sm:$0xff] %vm108, %v61
  %127 = vst.msk [vmem:[#allocation2 + $0x90] sm:$0xff] %vm108, %v62
  %128 = vst.msk [vmem:[#allocation2 + $0x98] sm:$0xff] %vm108, %v63
  %129 = vst.msk [vmem:[#allocation2 + $0xa0] sm:$0xff] %vm108, %v64
  %130 = vst.msk [vmem:[#allocation2 + $0xa8] sm:$0xff] %vm108, %v65
  %131 = vst.msk [vmem:[#allocation2 + $0xb0] sm:$0xff] %vm108, %v66
  %132 = vst.msk [vmem:[#allocation2 + $0xb8] sm:$0xff] %vm108, %v67
  %133 = vst.msk [vmem:[#allocation2 + $0xc0] sm:$0xff] %vm108, %v68
  %134 = vst.msk [vmem:[#allocation2 + $0xc8] sm:$0xff] %vm108, %v69
  %135 = vst.msk [vmem:[#allocation2 + $0xd0] sm:$0xff] %vm108, %v70
  %136 = vst.msk [vmem:[#allocation2 + $0xd8] sm:$0xff] %vm108, %v71
  %137 = vst.msk [vmem:[#allocation2 + $0xe0] sm:$0xff] %vm108, %v72
  %138 = vst.msk [vmem:[#allocation2 + $0xe8] sm:$0xff] %vm108, %v73
  %139 = vst.msk [vmem:[#allocation2 + $0xf0] sm:$0xff] %vm108, %v74
  %140 = vst.msk [vmem:[#allocation2 + $0xf8] sm:$0xff] %vm108, %v75
  %141 = vst.msk [vmem:[#allocation2 + $0x100] sm:$0xff] %vm108, %v76
  %142 = vst.msk [vmem:[#allocation2 + $0x108] sm:$0xff] %vm108, %v77
  %143 = vst.msk [vmem:[#allocation2 + $0x110] sm:$0xff] %vm108, %v78
  %144 = vst.msk [vmem:[#allocation2 + $0x118] sm:$0xff] %vm108, %v79
  %145 = vst.msk [vmem:[#allocation2 + $0x120] sm:$0xff] %vm108, %v80
  %146 = vst.msk [vmem:[#allocation2 + $0x128] sm:$0xff] %vm108, %v81
  %147 = vst.msk [vmem:[#allocation2 + $0x130] sm:$0xff] %vm108, %v82
  %148 = vst.msk [vmem:[#allocation2 + $0x138] sm:$0xff] %vm108, %v83
  %149 = vst.msk [vmem:[#allocation2 + $0x140] sm:$0xff] %vm108, %v84
  %150 = vst.msk [vmem:[#allocation2 + $0x148] sm:$0xff] %vm108, %v85
  %151 = vst.msk [vmem:[#allocation2 + $0x150] sm:$0xff] %vm108, %v86
  %152 = vst.msk [vmem:[#allocation2 + $0x158] sm:$0xff] %vm108, %v87
  %153 = vst.msk [vmem:[#allocation2 + $0x160] sm:$0xff] %vm108, %v88
  %154 = vst.msk [vmem:[#allocation2 + $0x168] sm:$0xff] %vm108, %v89
  %155 = vst.msk [vmem:[#allocation2 + $0x170] sm:$0xff] %vm108, %v90
  %156 = vst.msk [vmem:[#allocation2 + $0x178] sm:$0xff] %vm108, %v91
  %157 = vst.msk [vmem:[#allocation2 + $0x180] sm:$0xff] %vm108, %v92
  %158 = vst.msk [vmem:[#allocation2 + $0x188] sm:$0xff] %vm108, %v93
  %159 = vst.msk [vmem:[#allocation2 + $0x190] sm:$0xff] %vm108, %v94
  %160 = vst.msk [vmem:[#allocation2 + $0x198] sm:$0xff] %vm108, %v95
  %161 = vst.msk [vmem:[#allocation2 + $0x1a0] sm:$0xff] %vm108, %v96
  %162 = vst.msk [vmem:[#allocation2 + $0x1a8] sm:$0xff] %vm108, %v97
  %163 = vst.msk [vmem:[#allocation2 + $0x1b0] sm:$0xff] %vm108, %v98
  %164 = vst.msk [vmem:[#allocation2 + $0x1b8] sm:$0xff] %vm108, %v99
  %165 = vst.msk [vmem:[#allocation2 + $0x1c0] sm:$0xff] %vm108, %v100
  %166 = vst.msk [vmem:[#allocation2 + $0x1c8] sm:$0xff] %vm108, %v101
  %167 = vst.msk [vmem:[#allocation2 + $0x1d0] sm:$0xff] %vm108, %v102
  %168 = vst.msk [vmem:[#allocation2 + $0x1d8] sm:$0xff] %vm108, %v103
  %169 = vst.msk [vmem:[#allocation2 + $0x1e0] sm:$0xff] %vm108, %v104
  %170 = vst.msk [vmem:[#allocation2 + $0x1e8] sm:$0xff] %vm108, %v105
  %171 = vst.msk [vmem:[#allocation2 + $0x1f0] sm:$0xff] %vm108, %v106
  %172 = vst.msk [vmem:[#allocation2 + $0x1f8] sm:$0xff] %vm108, %v107
  %v173 = vld [vmem:[%s40] sm:$0xff]
  %v174 = vld [vmem:[%s40 + $0x8] sm:$0xff]
  %v175 = vld [vmem:[%s40 + $0x10] sm:$0xff]
  %v176 = vld [vmem:[%s40 + $0x18] sm:$0xff]
  %v177 = vld [vmem:[%s40 + $0x20] sm:$0xff]
  %v178 = vld [vmem:[%s40 + $0x28] sm:$0xff]
  %v179 = vld [vmem:[%s40 + $0x30] sm:$0xff]
  %v180 = vld [vmem:[%s40 + $0x38] sm:$0xff]
  %v181 = vld [vmem:[%s40 + $0x40] sm:$0xff]
  %v182 = vld [vmem:[%s40 + $0x48] sm:$0xff]
  %v183 = vld [vmem:[%s40 + $0x50] sm:$0xff]
  %v184 = vld [vmem:[%s40 + $0x58] sm:$0xff]
  %v185 = vld [vmem:[%s40 + $0x60] sm:$0xff]
  %v186 = vld [vmem:[%s40 + $0x68] sm:$0xff]
  %v187 = vld [vmem:[%s40 + $0x70] sm:$0xff]
  %v188 = vld [vmem:[%s40 + $0x78] sm:$0xff]
  %189 = vst.msk [vmem:[#allocation2 + $0x200] sm:$0xff] %vm108, %v173
  %190 = vst.msk [vmem:[#allocation2 + $0x208] sm:$0xff] %vm108, %v174
  %191 = vst.msk [vmem:[#allocation2 + $0x210] sm:$0xff] %vm108, %v175
  %192 = vst.msk [vmem:[#allocation2 + $0x218] sm:$0xff] %vm108, %v176
  %193 = vst.msk [vmem:[#allocation2 + $0x220] sm:$0xff] %vm108, %v177
  %194 = vst.msk [vmem:[#allocation2 + $0x228] sm:$0xff] %vm108, %v178
  %195 = vst.msk [vmem:[#allocation2 + $0x230] sm:$0xff] %vm108, %v179
  %196 = vst.msk [vmem:[#allocation2 + $0x238] sm:$0xff] %vm108, %v180
  %197 = vst.msk [vmem:[#allocation2 + $0x240] sm:$0xff] %vm108, %v181
  %198 = vst.msk [vmem:[#allocation2 + $0x248] sm:$0xff] %vm108, %v182
  %199 = vst.msk [vmem:[#allocation2 + $0x250] sm:$0xff] %vm108, %v183
  %200 = vst.msk [vmem:[#allocation2 + $0x258] sm:$0xff] %vm108, %v184
  %201 = vst.msk [vmem:[#allocation2 + $0x260] sm:$0xff] %vm108, %v185
  %202 = vst.msk [vmem:[#allocation2 + $0x268] sm:$0xff] %vm108, %v186
  %203 = vst.msk [vmem:[#allocation2 + $0x270] sm:$0xff] %vm108, %v187
  %204 = vst.msk [vmem:[#allocation2 + $0x278] sm:$0xff] %vm108, %v188
  %v205 = vld [vmem:[#allocation2] sm:$0xff]
  %v206 = vld [vmem:[#allocation2 + $0x8] sm:$0xff]
  %v207 = vld [vmem:[#allocation2 + $0x10] sm:$0xff]
  %v208 = vld [vmem:[#allocation2 + $0x18] sm:$0xff]
  %v209 = vld [vmem:[#allocation2 + $0x20] sm:$0xff]
  %v210 = vld [vmem:[#allocation2 + $0x28] sm:$0xff]
  %v211 = vld [vmem:[#allocation2 + $0x30] sm:$0xff]
  %v212 = vld [vmem:[#allocation2 + $0x38] sm:$0xff]
  %v213 = vld [vmem:[#allocation2 + $0x40] sm:$0xff]
  %v214 = vld [vmem:[#allocation2 + $0x48] sm:$0xff]
  %v215 = vld [vmem:[#allocation2 + $0x50] sm:$0xff]
  %v216 = vld [vmem:[#allocation2 + $0x58] sm:$0xff]
  %v217 = vld [vmem:[#allocation2 + $0x60] sm:$0xff]
  %v218 = vld [vmem:[#allocation2 + $0x68] sm:$0xff]
  %v219 = vld [vmem:[#allocation2 + $0x70] sm:$0xff]
  %v220 = vld [vmem:[#allocation2 + $0x78] sm:$0xff]
  %v221 = vld [vmem:[#allocation2 + $0x80] sm:$0xff]
  %v222 = vld [vmem:[#allocation2 + $0x88] sm:$0xff]
  %v223 = vld [vmem:[#allocation2 + $0x90] sm:$0xff]
  %v224 = vld [vmem:[#allocation2 + $0x98] sm:$0xff]
  %v225 = vld [vmem:[#allocation2 + $0xa0] sm:$0xff]
  %v226 = vld [vmem:[#allocation2 + $0xa8] sm:$0xff]
  %v227 = vld [vmem:[#allocation2 + $0xb0] sm:$0xff]
  %v228 = vld [vmem:[#allocation2 + $0xb8] sm:$0xff]
  %v229 = vld [vmem:[#allocation2 + $0xc0] sm:$0xff]
  %v230 = vld [vmem:[#allocation2 + $0xc8] sm:$0xff]
  %v231 = vld [vmem:[#allocation2 + $0xd0] sm:$0xff]
  %v232 = vld [vmem:[#allocation2 + $0xd8] sm:$0xff]
  %v233 = vld [vmem:[#allocation2 + $0xe0] sm:$0xff]
  %v234 = vld [vmem:[#allocation2 + $0xe8] sm:$0xff]
  %v235 = vld [vmem:[#allocation2 + $0xf0] sm:$0xff]
  %v236 = vld [vmem:[#allocation2 + $0xf8] sm:$0xff]
  %v237 = vld [vmem:[#allocation2 + $0x100] sm:$0xff]
  %v238 = vld [vmem:[#allocation2 + $0x108] sm:$0xff]
  %v239 = vld [vmem:[#allocation2 + $0x110] sm:$0xff]
  %v240 = vld [vmem:[#allocation2 + $0x118] sm:$0xff]
  %v241 = vld [vmem:[#allocation2 + $0x120] sm:$0xff]
  %v242 = vld [vmem:[#allocation2 + $0x128] sm:$0xff]
  %v243 = vld [vmem:[#allocation2 + $0x130] sm:$0xff]
  %v244 = vld [vmem:[#allocation2 + $0x138] sm:$0xff]
  %v245 = vld [vmem:[#allocation2 + $0x140] sm:$0xff]
  %v246 = vld [vmem:[#allocation2 + $0x148] sm:$0xff]
  %v247 = vld [vmem:[#allocation2 + $0x150] sm:$0xff]
  %v248 = vld [vmem:[#allocation2 + $0x158] sm:$0xff]
  %v249 = vld [vmem:[#allocation2 + $0x160] sm:$0xff]
  %v250 = vld [vmem:[#allocation2 + $0x168] sm:$0xff]
  %v251 = vld [vmem:[#allocation2 + $0x170] sm:$0xff]
  %v252 = vld [vmem:[#allocation2 + $0x178] sm:$0xff]
  %v253 = vld [vmem:[#allocation2 + $0x180] sm:$0xff]
  %v254 = vld [vmem:[#allocation2 + $0x188] sm:$0xff]
  %v255 = vld [vmem:[#allocation2 + $0x190] sm:$0xff]
  %v256 = vld [vmem:[#allocation2 + $0x198] sm:$0xff]
  %v257 = vld [vmem:[#allocation2 + $0x1a0] sm:$0xff]
  %v258 = vld [vmem:[#allocation2 + $0x1a8] sm:$0xff]
  %v259 = vld [vmem:[#allocation2 + $0x1b0] sm:$0xff]
  %v260 = vld [vmem:[#allocation2 + $0x1b8] sm:$0xff]
  %v261 = vld [vmem:[#allocation2 + $0x1c0] sm:$0xff]
  %v262 = vld [vmem:[#allocation2 + $0x1c8] sm:$0xff]
  %v263 = vld [vmem:[#allocation2 + $0x1d0] sm:$0xff]
  %v264 = vld [vmem:[#allocation2 + $0x1d8] sm:$0xff]
  %v265 = vld [vmem:[#allocation2 + $0x1e0] sm:$0xff]
  %v266 = vld [vmem:[#allocation2 + $0x1e8] sm:$0xff]
  %v267 = vld [vmem:[#allocation2 + $0x1f0] sm:$0xff]
  %v268 = vld [vmem:[#allocation2 + $0x1f8] sm:$0xff]
  %v269 = vld [vmem:[%s2] sm:$0xff]
  %v270 = vld [vmem:[%s2 + $0x8] sm:$0xff]
  %v271 = vld [vmem:[#allocation2 + $0x1] sm:$0xff]
  %v272 = vld [vmem:[#allocation2 + $0x9] sm:$0xff]
  %v273 = vld [vmem:[#allocation2 + $0x11] sm:$0xff]
  %v274 = vld [vmem:[#allocation2 + $0x19] sm:$0xff]
  %v275 = vld [vmem:[#allocation2 + $0x21] sm:$0xff]
  %v276 = vld [vmem:[#allocation2 + $0x29] sm:$0xff]
  %v277 = vld [vmem:[#allocation2 + $0x31] sm:$0xff]
  %v278 = vld [vmem:[#allocation2 + $0x39] sm:$0xff]
  %v279 = vld [vmem:[#allocation2 + $0x41] sm:$0xff]
  %v280 = vld [vmem:[#allocation2 + $0x49] sm:$0xff]
  %v281 = vld [vmem:[#allocation2 + $0x51] sm:$0xff]
  %v282 = vld [vmem:[#allocation2 + $0x59] sm:$0xff]
  %v283 = vld [vmem:[#allocation2 + $0x61] sm:$0xff]
  %v284 = vld [vmem:[#allocation2 + $0x69] sm:$0xff]
  %v285 = vld [vmem:[#allocation2 + $0x71] sm:$0xff]
  %v286 = vld [vmem:[#allocation2 + $0x79] sm:$0xff]
  %v287 = vld [vmem:[#allocation2 + $0x81] sm:$0xff]
  %v288 = vld [vmem:[#allocation2 + $0x89] sm:$0xff]
  %v289 = vld [vmem:[#allocation2 + $0x91] sm:$0xff]
  %v290 = vld [vmem:[#allocation2 + $0x99] sm:$0xff]
  %v291 = vld [vmem:[#allocation2 + $0xa1] sm:$0xff]
  %v292 = vld [vmem:[#allocation2 + $0xa9] sm:$0xff]
  %v293 = vld [vmem:[#allocation2 + $0xb1] sm:$0xff]
  %v294 = vld [vmem:[#allocation2 + $0xb9] sm:$0xff]
  %v295 = vld [vmem:[#allocation2 + $0xc1] sm:$0xff]
  %v296 = vld [vmem:[#allocation2 + $0xc9] sm:$0xff]
  %v297 = vld [vmem:[#allocation2 + $0xd1] sm:$0xff]
  %v298 = vld [vmem:[#allocation2 + $0xd9] sm:$0xff]
  %v299 = vld [vmem:[#allocation2 + $0xe1] sm:$0xff]
  %v300 = vld [vmem:[#allocation2 + $0xe9] sm:$0xff]
  %v301 = vld [vmem:[#allocation2 + $0xf1] sm:$0xff]
  %v302 = vld [vmem:[#allocation2 + $0xf9] sm:$0xff]
  %v303 = vld [vmem:[#allocation2 + $0x101] sm:$0xff]
  %v304 = vld [vmem:[#allocation2 + $0x109] sm:$0xff]
  %v305 = vld [vmem:[#allocation2 + $0x111] sm:$0xff]
  %v306 = vld [vmem:[#allocation2 + $0x119] sm:$0xff]
  %v307 = vld [vmem:[#allocation2 + $0x121] sm:$0xff]
  %v308 = vld [vmem:[#allocation2 + $0x129] sm:$0xff]
  %v309 = vld [vmem:[#allocation2 + $0x131] sm:$0xff]
  %v310 = vld [vmem:[#allocation2 + $0x139] sm:$0xff]
  %v311 = vld [vmem:[#allocation2 + $0x141] sm:$0xff]
  %v312 = vld [vmem:[#allocation2 + $0x149] sm:$0xff]
  %v313 = vld [vmem:[#allocation2 + $0x151] sm:$0xff]
  %v314 = vld [vmem:[#allocation2 + $0x159] sm:$0xff]
  %v315 = vld [vmem:[#allocation2 + $0x161] sm:$0xff]
  %v316 = vld [vmem:[#allocation2 + $0x169] sm:$0xff]
  %v317 = vld [vmem:[#allocation2 + $0x171] sm:$0xff]
  %v318 = vld [vmem:[#allocation2 + $0x179] sm:$0xff]
  %v319 = vld [vmem:[#allocation2 + $0x181] sm:$0xff]
  %v320 = vld [vmem:[#allocation2 + $0x189] sm:$0xff]
  %v321 = vld [vmem:[#allocation2 + $0x191] sm:$0xff]
  %v322 = vld [vmem:[#allocation2 + $0x199] sm:$0xff]
  %v323 = vld [vmem:[#allocation2 + $0x1a1] sm:$0xff]
  %v324 = vld [vmem:[#allocation2 + $0x1a9] sm:$0xff]
  %v325 = vld [vmem:[#allocation2 + $0x1b1] sm:$0xff]
  %v326 = vld [vmem:[#allocation2 + $0x1b9] sm:$0xff]
  %v327 = vld [vmem:[#allocation2 + $0x1c1] sm:$0xff]
  %v328 = vld [vmem:[#allocation2 + $0x1c9] sm:$0xff]
  %v329 = vld [vmem:[#allocation2 + $0x1d1] sm:$0xff]
  %v330 = vld [vmem:[#allocation2 + $0x1d9] sm:$0xff]
  %v331 = vld [vmem:[#allocation2 + $0x1e1] sm:$0xff]
  %v332 = vld [vmem:[#allocation2 + $0x1e9] sm:$0xff]
  %v333 = vld [vmem:[#allocation2 + $0x1f1] sm:$0xff]
  %v334 = vld [vmem:[#allocation2 + $0x1f9] sm:$0xff]
  %s335 = scalar_lea.vmem %s2, 16
  %v336 = vld [vmem:[%s335] sm:$0xff]
  %v337 = vld [vmem:[%s335 + $0x8] sm:$0xff]
  %v339 = vsel %vm108, %v271, 0
  %v342 = vsel %vm108, %v272, 0
  %v345 = vsel %vm108, %v273, 0
  %v348 = vsel %vm108, %v274, 0
  %v351 = vsel %vm108, %v275, 0
  %v354 = vsel %vm108, %v276, 0
  %v357 = vsel %vm108, %v277, 0
  %v360 = vsel %vm108, %v278, 0
  %v363 = vsel %vm108, %v279, 0
  %v366 = vsel %vm108, %v280, 0
  %v369 = vsel %vm108, %v281, 0
  %v372 = vsel %vm108, %v282, 0
  %v375 = vsel %vm108, %v283, 0
  %v378 = vsel %vm108, %v284, 0
  %v381 = vsel %vm108, %v285, 0
  %v384 = vsel %vm108, %v286, 0
  %v387 = vsel %vm108, %v287, 0
  %v390 = vsel %vm108, %v288, 0
  %v393 = vsel %vm108, %v289, 0
  %v396 = vsel %vm108, %v290, 0
  %v399 = vsel %vm108, %v291, 0
  %v402 = vsel %vm108, %v292, 0
  %v405 = vsel %vm108, %v293, 0
  %v408 = vsel %vm108, %v294, 0
  %v411 = vsel %vm108, %v295, 0
  %v414 = vsel %vm108, %v296, 0
  %v417 = vsel %vm108, %v297, 0
  %v420 = vsel %vm108, %v298, 0
  %v423 = vsel %vm108, %v299, 0
  %v426 = vsel %vm108, %v300, 0
  %v429 = vsel %vm108, %v301, 0
  %v432 = vsel %vm108, %v302, 0
  %v435 = vsel %vm108, %v303, 0
  %v438 = vsel %vm108, %v304, 0
  %v441 = vsel %vm108, %v305, 0
  %v444 = vsel %vm108, %v306, 0
  %v447 = vsel %vm108, %v307, 0
  %v450 = vsel %vm108, %v308, 0
  %v453 = vsel %vm108, %v309, 0
  %v456 = vsel %vm108, %v310, 0
  %v459 = vsel %vm108, %v311, 0
  %v462 = vsel %vm108, %v312, 0
  %v465 = vsel %vm108, %v313, 0
  %v468 = vsel %vm108, %v314, 0
  %v471 = vsel %vm108, %v315, 0
  %v474 = vsel %vm108, %v316, 0
  %v477 = vsel %vm108, %v317, 0
  %v480 = vsel %vm108, %v318, 0
  %v483 = vsel %vm108, %v319, 0
  %v486 = vsel %vm108, %v320, 0
  %v489 = vsel %vm108, %v321, 0
  %v492 = vsel %vm108, %v322, 0
  %v495 = vsel %vm108, %v323, 0
  %v498 = vsel %vm108, %v324, 0
  %v501 = vsel %vm108, %v325, 0
  %v504 = vsel %vm108, %v326, 0
  %v507 = vsel %vm108, %v327, 0
  %v510 = vsel %vm108, %v328, 0
  %v513 = vsel %vm108, %v329, 0
  %v516 = vsel %vm108, %v330, 0
  %v519 = vsel %vm108, %v331, 0
  %v522 = vsel %vm108, %v332, 0
  %v525 = vsel %vm108, %v333, 0
  %v528 = vsel %vm108, %v334, 0
  %530 = vmatprep.subr.mxu0 0.0
  %531 = vmatpush1.msra.mxu0 0.0
  %532 = vmatprep.subr.mxu0 0.0
  %533 = vmatpush1.msra.mxu0 0.0
  %534 = vmatprep.subr.mxu0 0.0
  %535 = vmatpush1.msra.mxu0 0.0
  %536 = vmatprep.subr.mxu0 0.0
  %537 = vmatpush1.msra.mxu0 0.0
  %538 = vmatprep.subr.mxu0 0.0
  %539 = vmatpush1.msra.mxu0 0.0
  %540 = vmatprep.subr.mxu0 0.0
  %541 = vmatpush1.msra.mxu0 0.0
  %542 = vmatprep.subr.mxu0 0.0
  %543 = vmatpush1.msra.mxu0 0.0
  %544 = vmatprep.subr.mxu0 0.0
  %545 = vmatpush1.msra.mxu0 0.0
  %546 = vmatprep.subr.mxu0 0.0
  %547 = vmatpush1.msra.mxu0 0.0
  %548 = vmatprep.subr.mxu0 0.0
  %549 = vmatpush1.msra.mxu0 0.0
  %550 = vmatprep.subr.mxu0 0.0
  %551 = vmatpush1.msra.mxu0 0.0
  %552 = vmatprep.subr.mxu0 0.0
  %553 = vmatpush1.msra.mxu0 0.0
  %554 = vmatprep.subr.mxu0 0.0
  %555 = vmatpush1.msra.mxu0 0.0
  %556 = vmatprep.subr.mxu0 0.0
  %557 = vmatpush1.msra.mxu0 0.0
  %558 = vmatprep.subr.mxu0 0.0
  %559 = vmatpush1.msra.mxu0 %v337
  %560 = vmatprep.subr.mxu0 0.0
  %561 = vmatpush1.msra.mxu0 %v336
  %562 = vmatprep.subr.mxu0 0.0
  %563 = vmatpush2.msra.mxu0 0.0
  %564 = vmatprep.subr.mxu0 0.0
  %565 = vmatpush2.msra.mxu0 0.0
  %566 = vmatprep.subr.mxu0 0.0
  %567 = vmatpush2.msra.mxu0 0.0
  %568 = vmatprep.subr.mxu0 0.0
  %569 = vmatpush2.msra.mxu0 0.0
  %570 = vmatprep.subr.mxu0 0.0
  %571 = vmatpush2.msra.mxu0 0.0
  %572 = vmatprep.subr.mxu0 0.0
  %573 = vmatpush2.msra.mxu0 0.0
  %574 = vmatprep.subr.mxu0 0.0
  %575 = vmatpush2.msra.mxu0 0.0
  %576 = vmatprep.subr.mxu0 0.0
  %577 = vmatpush2.msra.mxu0 0.0
  %578 = vmatprep.subr.mxu0 0.0
  %579 = vmatpush2.msra.mxu0 0.0
  %580 = vmatprep.subr.mxu0 0.0
  %581 = vmatpush2.msra.mxu0 0.0
  %582 = vmatprep.subr.mxu0 0.0
  %583 = vmatpush2.msra.mxu0 0.0
  %584 = vmatprep.subr.mxu0 0.0
  %585 = vmatpush2.msra.mxu0 0.0
  %586 = vmatprep.subr.mxu0 0.0
  %587 = vmatpush2.msra.mxu0 0.0
  %588 = vmatprep.subr.mxu0 0.0
  %589 = vmatpush2.msra.mxu0 0.0
  %590 = vmatprep.subr.mxu0 0.0
  %591 = vmatpush2.msra.mxu0 0.0
  %592 = vmatprep.subr.mxu0 0.0
  %593 = vmatpush2.msra.mxu0 0.0
  %594 = vmatprep.mubr.f32.mxu0 0.0
  %595 = vmatmul.mubr.f32.gmra.mxu0 %v339
  %v596 = vpop.f32.mrf.mxu0
  %v597 = vadd.f32 0.0, %v596
  %v598 = vpop.f32.mrf.mxu0
  %599 = vmatprep.mubr.f32.mxu0 0.0
  %600 = vmatmul.mubr.f32.gmra.mxu0 %v342
  %v601 = vpop.f32.mrf.mxu0
  %v602 = vadd.f32 0.0, %v601
  %v603 = vpop.f32.mrf.mxu0
  %604 = vmatprep.mubr.f32.mxu0 0.0
  %605 = vmatmul.mubr.f32.gmra.mxu0 %v345
  %v606 = vpop.f32.mrf.mxu0
  %v607 = vadd.f32 0.0, %v606
  %v608 = vpop.f32.mrf.mxu0
  %609 = vmatprep.mubr.f32.mxu0 0.0
  %610 = vmatmul.mubr.f32.gmra.mxu0 %v348
  %v611 = vpop.f32.mrf.mxu0
  %v612 = vadd.f32 0.0, %v611
  %v613 = vpop.f32.mrf.mxu0
  %614 = vmatprep.mubr.f32.mxu0 0.0
  %615 = vmatmul.mubr.f32.gmra.mxu0 %v351
  %v616 = vpop.f32.mrf.mxu0
  %v617 = vadd.f32 0.0, %v616
  %v618 = vpop.f32.mrf.mxu0
  %619 = vmatprep.mubr.f32.mxu0 0.0
  %620 = vmatmul.mubr.f32.gmra.mxu0 %v354
  %v621 = vpop.f32.mrf.mxu0
  %v622 = vadd.f32 0.0, %v621
  %v623 = vpop.f32.mrf.mxu0
  %624 = vmatprep.mubr.f32.mxu0 0.0
  %625 = vmatmul.mubr.f32.gmra.mxu0 %v357
  %v626 = vpop.f32.mrf.mxu0
  %v627 = vadd.f32 0.0, %v626
  %v628 = vpop.f32.mrf.mxu0
  %629 = vmatprep.mubr.f32.mxu0 0.0
  %630 = vmatmul.mubr.f32.gmra.mxu0 %v360
  %v631 = vpop.f32.mrf.mxu0
  %v632 = vadd.f32 0.0, %v631
  %v633 = vpop.f32.mrf.mxu0
  %634 = vmatprep.mubr.f32.mxu0 0.0
  %635 = vmatmul.mubr.f32.gmra.mxu0 %v363
  %v636 = vpop.f32.mrf.mxu0
  %v637 = vadd.f32 0.0, %v636
  %v638 = vpop.f32.mrf.mxu0
  %639 = vmatprep.mubr.f32.mxu0 0.0
  %640 = vmatmul.mubr.f32.gmra.mxu0 %v366
  %v641 = vpop.f32.mrf.mxu0
  %v642 = vadd.f32 0.0, %v641
  %v643 = vpop.f32.mrf.mxu0
  %644 = vmatprep.mubr.f32.mxu0 0.0
  %645 = vmatmul.mubr.f32.gmra.mxu0 %v369
  %v646 = vpop.f32.mrf.mxu0
  %v647 = vadd.f32 0.0, %v646
  %v648 = vpop.f32.mrf.mxu0
  %649 = vmatprep.mubr.f32.mxu0 0.0
  %650 = vmatmul.mubr.f32.gmra.mxu0 %v372
  %v651 = vpop.f32.mrf.mxu0
  %v652 = vadd.f32 0.0, %v651
  %v653 = vpop.f32.mrf.mxu0
  %654 = vmatprep.mubr.f32.mxu0 0.0
  %655 = vmatmul.mubr.f32.gmra.mxu0 %v375
  %v656 = vpop.f32.mrf.mxu0
  %v657 = vadd.f32 0.0, %v656
  %v658 = vpop.f32.mrf.mxu0
  %659 = vmatprep.mubr.f32.mxu0 0.0
  %660 = vmatmul.mubr.f32.gmra.mxu0 %v378
  %v661 = vpop.f32.mrf.mxu0
  %v662 = vadd.f32 0.0, %v661
  %v663 = vpop.f32.mrf.mxu0
  %664 = vmatprep.mubr.f32.mxu0 0.0
  %665 = vmatmul.mubr.f32.gmra.mxu0 %v381
  %v666 = vpop.f32.mrf.mxu0
  %v667 = vadd.f32 0.0, %v666
  %v668 = vpop.f32.mrf.mxu0
  %669 = vmatprep.mubr.f32.mxu0 0.0
  %670 = vmatmul.mubr.f32.gmra.mxu0 %v384
  %v671 = vpop.f32.mrf.mxu0
  %v672 = vadd.f32 0.0, %v671
  %v673 = vpop.f32.mrf.mxu0
  %674 = vmatprep.mubr.f32.mxu0 0.0
  %675 = vmatmul.mubr.f32.gmra.mxu0 %v387
  %v676 = vpop.f32.mrf.mxu0
  %v677 = vadd.f32 0.0, %v676
  %v678 = vpop.f32.mrf.mxu0
  %679 = vmatprep.mubr.f32.mxu0 0.0
  %680 = vmatmul.mubr.f32.gmra.mxu0 %v390
  %v681 = vpop.f32.mrf.mxu0
  %v682 = vadd.f32 0.0, %v681
  %v683 = vpop.f32.mrf.mxu0
  %684 = vmatprep.mubr.f32.mxu0 0.0
  %685 = vmatmul.mubr.f32.gmra.mxu0 %v393
  %v686 = vpop.f32.mrf.mxu0
  %v687 = vadd.f32 0.0, %v686
  %v688 = vpop.f32.mrf.mxu0
  %689 = vmatprep.mubr.f32.mxu0 0.0
  %690 = vmatmul.mubr.f32.gmra.mxu0 %v396
  %v691 = vpop.f32.mrf.mxu0
  %v692 = vadd.f32 0.0, %v691
  %v693 = vpop.f32.mrf.mxu0
  %694 = vmatprep.mubr.f32.mxu0 0.0
  %695 = vmatmul.mubr.f32.gmra.mxu0 %v399
  %v696 = vpop.f32.mrf.mxu0
  %v697 = vadd.f32 0.0, %v696
  %v698 = vpop.f32.mrf.mxu0
  %699 = vmatprep.mubr.f32.mxu0 0.0
  %700 = vmatmul.mubr.f32.gmra.mxu0 %v402
  %v701 = vpop.f32.mrf.mxu0
  %v702 = vadd.f32 0.0, %v701
  %v703 = vpop.f32.mrf.mxu0
  %704 = vmatprep.mubr.f32.mxu0 0.0
  %705 = vmatmul.mubr.f32.gmra.mxu0 %v405
  %v706 = vpop.f32.mrf.mxu0
  %v707 = vadd.f32 0.0, %v706
  %v708 = vpop.f32.mrf.mxu0
  %709 = vmatprep.mubr.f32.mxu0 0.0
  %710 = vmatmul.mubr.f32.gmra.mxu0 %v408
  %v711 = vpop.f32.mrf.mxu0
  %v712 = vadd.f32 0.0, %v711
  %v713 = vpop.f32.mrf.mxu0
  %714 = vmatprep.mubr.f32.mxu0 0.0
  %715 = vmatmul.mubr.f32.gmra.mxu0 %v411
  %v716 = vpop.f32.mrf.mxu0
  %v717 = vadd.f32 0.0, %v716
  %v718 = vpop.f32.mrf.mxu0
  %719 = vmatprep.mubr.f32.mxu0 0.0
  %720 = vmatmul.mubr.f32.gmra.mxu0 %v414
  %v721 = vpop.f32.mrf.mxu0
  %v722 = vadd.f32 0.0, %v721
  %v723 = vpop.f32.mrf.mxu0
  %724 = vmatprep.mubr.f32.mxu0 0.0
  %725 = vmatmul.mubr.f32.gmra.mxu0 %v417
  %v726 = vpop.f32.mrf.mxu0
  %v727 = vadd.f32 0.0, %v726
  %v728 = vpop.f32.mrf.mxu0
  %729 = vmatprep.mubr.f32.mxu0 0.0
  %730 = vmatmul.mubr.f32.gmra.mxu0 %v420
  %v731 = vpop.f32.mrf.mxu0
  %v732 = vadd.f32 0.0, %v731
  %v733 = vpop.f32.mrf.mxu0
  %734 = vmatprep.mubr.f32.mxu0 0.0
  %735 = vmatmul.mubr.f32.gmra.mxu0 %v423
  %v736 = vpop.f32.mrf.mxu0
  %v737 = vadd.f32 0.0, %v736
  %v738 = vpop.f32.mrf.mxu0
  %739 = vmatprep.mubr.f32.mxu0 0.0
  %740 = vmatmul.mubr.f32.gmra.mxu0 %v426
  %v741 = vpop.f32.mrf.mxu0
  %v742 = vadd.f32 0.0, %v741
  %v743 = vpop.f32.mrf.mxu0
  %744 = vmatprep.mubr.f32.mxu0 0.0
  %745 = vmatmul.mubr.f32.gmra.mxu0 %v429
  %v746 = vpop.f32.mrf.mxu0
  %v747 = vadd.f32 0.0, %v746
  %v748 = vpop.f32.mrf.mxu0
  %749 = vmatprep.mubr.f32.mxu0 0.0
  %750 = vmatmul.mubr.f32.gmra.mxu0 %v432
  %v751 = vpop.f32.mrf.mxu0
  %v752 = vadd.f32 0.0, %v751
  %v753 = vpop.f32.mrf.mxu0
  %754 = vmatprep.mubr.f32.mxu0 0.0
  %755 = vmatmul.mubr.f32.gmra.mxu0 %v435
  %v756 = vpop.f32.mrf.mxu0
  %v757 = vadd.f32 0.0, %v756
  %v758 = vpop.f32.mrf.mxu0
  %759 = vmatprep.mubr.f32.mxu0 0.0
  %760 = vmatmul.mubr.f32.gmra.mxu0 %v438
  %v761 = vpop.f32.mrf.mxu0
  %v762 = vadd.f32 0.0, %v761
  %v763 = vpop.f32.mrf.mxu0
  %764 = vmatprep.mubr.f32.mxu0 0.0
  %765 = vmatmul.mubr.f32.gmra.mxu0 %v441
  %v766 = vpop.f32.mrf.mxu0
  %v767 = vadd.f32 0.0, %v766
  %v768 = vpop.f32.mrf.mxu0
  %769 = vmatprep.mubr.f32.mxu0 0.0
  %770 = vmatmul.mubr.f32.gmra.mxu0 %v444
  %v771 = vpop.f32.mrf.mxu0
  %v772 = vadd.f32 0.0, %v771
  %v773 = vpop.f32.mrf.mxu0
  %774 = vmatprep.mubr.f32.mxu0 0.0
  %775 = vmatmul.mubr.f32.gmra.mxu0 %v447
  %v776 = vpop.f32.mrf.mxu0
  %v777 = vadd.f32 0.0, %v776
  %v778 = vpop.f32.mrf.mxu0
  %779 = vmatprep.mubr.f32.mxu0 0.0
  %780 = vmatmul.mubr.f32.gmra.mxu0 %v450
  %v781 = vpop.f32.mrf.mxu0
  %v782 = vadd.f32 0.0, %v781
  %v783 = vpop.f32.mrf.mxu0
  %784 = vmatprep.mubr.f32.mxu0 0.0
  %785 = vmatmul.mubr.f32.gmra.mxu0 %v453
  %v786 = vpop.f32.mrf.mxu0
  %v787 = vadd.f32 0.0, %v786
  %v788 = vpop.f32.mrf.mxu0
  %789 = vmatprep.mubr.f32.mxu0 0.0
  %790 = vmatmul.mubr.f32.gmra.mxu0 %v456
  %v791 = vpop.f32.mrf.mxu0
  %v792 = vadd.f32 0.0, %v791
  %v793 = vpop.f32.mrf.mxu0
  %794 = vmatprep.mubr.f32.mxu0 0.0
  %795 = vmatmul.mubr.f32.gmra.mxu0 %v459
  %v796 = vpop.f32.mrf.mxu0
  %v797 = vadd.f32 0.0, %v796
  %v798 = vpop.f32.mrf.mxu0
  %799 = vmatprep.mubr.f32.mxu0 0.0
  %800 = vmatmul.mubr.f32.gmra.mxu0 %v462
  %v801 = vpop.f32.mrf.mxu0
  %v802 = vadd.f32 0.0, %v801
  %v803 = vpop.f32.mrf.mxu0
  %804 = vmatprep.mubr.f32.mxu0 0.0
  %805 = vmatmul.mubr.f32.gmra.mxu0 %v465
  %v806 = vpop.f32.mrf.mxu0
  %v807 = vadd.f32 0.0, %v806
  %v808 = vpop.f32.mrf.mxu0
  %809 = vmatprep.mubr.f32.mxu0 0.0
  %810 = vmatmul.mubr.f32.gmra.mxu0 %v468
  %v811 = vpop.f32.mrf.mxu0
  %v812 = vadd.f32 0.0, %v811
  %v813 = vpop.f32.mrf.mxu0
  %814 = vmatprep.mubr.f32.mxu0 0.0
  %815 = vmatmul.mubr.f32.gmra.mxu0 %v471
  %v816 = vpop.f32.mrf.mxu0
  %v817 = vadd.f32 0.0, %v816
  %v818 = vpop.f32.mrf.mxu0
  %819 = vmatprep.mubr.f32.mxu0 0.0
  %820 = vmatmul.mubr.f32.gmra.mxu0 %v474
  %v821 = vpop.f32.mrf.mxu0
  %v822 = vadd.f32 0.0, %v821
  %v823 = vpop.f32.mrf.mxu0
  %824 = vmatprep.mubr.f32.mxu0 0.0
  %825 = vmatmul.mubr.f32.gmra.mxu0 %v477
  %v826 = vpop.f32.mrf.mxu0
  %v827 = vadd.f32 0.0, %v826
  %v828 = vpop.f32.mrf.mxu0
  %829 = vmatprep.mubr.f32.mxu0 0.0
  %830 = vmatmul.mubr.f32.gmra.mxu0 %v480
  %v831 = vpop.f32.mrf.mxu0
  %v832 = vadd.f32 0.0, %v831
  %v833 = vpop.f32.mrf.mxu0
  %834 = vmatprep.mubr.f32.mxu0 0.0
  %835 = vmatmul.mubr.f32.gmra.mxu0 %v483
  %v836 = vpop.f32.mrf.mxu0
  %v837 = vadd.f32 0.0, %v836
  %v838 = vpop.f32.mrf.mxu0
  %839 = vmatprep.mubr.f32.mxu0 0.0
  %840 = vmatmul.mubr.f32.gmra.mxu0 %v486
  %v841 = vpop.f32.mrf.mxu0
  %v842 = vadd.f32 0.0, %v841
  %v843 = vpop.f32.mrf.mxu0
  %844 = vmatprep.mubr.f32.mxu0 0.0
  %845 = vmatmul.mubr.f32.gmra.mxu0 %v489
  %v846 = vpop.f32.mrf.mxu0
  %v847 = vadd.f32 0.0, %v846
  %v848 = vpop.f32.mrf.mxu0
  %849 = vmatprep.mubr.f32.mxu0 0.0
  %850 = vmatmul.mubr.f32.gmra.mxu0 %v492
  %v851 = vpop.f32.mrf.mxu0
  %v852 = vadd.f32 0.0, %v851
  %v853 = vpop.f32.mrf.mxu0
  %854 = vmatprep.mubr.f32.mxu0 0.0
  %855 = vmatmul.mubr.f32.gmra.mxu0 %v495
  %v856 = vpop.f32.mrf.mxu0
  %v857 = vadd.f32 0.0, %v856
  %v858 = vpop.f32.mrf.mxu0
  %859 = vmatprep.mubr.f32.mxu0 0.0
  %860 = vmatmul.mubr.f32.gmra.mxu0 %v498
  %v861 = vpop.f32.mrf.mxu0
  %v862 = vadd.f32 0.0, %v861
  %v863 = vpop.f32.mrf.mxu0
  %864 = vmatprep.mubr.f32.mxu0 0.0
  %865 = vmatmul.mubr.f32.gmra.mxu0 %v501
  %v866 = vpop.f32.mrf.mxu0
  %v867 = vadd.f32 0.0, %v866
  %v868 = vpop.f32.mrf.mxu0
  %869 = vmatprep.mubr.f32.mxu0 0.0
  %870 = vmatmul.mubr.f32.gmra.mxu0 %v504
  %v871 = vpop.f32.mrf.mxu0
  %v872 = vadd.f32 0.0, %v871
  %v873 = vpop.f32.mrf.mxu0
  %874 = vmatprep.mubr.f32.mxu0 0.0
  %875 = vmatmul.mubr.f32.gmra.mxu0 %v507
  %v876 = vpop.f32.mrf.mxu0
  %v877 = vadd.f32 0.0, %v876
  %v878 = vpop.f32.mrf.mxu0
  %879 = vmatprep.mubr.f32.mxu0 0.0
  %880 = vmatmul.mubr.f32.gmra.mxu0 %v510
  %v881 = vpop.f32.mrf.mxu0
  %v882 = vadd.f32 0.0, %v881
  %v883 = vpop.f32.mrf.mxu0
  %884 = vmatprep.mubr.f32.mxu0 0.0
  %885 = vmatmul.mubr.f32.gmra.mxu0 %v513
  %v886 = vpop.f32.mrf.mxu0
  %v887 = vadd.f32 0.0, %v886
  %v888 = vpop.f32.mrf.mxu0
  %889 = vmatprep.mubr.f32.mxu0 0.0
  %890 = vmatmul.mubr.f32.gmra.mxu0 %v516
  %v891 = vpop.f32.mrf.mxu0
  %v892 = vadd.f32 0.0, %v891
  %v893 = vpop.f32.mrf.mxu0
  %894 = vmatprep.mubr.f32.mxu0 0.0
  %895 = vmatmul.mubr.f32.gmra.mxu0 %v519
  %v896 = vpop.f32.mrf.mxu0
  %v897 = vadd.f32 0.0, %v896
  %v898 = vpop.f32.mrf.mxu0
  %899 = vmatprep.mubr.f32.mxu0 0.0
  %900 = vmatmul.mubr.f32.gmra.mxu0 %v522
  %v901 = vpop.f32.mrf.mxu0
  %v902 = vadd.f32 0.0, %v901
  %v903 = vpop.f32.mrf.mxu0
  %904 = vmatprep.mubr.f32.mxu0 0.0
  %905 = vmatmul.mubr.f32.gmra.mxu0 %v525
  %v906 = vpop.f32.mrf.mxu0
  %v907 = vadd.f32 0.0, %v906
  %v908 = vpop.f32.mrf.mxu0
  %909 = vmatprep.mubr.f32.mxu0 0.0
  %910 = vmatmul.mubr.f32.gmra.mxu0 %v528
  %v911 = vpop.f32.mrf.mxu0
  %v912 = vadd.f32 0.0, %v911
  %v913 = vpop.f32.mrf.mxu0
  %914 = vdwg.mxu0
  %v916 = vsel %vm108, %v205, 0
  %v919 = vsel %vm108, %v206, 0
  %v922 = vsel %vm108, %v207, 0
  %v925 = vsel %vm108, %v208, 0
  %v928 = vsel %vm108, %v209, 0
  %v931 = vsel %vm108, %v210, 0
  %v934 = vsel %vm108, %v211, 0
  %v937 = vsel %vm108, %v212, 0
  %v940 = vsel %vm108, %v213, 0
  %v943 = vsel %vm108, %v214, 0
  %v946 = vsel %vm108, %v215, 0
  %v949 = vsel %vm108, %v216, 0
  %v952 = vsel %vm108, %v217, 0
  %v955 = vsel %vm108, %v218, 0
  %v958 = vsel %vm108, %v219, 0
  %v961 = vsel %vm108, %v220, 0
  %v964 = vsel %vm108, %v221, 0
  %v967 = vsel %vm108, %v222, 0
  %v970 = vsel %vm108, %v223, 0
  %v973 = vsel %vm108, %v224, 0
  %v976 = vsel %vm108, %v225, 0
  %v979 = vsel %vm108, %v226, 0
  %v982 = vsel %vm108, %v227, 0
  %v985 = vsel %vm108, %v228, 0
  %v988 = vsel %vm108, %v229, 0
  %v991 = vsel %vm108, %v230, 0
  %v994 = vsel %vm108, %v231, 0
  %v997 = vsel %vm108, %v232, 0
  %v1000 = vsel %vm108, %v233, 0
  %v1003 = vsel %vm108, %v234, 0
  %v1006 = vsel %vm108, %v235, 0
  %v1009 = vsel %vm108, %v236, 0
  %v1012 = vsel %vm108, %v237, 0
  %v1015 = vsel %vm108, %v238, 0
  %v1018 = vsel %vm108, %v239, 0
  %v1021 = vsel %vm108, %v240, 0
  %v1024 = vsel %vm108, %v241, 0
  %v1027 = vsel %vm108, %v242, 0
  %v1030 = vsel %vm108, %v243, 0
  %v1033 = vsel %vm108, %v244, 0
  %v1036 = vsel %vm108, %v245, 0
  %v1039 = vsel %vm108, %v246, 0
  %v1042 = vsel %vm108, %v247, 0
  %v1045 = vsel %vm108, %v248, 0
  %v1048 = vsel %vm108, %v249, 0
  %v1051 = vsel %vm108, %v250, 0
  %v1054 = vsel %vm108, %v251, 0
  %v1057 = vsel %vm108, %v252, 0
  %v1060 = vsel %vm108, %v253, 0
  %v1063 = vsel %vm108, %v254, 0
  %v1066 = vsel %vm108, %v255, 0
  %v1069 = vsel %vm108, %v256, 0
  %v1072 = vsel %vm108, %v257, 0
  %v1075 = vsel %vm108, %v258, 0
  %v1078 = vsel %vm108, %v259, 0
  %v1081 = vsel %vm108, %v260, 0
  %v1084 = vsel %vm108, %v261, 0
  %v1087 = vsel %vm108, %v262, 0
  %v1090 = vsel %vm108, %v263, 0
  %v1093 = vsel %vm108, %v264, 0
  %v1096 = vsel %vm108, %v265, 0
  %v1099 = vsel %vm108, %v266, 0
  %v1102 = vsel %vm108, %v267, 0
  %v1105 = vsel %vm108, %v268, 0
  %1107 = vmatprep.subr.mxu0 0.0
  %1108 = vmatpush1.msra.mxu0 0.0
  %1109 = vmatprep.subr.mxu0 0.0
  %1110 = vmatpush1.msra.mxu0 0.0
  %1111 = vmatprep.subr.mxu0 0.0
  %1112 = vmatpush1.msra.mxu0 0.0
  %1113 = vmatprep.subr.mxu0 0.0
  %1114 = vmatpush1.msra.mxu0 0.0
  %1115 = vmatprep.subr.mxu0 0.0
  %1116 = vmatpush1.msra.mxu0 0.0
  %1117 = vmatprep.subr.mxu0 0.0
  %1118 = vmatpush1.msra.mxu0 0.0
  %1119 = vmatprep.subr.mxu0 0.0
  %1120 = vmatpush1.msra.mxu0 0.0
  %1121 = vmatprep.subr.mxu0 0.0
  %1122 = vmatpush1.msra.mxu0 0.0
  %1123 = vmatprep.subr.mxu0 0.0
  %1124 = vmatpush1.msra.mxu0 0.0
  %1125 = vmatprep.subr.mxu0 0.0
  %1126 = vmatpush1.msra.mxu0 0.0
  %1127 = vmatprep.subr.mxu0 0.0
  %1128 = vmatpush1.msra.mxu0 0.0
  %1129 = vmatprep.subr.mxu0 0.0
  %1130 = vmatpush1.msra.mxu0 0.0
  %1131 = vmatprep.subr.mxu0 0.0
  %1132 = vmatpush1.msra.mxu0 0.0
  %1133 = vmatprep.subr.mxu0 0.0
  %1134 = vmatpush1.msra.mxu0 0.0
  %1135 = vmatprep.subr.mxu0 0.0
  %1136 = vmatpush1.msra.mxu0 %v270
  %1137 = vmatprep.subr.mxu0 0.0
  %1138 = vmatpush1.msra.mxu0 %v269
  %1139 = vmatprep.subr.mxu0 0.0
  %1140 = vmatpush2.msra.mxu0 0.0
  %1141 = vmatprep.subr.mxu0 0.0
  %1142 = vmatpush2.msra.mxu0 0.0
  %1143 = vmatprep.subr.mxu0 0.0
  %1144 = vmatpush2.msra.mxu0 0.0
  %1145 = vmatprep.subr.mxu0 0.0
  %1146 = vmatpush2.msra.mxu0 0.0
  %1147 = vmatprep.subr.mxu0 0.0
  %1148 = vmatpush2.msra.mxu0 0.0
  %1149 = vmatprep.subr.mxu0 0.0
  %1150 = vmatpush2.msra.mxu0 0.0
  %1151 = vmatprep.subr.mxu0 0.0
  %1152 = vmatpush2.msra.mxu0 0.0
  %1153 = vmatprep.subr.mxu0 0.0
  %1154 = vmatpush2.msra.mxu0 0.0
  %1155 = vmatprep.subr.mxu0 0.0
  %1156 = vmatpush2.msra.mxu0 0.0
  %1157 = vmatprep.subr.mxu0 0.0
  %1158 = vmatpush2.msra.mxu0 0.0
  %1159 = vmatprep.subr.mxu0 0.0
  %1160 = vmatpush2.msra.mxu0 0.0
  %1161 = vmatprep.subr.mxu0 0.0
  %1162 = vmatpush2.msra.mxu0 0.0
  %1163 = vmatprep.subr.mxu0 0.0
  %1164 = vmatpush2.msra.mxu0 0.0
  %1165 = vmatprep.subr.mxu0 0.0
  %1166 = vmatpush2.msra.mxu0 0.0
  %1167 = vmatprep.subr.mxu0 0.0
  %1168 = vmatpush2.msra.mxu0 0.0
  %1169 = vmatprep.subr.mxu0 0.0
  %1170 = vmatpush2.msra.mxu0 0.0
  %1171 = vmatprep.mubr.f32.mxu0 0.0
  %1172 = vmatmul.mubr.f32.gmra.mxu0 %v916
  %v1173 = vpop.f32.mrf.mxu0
  %v1174 = vadd.f32 %v597, %v1173
  %v1175 = vpop.f32.mrf.mxu0
  %1176 = vmatprep.mubr.f32.mxu0 0.0
  %1177 = vmatmul.mubr.f32.gmra.mxu0 %v919
  %v1178 = vpop.f32.mrf.mxu0
  %v1179 = vadd.f32 %v602, %v1178
  %v1180 = vpop.f32.mrf.mxu0
  %1181 = vmatprep.mubr.f32.mxu0 0.0
  %1182 = vmatmul.mubr.f32.gmra.mxu0 %v922
  %v1183 = vpop.f32.mrf.mxu0
  %v1184 = vadd.f32 %v607, %v1183
  %v1185 = vpop.f32.mrf.mxu0
  %1186 = vmatprep.mubr.f32.mxu0 0.0
  %1187 = vmatmul.mubr.f32.gmra.mxu0 %v925
  %v1188 = vpop.f32.mrf.mxu0
  %v1189 = vadd.f32 %v612, %v1188
  %v1190 = vpop.f32.mrf.mxu0
  %1191 = vmatprep.mubr.f32.mxu0 0.0
  %1192 = vmatmul.mubr.f32.gmra.mxu0 %v928
  %v1193 = vpop.f32.mrf.mxu0
  %v1194 = vadd.f32 %v617, %v1193
  %v1195 = vpop.f32.mrf.mxu0
  %1196 = vmatprep.mubr.f32.mxu0 0.0
  %1197 = vmatmul.mubr.f32.gmra.mxu0 %v931
  %v1198 = vpop.f32.mrf.mxu0
  %v1199 = vadd.f32 %v622, %v1198
  %v1200 = vpop.f32.mrf.mxu0
  %1201 = vmatprep.mubr.f32.mxu0 0.0
  %1202 = vmatmul.mubr.f32.gmra.mxu0 %v934
  %v1203 = vpop.f32.mrf.mxu0
  %v1204 = vadd.f32 %v627, %v1203
  %v1205 = vpop.f32.mrf.mxu0
  %1206 = vmatprep.mubr.f32.mxu0 0.0
  %1207 = vmatmul.mubr.f32.gmra.mxu0 %v937
  %v1208 = vpop.f32.mrf.mxu0
  %v1209 = vadd.f32 %v632, %v1208
  %v1210 = vpop.f32.mrf.mxu0
  %1211 = vmatprep.mubr.f32.mxu0 0.0
  %1212 = vmatmul.mubr.f32.gmra.mxu0 %v940
  %v1213 = vpop.f32.mrf.mxu0
  %v1214 = vadd.f32 %v637, %v1213
  %v1215 = vpop.f32.mrf.mxu0
  %1216 = vmatprep.mubr.f32.mxu0 0.0
  %1217 = vmatmul.mubr.f32.gmra.mxu0 %v943
  %v1218 = vpop.f32.mrf.mxu0
  %v1219 = vadd.f32 %v642, %v1218
  %v1220 = vpop.f32.mrf.mxu0
  %1221 = vmatprep.mubr.f32.mxu0 0.0
  %1222 = vmatmul.mubr.f32.gmra.mxu0 %v946
  %v1223 = vpop.f32.mrf.mxu0
  %v1224 = vadd.f32 %v647, %v1223
  %v1225 = vpop.f32.mrf.mxu0
  %1226 = vmatprep.mubr.f32.mxu0 0.0
  %1227 = vmatmul.mubr.f32.gmra.mxu0 %v949
  %v1228 = vpop.f32.mrf.mxu0
  %v1229 = vadd.f32 %v652, %v1228
  %v1230 = vpop.f32.mrf.mxu0
  %1231 = vmatprep.mubr.f32.mxu0 0.0
  %1232 = vmatmul.mubr.f32.gmra.mxu0 %v952
  %v1233 = vpop.f32.mrf.mxu0
  %v1234 = vadd.f32 %v657, %v1233
  %v1235 = vpop.f32.mrf.mxu0
  %1236 = vmatprep.mubr.f32.mxu0 0.0
  %1237 = vmatmul.mubr.f32.gmra.mxu0 %v955
  %v1238 = vpop.f32.mrf.mxu0
  %v1239 = vadd.f32 %v662, %v1238
  %v1240 = vpop.f32.mrf.mxu0
  %1241 = vmatprep.mubr.f32.mxu0 0.0
  %1242 = vmatmul.mubr.f32.gmra.mxu0 %v958
  %v1243 = vpop.f32.mrf.mxu0
  %v1244 = vadd.f32 %v667, %v1243
  %v1245 = vpop.f32.mrf.mxu0
  %1246 = vmatprep.mubr.f32.mxu0 0.0
  %1247 = vmatmul.mubr.f32.gmra.mxu0 %v961
  %v1248 = vpop.f32.mrf.mxu0
  %v1249 = vadd.f32 %v672, %v1248
  %v1250 = vpop.f32.mrf.mxu0
  %1251 = vmatprep.mubr.f32.mxu0 0.0
  %1252 = vmatmul.mubr.f32.gmra.mxu0 %v964
  %v1253 = vpop.f32.mrf.mxu0
  %v1254 = vadd.f32 %v677, %v1253
  %v1255 = vpop.f32.mrf.mxu0
  %1256 = vmatprep.mubr.f32.mxu0 0.0
  %1257 = vmatmul.mubr.f32.gmra.mxu0 %v967
  %v1258 = vpop.f32.mrf.mxu0
  %v1259 = vadd.f32 %v682, %v1258
  %v1260 = vpop.f32.mrf.mxu0
  %1261 = vmatprep.mubr.f32.mxu0 0.0
  %1262 = vmatmul.mubr.f32.gmra.mxu0 %v970
  %v1263 = vpop.f32.mrf.mxu0
  %v1264 = vadd.f32 %v687, %v1263
  %v1265 = vpop.f32.mrf.mxu0
  %1266 = vmatprep.mubr.f32.mxu0 0.0
  %1267 = vmatmul.mubr.f32.gmra.mxu0 %v973
  %v1268 = vpop.f32.mrf.mxu0
  %v1269 = vadd.f32 %v692, %v1268
  %v1270 = vpop.f32.mrf.mxu0
  %1271 = vmatprep.mubr.f32.mxu0 0.0
  %1272 = vmatmul.mubr.f32.gmra.mxu0 %v976
  %v1273 = vpop.f32.mrf.mxu0
  %v1274 = vadd.f32 %v697, %v1273
  %v1275 = vpop.f32.mrf.mxu0
  %1276 = vmatprep.mubr.f32.mxu0 0.0
  %1277 = vmatmul.mubr.f32.gmra.mxu0 %v979
  %v1278 = vpop.f32.mrf.mxu0
  %v1279 = vadd.f32 %v702, %v1278
  %v1280 = vpop.f32.mrf.mxu0
  %1281 = vmatprep.mubr.f32.mxu0 0.0
  %1282 = vmatmul.mubr.f32.gmra.mxu0 %v982
  %v1283 = vpop.f32.mrf.mxu0
  %v1284 = vadd.f32 %v707, %v1283
  %v1285 = vpop.f32.mrf.mxu0
  %1286 = vmatprep.mubr.f32.mxu0 0.0
  %1287 = vmatmul.mubr.f32.gmra.mxu0 %v985
  %v1288 = vpop.f32.mrf.mxu0
  %v1289 = vadd.f32 %v712, %v1288
  %v1290 = vpop.f32.mrf.mxu0
  %1291 = vmatprep.mubr.f32.mxu0 0.0
  %1292 = vmatmul.mubr.f32.gmra.mxu0 %v988
  %v1293 = vpop.f32.mrf.mxu0
  %v1294 = vadd.f32 %v717, %v1293
  %v1295 = vpop.f32.mrf.mxu0
  %1296 = vmatprep.mubr.f32.mxu0 0.0
  %1297 = vmatmul.mubr.f32.gmra.mxu0 %v991
  %v1298 = vpop.f32.mrf.mxu0
  %v1299 = vadd.f32 %v722, %v1298
  %v1300 = vpop.f32.mrf.mxu0
  %1301 = vmatprep.mubr.f32.mxu0 0.0
  %1302 = vmatmul.mubr.f32.gmra.mxu0 %v994
  %v1303 = vpop.f32.mrf.mxu0
  %v1304 = vadd.f32 %v727, %v1303
  %v1305 = vpop.f32.mrf.mxu0
  %1306 = vmatprep.mubr.f32.mxu0 0.0
  %1307 = vmatmul.mubr.f32.gmra.mxu0 %v997
  %v1308 = vpop.f32.mrf.mxu0
  %v1309 = vadd.f32 %v732, %v1308
  %v1310 = vpop.f32.mrf.mxu0
  %1311 = vmatprep.mubr.f32.mxu0 0.0
  %1312 = vmatmul.mubr.f32.gmra.mxu0 %v1000
  %v1313 = vpop.f32.mrf.mxu0
  %v1314 = vadd.f32 %v737, %v1313
  %v1315 = vpop.f32.mrf.mxu0
  %1316 = vmatprep.mubr.f32.mxu0 0.0
  %1317 = vmatmul.mubr.f32.gmra.mxu0 %v1003
  %v1318 = vpop.f32.mrf.mxu0
  %v1319 = vadd.f32 %v742, %v1318
  %v1320 = vpop.f32.mrf.mxu0
  %1321 = vmatprep.mubr.f32.mxu0 0.0
  %1322 = vmatmul.mubr.f32.gmra.mxu0 %v1006
  %v1323 = vpop.f32.mrf.mxu0
  %v1324 = vadd.f32 %v747, %v1323
  %v1325 = vpop.f32.mrf.mxu0
  %1326 = vmatprep.mubr.f32.mxu0 0.0
  %1327 = vmatmul.mubr.f32.gmra.mxu0 %v1009
  %v1328 = vpop.f32.mrf.mxu0
  %v1329 = vadd.f32 %v752, %v1328
  %v1330 = vpop.f32.mrf.mxu0
  %1331 = vmatprep.mubr.f32.mxu0 0.0
  %1332 = vmatmul.mubr.f32.gmra.mxu0 %v1012
  %v1333 = vpop.f32.mrf.mxu0
  %v1334 = vadd.f32 %v757, %v1333
  %v1335 = vpop.f32.mrf.mxu0
  %1336 = vmatprep.mubr.f32.mxu0 0.0
  %1337 = vmatmul.mubr.f32.gmra.mxu0 %v1015
  %v1338 = vpop.f32.mrf.mxu0
  %v1339 = vadd.f32 %v762, %v1338
  %v1340 = vpop.f32.mrf.mxu0
  %1341 = vmatprep.mubr.f32.mxu0 0.0
  %1342 = vmatmul.mubr.f32.gmra.mxu0 %v1018
  %v1343 = vpop.f32.mrf.mxu0
  %v1344 = vadd.f32 %v767, %v1343
  %v1345 = vpop.f32.mrf.mxu0
  %1346 = vmatprep.mubr.f32.mxu0 0.0
  %1347 = vmatmul.mubr.f32.gmra.mxu0 %v1021
  %v1348 = vpop.f32.mrf.mxu0
  %v1349 = vadd.f32 %v772, %v1348
  %v1350 = vpop.f32.mrf.mxu0
  %1351 = vmatprep.mubr.f32.mxu0 0.0
  %1352 = vmatmul.mubr.f32.gmra.mxu0 %v1024
  %v1353 = vpop.f32.mrf.mxu0
  %v1354 = vadd.f32 %v777, %v1353
  %v1355 = vpop.f32.mrf.mxu0
  %1356 = vmatprep.mubr.f32.mxu0 0.0
  %1357 = vmatmul.mubr.f32.gmra.mxu0 %v1027
  %v1358 = vpop.f32.mrf.mxu0
  %v1359 = vadd.f32 %v782, %v1358
  %v1360 = vpop.f32.mrf.mxu0
  %1361 = vmatprep.mubr.f32.mxu0 0.0
  %1362 = vmatmul.mubr.f32.gmra.mxu0 %v1030
  %v1363 = vpop.f32.mrf.mxu0
  %v1364 = vadd.f32 %v787, %v1363
  %v1365 = vpop.f32.mrf.mxu0
  %1366 = vmatprep.mubr.f32.mxu0 0.0
  %1367 = vmatmul.mubr.f32.gmra.mxu0 %v1033
  %v1368 = vpop.f32.mrf.mxu0
  %v1369 = vadd.f32 %v792, %v1368
  %v1370 = vpop.f32.mrf.mxu0
  %1371 = vmatprep.mubr.f32.mxu0 0.0
  %1372 = vmatmul.mubr.f32.gmra.mxu0 %v1036
  %v1373 = vpop.f32.mrf.mxu0
  %v1374 = vadd.f32 %v797, %v1373
  %v1375 = vpop.f32.mrf.mxu0
  %1376 = vmatprep.mubr.f32.mxu0 0.0
  %1377 = vmatmul.mubr.f32.gmra.mxu0 %v1039
  %v1378 = vpop.f32.mrf.mxu0
  %v1379 = vadd.f32 %v802, %v1378
  %v1380 = vpop.f32.mrf.mxu0
  %1381 = vmatprep.mubr.f32.mxu0 0.0
  %1382 = vmatmul.mubr.f32.gmra.mxu0 %v1042
  %v1383 = vpop.f32.mrf.mxu0
  %v1384 = vadd.f32 %v807, %v1383
  %v1385 = vpop.f32.mrf.mxu0
  %1386 = vmatprep.mubr.f32.mxu0 0.0
  %1387 = vmatmul.mubr.f32.gmra.mxu0 %v1045
  %v1388 = vpop.f32.mrf.mxu0
  %v1389 = vadd.f32 %v812, %v1388
  %v1390 = vpop.f32.mrf.mxu0
  %1391 = vmatprep.mubr.f32.mxu0 0.0
  %1392 = vmatmul.mubr.f32.gmra.mxu0 %v1048
  %v1393 = vpop.f32.mrf.mxu0
  %v1394 = vadd.f32 %v817, %v1393
  %v1395 = vpop.f32.mrf.mxu0
  %1396 = vmatprep.mubr.f32.mxu0 0.0
  %1397 = vmatmul.mubr.f32.gmra.mxu0 %v1051
  %v1398 = vpop.f32.mrf.mxu0
  %v1399 = vadd.f32 %v822, %v1398
  %v1400 = vpop.f32.mrf.mxu0
  %1401 = vmatprep.mubr.f32.mxu0 0.0
  %1402 = vmatmul.mubr.f32.gmra.mxu0 %v1054
  %v1403 = vpop.f32.mrf.mxu0
  %v1404 = vadd.f32 %v827, %v1403
  %v1405 = vpop.f32.mrf.mxu0
  %1406 = vmatprep.mubr.f32.mxu0 0.0
  %1407 = vmatmul.mubr.f32.gmra.mxu0 %v1057
  %v1408 = vpop.f32.mrf.mxu0
  %v1409 = vadd.f32 %v832, %v1408
  %v1410 = vpop.f32.mrf.mxu0
  %1411 = vmatprep.mubr.f32.mxu0 0.0
  %1412 = vmatmul.mubr.f32.gmra.mxu0 %v1060
  %v1413 = vpop.f32.mrf.mxu0
  %v1414 = vadd.f32 %v837, %v1413
  %v1415 = vpop.f32.mrf.mxu0
  %1416 = vmatprep.mubr.f32.mxu0 0.0
  %1417 = vmatmul.mubr.f32.gmra.mxu0 %v1063
  %v1418 = vpop.f32.mrf.mxu0
  %v1419 = vadd.f32 %v842, %v1418
  %v1420 = vpop.f32.mrf.mxu0
  %1421 = vmatprep.mubr.f32.mxu0 0.0
  %1422 = vmatmul.mubr.f32.gmra.mxu0 %v1066
  %v1423 = vpop.f32.mrf.mxu0
  %v1424 = vadd.f32 %v847, %v1423
  %v1425 = vpop.f32.mrf.mxu0
  %1426 = vmatprep.mubr.f32.mxu0 0.0
  %1427 = vmatmul.mubr.f32.gmra.mxu0 %v1069
  %v1428 = vpop.f32.mrf.mxu0
  %v1429 = vadd.f32 %v852, %v1428
  %v1430 = vpop.f32.mrf.mxu0
  %1431 = vmatprep.mubr.f32.mxu0 0.0
  %1432 = vmatmul.mubr.f32.gmra.mxu0 %v1072
  %v1433 = vpop.f32.mrf.mxu0
  %v1434 = vadd.f32 %v857, %v1433
  %v1435 = vpop.f32.mrf.mxu0
  %1436 = vmatprep.mubr.f32.mxu0 0.0
  %1437 = vmatmul.mubr.f32.gmra.mxu0 %v1075
  %v1438 = vpop.f32.mrf.mxu0
  %v1439 = vadd.f32 %v862, %v1438
  %v1440 = vpop.f32.mrf.mxu0
  %1441 = vmatprep.mubr.f32.mxu0 0.0
  %1442 = vmatmul.mubr.f32.gmra.mxu0 %v1078
  %v1443 = vpop.f32.mrf.mxu0
  %v1444 = vadd.f32 %v867, %v1443
  %v1445 = vpop.f32.mrf.mxu0
  %1446 = vmatprep.mubr.f32.mxu0 0.0
  %1447 = vmatmul.mubr.f32.gmra.mxu0 %v1081
  %v1448 = vpop.f32.mrf.mxu0
  %v1449 = vadd.f32 %v872, %v1448
  %v1450 = vpop.f32.mrf.mxu0
  %1451 = vmatprep.mubr.f32.mxu0 0.0
  %1452 = vmatmul.mubr.f32.gmra.mxu0 %v1084
  %v1453 = vpop.f32.mrf.mxu0
  %v1454 = vadd.f32 %v877, %v1453
  %v1455 = vpop.f32.mrf.mxu0
  %1456 = vmatprep.mubr.f32.mxu0 0.0
  %1457 = vmatmul.mubr.f32.gmra.mxu0 %v1087
  %v1458 = vpop.f32.mrf.mxu0
  %v1459 = vadd.f32 %v882, %v1458
  %v1460 = vpop.f32.mrf.mxu0
  %1461 = vmatprep.mubr.f32.mxu0 0.0
  %1462 = vmatmul.mubr.f32.gmra.mxu0 %v1090
  %v1463 = vpop.f32.mrf.mxu0
  %v1464 = vadd.f32 %v887, %v1463
  %v1465 = vpop.f32.mrf.mxu0
  %1466 = vmatprep.mubr.f32.mxu0 0.0
  %1467 = vmatmul.mubr.f32.gmra.mxu0 %v1093
  %v1468 = vpop.f32.mrf.mxu0
  %v1469 = vadd.f32 %v892, %v1468
  %v1470 = vpop.f32.mrf.mxu0
  %1471 = vmatprep.mubr.f32.mxu0 0.0
  %1472 = vmatmul.mubr.f32.gmra.mxu0 %v1096
  %v1473 = vpop.f32.mrf.mxu0
  %v1474 = vadd.f32 %v897, %v1473
  %v1475 = vpop.f32.mrf.mxu0
  %1476 = vmatprep.mubr.f32.mxu0 0.0
  %1477 = vmatmul.mubr.f32.gmra.mxu0 %v1099
  %v1478 = vpop.f32.mrf.mxu0
  %v1479 = vadd.f32 %v902, %v1478
  %v1480 = vpop.f32.mrf.mxu0
  %1481 = vmatprep.mubr.f32.mxu0 0.0
  %1482 = vmatmul.mubr.f32.gmra.mxu0 %v1102
  %v1483 = vpop.f32.mrf.mxu0
  %v1484 = vadd.f32 %v907, %v1483
  %v1485 = vpop.f32.mrf.mxu0
  %1486 = vmatprep.mubr.f32.mxu0 0.0
  %1487 = vmatmul.mubr.f32.gmra.mxu0 %v1105
  %v1488 = vpop.f32.mrf.mxu0
  %v1489 = vadd.f32 %v912, %v1488
  %v1490 = vpop.f32.mrf.mxu0
  %1491 = vdwg.mxu0
  %v1492 = vld [vmem:[#allocation2 + $0x2] sm:$0xff]
  %v1493 = vld [vmem:[#allocation2 + $0xa] sm:$0xff]
  %v1494 = vld [vmem:[#allocation2 + $0x12] sm:$0xff]
  %v1495 = vld [vmem:[#allocation2 + $0x1a] sm:$0xff]
  %v1496 = vld [vmem:[#allocation2 + $0x22] sm:$0xff]
  %v1497 = vld [vmem:[#allocation2 + $0x2a] sm:$0xff]
  %v1498 = vld [vmem:[#allocation2 + $0x32] sm:$0xff]
  %v1499 = vld [vmem:[#allocation2 + $0x3a] sm:$0xff]
  %v1500 = vld [vmem:[#allocation2 + $0x42] sm:$0xff]
  %v1501 = vld [vmem:[#allocation2 + $0x4a] sm:$0xff]
  %v1502 = vld [vmem:[#allocation2 + $0x52] sm:$0xff]
  %v1503 = vld [vmem:[#allocation2 + $0x5a] sm:$0xff]
  %v1504 = vld [vmem:[#allocation2 + $0x62] sm:$0xff]
  %v1505 = vld [vmem:[#allocation2 + $0x6a] sm:$0xff]
  %v1506 = vld [vmem:[#allocation2 + $0x72] sm:$0xff]
  %v1507 = vld [vmem:[#allocation2 + $0x7a] sm:$0xff]
  %v1508 = vld [vmem:[#allocation2 + $0x82] sm:$0xff]
  %v1509 = vld [vmem:[#allocation2 + $0x8a] sm:$0xff]
  %v1510 = vld [vmem:[#allocation2 + $0x92] sm:$0xff]
  %v1511 = vld [vmem:[#allocation2 + $0x9a] sm:$0xff]
  %v1512 = vld [vmem:[#allocation2 + $0xa2] sm:$0xff]
  %v1513 = vld [vmem:[#allocation2 + $0xaa] sm:$0xff]
  %v1514 = vld [vmem:[#allocation2 + $0xb2] sm:$0xff]
  %v1515 = vld [vmem:[#allocation2 + $0xba] sm:$0xff]
  %v1516 = vld [vmem:[#allocation2 + $0xc2] sm:$0xff]
  %v1517 = vld [vmem:[#allocation2 + $0xca] sm:$0xff]
  %v1518 = vld [vmem:[#allocation2 + $0xd2] sm:$0xff]
  %v1519 = vld [vmem:[#allocation2 + $0xda] sm:$0xff]
  %v1520 = vld [vmem:[#allocation2 + $0xe2] sm:$0xff]
  %v1521 = vld [vmem:[#allocation2 + $0xea] sm:$0xff]
  %v1522 = vld [vmem:[#allocation2 + $0xf2] sm:$0xff]
  %v1523 = vld [vmem:[#allocation2 + $0xfa] sm:$0xff]
  %v1524 = vld [vmem:[#allocation2 + $0x102] sm:$0xff]
  %v1525 = vld [vmem:[#allocation2 + $0x10a] sm:$0xff]
  %v1526 = vld [vmem:[#allocation2 + $0x112] sm:$0xff]
  %v1527 = vld [vmem:[#allocation2 + $0x11a] sm:$0xff]
  %v1528 = vld [vmem:[#allocation2 + $0x122] sm:$0xff]
  %v1529 = vld [vmem:[#allocation2 + $0x12a] sm:$0xff]
  %v1530 = vld [vmem:[#allocation2 + $0x132] sm:$0xff]
  %v1531 = vld [vmem:[#allocation2 + $0x13a] sm:$0xff]
  %v1532 = vld [vmem:[#allocation2 + $0x142] sm:$0xff]
  %v1533 = vld [vmem:[#allocation2 + $0x14a] sm:$0xff]
  %v1534 = vld [vmem:[#allocation2 + $0x152] sm:$0xff]
  %v1535 = vld [vmem:[#allocation2 + $0x15a] sm:$0xff]
  %v1536 = vld [vmem:[#allocation2 + $0x162] sm:$0xff]
  %v1537 = vld [vmem:[#allocation2 + $0x16a] sm:$0xff]
  %v1538 = vld [vmem:[#allocation2 + $0x172] sm:$0xff]
  %v1539 = vld [vmem:[#allocation2 + $0x17a] sm:$0xff]
  %v1540 = vld [vmem:[#allocation2 + $0x182] sm:$0xff]
  %v1541 = vld [vmem:[#allocation2 + $0x18a] sm:$0xff]
  %v1542 = vld [vmem:[#allocation2 + $0x192] sm:$0xff]
  %v1543 = vld [vmem:[#allocation2 + $0x19a] sm:$0xff]
  %v1544 = vld [vmem:[#allocation2 + $0x1a2] sm:$0xff]
  %v1545 = vld [vmem:[#allocation2 + $0x1aa] sm:$0xff]
  %v1546 = vld [vmem:[#allocation2 + $0x1b2] sm:$0xff]
  %v1547 = vld [vmem:[#allocation2 + $0x1ba] sm:$0xff]
  %v1548 = vld [vmem:[#allocation2 + $0x1c2] sm:$0xff]
  %v1549 = vld [vmem:[#allocation2 + $0x1ca] sm:$0xff]
  %v1550 = vld [vmem:[#allocation2 + $0x1d2] sm:$0xff]
  %v1551 = vld [vmem:[#allocation2 + $0x1da] sm:$0xff]
  %v1552 = vld [vmem:[#allocation2 + $0x1e2] sm:$0xff]
  %v1553 = vld [vmem:[#allocation2 + $0x1ea] sm:$0xff]
  %v1554 = vld [vmem:[#allocation2 + $0x1f2] sm:$0xff]
  %v1555 = vld [vmem:[#allocation2 + $0x1fa] sm:$0xff]
  %s1556 = scalar_lea.vmem %s2, 32
  %v1557 = vld [vmem:[%s1556] sm:$0xff]
  %v1558 = vld [vmem:[%s1556 + $0x8] sm:$0xff]
  %v1560 = vsel %vm108, %v1492, 0
  %v1563 = vsel %vm108, %v1493, 0
  %v1566 = vsel %vm108, %v1494, 0
  %v1569 = vsel %vm108, %v1495, 0
  %v1572 = vsel %vm108, %v1496, 0
  %v1575 = vsel %vm108, %v1497, 0
  %v1578 = vsel %vm108, %v1498, 0
  %v1581 = vsel %vm108, %v1499, 0
  %v1584 = vsel %vm108, %v1500, 0
  %v1587 = vsel %vm108, %v1501, 0
  %v1590 = vsel %vm108, %v1502, 0
  %v1593 = vsel %vm108, %v1503, 0
  %v1596 = vsel %vm108, %v1504, 0
  %v1599 = vsel %vm108, %v1505, 0
  %v1602 = vsel %vm108, %v1506, 0
  %v1605 = vsel %vm108, %v1507, 0
  %v1608 = vsel %vm108, %v1508, 0
  %v1611 = vsel %vm108, %v1509, 0
  %v1614 = vsel %vm108, %v1510, 0
  %v1617 = vsel %vm108, %v1511, 0
  %v1620 = vsel %vm108, %v1512, 0
  %v1623 = vsel %vm108, %v1513, 0
  %v1626 = vsel %vm108, %v1514, 0
  %v1629 = vsel %vm108, %v1515, 0
  %v1632 = vsel %vm108, %v1516, 0
  %v1635 = vsel %vm108, %v1517, 0
  %v1638 = vsel %vm108, %v1518, 0
  %v1641 = vsel %vm108, %v1519, 0
  %v1644 = vsel %vm108, %v1520, 0
  %v1647 = vsel %vm108, %v1521, 0
  %v1650 = vsel %vm108, %v1522, 0
  %v1653 = vsel %vm108, %v1523, 0
  %v1656 = vsel %vm108, %v1524, 0
  %v1659 = vsel %vm108, %v1525, 0
  %v1662 = vsel %vm108, %v1526, 0
  %v1665 = vsel %vm108, %v1527, 0
  %v1668 = vsel %vm108, %v1528, 0
  %v1671 = vsel %vm108, %v1529, 0
  %v1674 = vsel %vm108, %v1530, 0
  %v1677 = vsel %vm108, %v1531, 0
  %v1680 = vsel %vm108, %v1532, 0
  %v1683 = vsel %vm108, %v1533, 0
  %v1686 = vsel %vm108, %v1534, 0
  %v1689 = vsel %vm108, %v1535, 0
  %v1692 = vsel %vm108, %v1536, 0
  %v1695 = vsel %vm108, %v1537, 0
  %v1698 = vsel %vm108, %v1538, 0
  %v1701 = vsel %vm108, %v1539, 0
  %v1704 = vsel %vm108, %v1540, 0
  %v1707 = vsel %vm108, %v1541, 0
  %v1710 = vsel %vm108, %v1542, 0
  %v1713 = vsel %vm108, %v1543, 0
  %v1716 = vsel %vm108, %v1544, 0
  %v1719 = vsel %vm108, %v1545, 0
  %v1722 = vsel %vm108, %v1546, 0
  %v1725 = vsel %vm108, %v1547, 0
  %v1728 = vsel %vm108, %v1548, 0
  %v1731 = vsel %vm108, %v1549, 0
  %v1734 = vsel %vm108, %v1550, 0
  %v1737 = vsel %vm108, %v1551, 0
  %v1740 = vsel %vm108, %v1552, 0
  %v1743 = vsel %vm108, %v1553, 0
  %v1746 = vsel %vm108, %v1554, 0
  %v1749 = vsel %vm108, %v1555, 0
  %1751 = vmatprep.subr.mxu0 0.0
  %1752 = vmatpush1.msra.mxu0 0.0
  %1753 = vmatprep.subr.mxu0 0.0
  %1754 = vmatpush1.msra.mxu0 0.0
  %1755 = vmatprep.subr.mxu0 0.0
  %1756 = vmatpush1.msra.mxu0 0.0
  %1757 = vmatprep.subr.mxu0 0.0
  %1758 = vmatpush1.msra.mxu0 0.0
  %1759 = vmatprep.subr.mxu0 0.0
  %1760 = vmatpush1.msra.mxu0 0.0
  %1761 = vmatprep.subr.mxu0 0.0
  %1762 = vmatpush1.msra.mxu0 0.0
  %1763 = vmatprep.subr.mxu0 0.0
  %1764 = vmatpush1.msra.mxu0 0.0
  %1765 = vmatprep.subr.mxu0 0.0
  %1766 = vmatpush1.msra.mxu0 0.0
  %1767 = vmatprep.subr.mxu0 0.0
  %1768 = vmatpush1.msra.mxu0 0.0
  %1769 = vmatprep.subr.mxu0 0.0
  %1770 = vmatpush1.msra.mxu0 0.0
  %1771 = vmatprep.subr.mxu0 0.0
  %1772 = vmatpush1.msra.mxu0 0.0
  %1773 = vmatprep.subr.mxu0 0.0
  %1774 = vmatpush1.msra.mxu0 0.0
  %1775 = vmatprep.subr.mxu0 0.0
  %1776 = vmatpush1.msra.mxu0 0.0
  %1777 = vmatprep.subr.mxu0 0.0
  %1778 = vmatpush1.msra.mxu0 0.0
  %1779 = vmatprep.subr.mxu0 0.0
  %1780 = vmatpush1.msra.mxu0 %v1558
  %1781 = vmatprep.subr.mxu0 0.0
  %1782 = vmatpush1.msra.mxu0 %v1557
  %1783 = vmatprep.subr.mxu0 0.0
  %1784 = vmatpush2.msra.mxu0 0.0
  %1785 = vmatprep.subr.mxu0 0.0
  %1786 = vmatpush2.msra.mxu0 0.0
  %1787 = vmatprep.subr.mxu0 0.0
  %1788 = vmatpush2.msra.mxu0 0.0
  %1789 = vmatprep.subr.mxu0 0.0
  %1790 = vmatpush2.msra.mxu0 0.0
  %1791 = vmatprep.subr.mxu0 0.0
  %1792 = vmatpush2.msra.mxu0 0.0
  %1793 = vmatprep.subr.mxu0 0.0
  %1794 = vmatpush2.msra.mxu0 0.0
  %1795 = vmatprep.subr.mxu0 0.0
  %1796 = vmatpush2.msra.mxu0 0.0
  %1797 = vmatprep.subr.mxu0 0.0
  %1798 = vmatpush2.msra.mxu0 0.0
  %1799 = vmatprep.subr.mxu0 0.0
  %1800 = vmatpush2.msra.mxu0 0.0
  %1801 = vmatprep.subr.mxu0 0.0
  %1802 = vmatpush2.msra.mxu0 0.0
  %1803 = vmatprep.subr.mxu0 0.0
  %1804 = vmatpush2.msra.mxu0 0.0
  %1805 = vmatprep.subr.mxu0 0.0
  %1806 = vmatpush2.msra.mxu0 0.0
  %1807 = vmatprep.subr.mxu0 0.0
  %1808 = vmatpush2.msra.mxu0 0.0
  %1809 = vmatprep.subr.mxu0 0.0
  %1810 = vmatpush2.msra.mxu0 0.0
  %1811 = vmatprep.subr.mxu0 0.0
  %1812 = vmatpush2.msra.mxu0 0.0
  %1813 = vmatprep.subr.mxu0 0.0
  %1814 = vmatpush2.msra.mxu0 0.0
  %1815 = vmatprep.mubr.f32.mxu0 0.0
  %1816 = vmatmul.mubr.f32.gmra.mxu0 %v1560
  %v1817 = vpop.f32.mrf.mxu0
  %v1818 = vadd.f32 0.0, %v1817
  %v1819 = vpop.f32.mrf.mxu0
  %1820 = vmatprep.mubr.f32.mxu0 0.0
  %1821 = vmatmul.mubr.f32.gmra.mxu0 %v1563
  %v1822 = vpop.f32.mrf.mxu0
  %v1823 = vadd.f32 0.0, %v1822
  %v1824 = vpop.f32.mrf.mxu0
  %1825 = vmatprep.mubr.f32.mxu0 0.0
  %1826 = vmatmul.mubr.f32.gmra.mxu0 %v1566
  %v1827 = vpop.f32.mrf.mxu0
  %v1828 = vadd.f32 0.0, %v1827
  %v1829 = vpop.f32.mrf.mxu0
  %1830 = vmatprep.mubr.f32.mxu0 0.0
  %1831 = vmatmul.mubr.f32.gmra.mxu0 %v1569
  %v1832 = vpop.f32.mrf.mxu0
  %v1833 = vadd.f32 0.0, %v1832
  %v1834 = vpop.f32.mrf.mxu0
  %1835 = vmatprep.mubr.f32.mxu0 0.0
  %1836 = vmatmul.mubr.f32.gmra.mxu0 %v1572
  %v1837 = vpop.f32.mrf.mxu0
  %v1838 = vadd.f32 0.0, %v1837
  %v1839 = vpop.f32.mrf.mxu0
  %1840 = vmatprep.mubr.f32.mxu0 0.0
  %1841 = vmatmul.mubr.f32.gmra.mxu0 %v1575
  %v1842 = vpop.f32.mrf.mxu0
  %v1843 = vadd.f32 0.0, %v1842
  %v1844 = vpop.f32.mrf.mxu0
  %1845 = vmatprep.mubr.f32.mxu0 0.0
  %1846 = vmatmul.mubr.f32.gmra.mxu0 %v1578
  %v1847 = vpop.f32.mrf.mxu0
  %v1848 = vadd.f32 0.0, %v1847
  %v1849 = vpop.f32.mrf.mxu0
  %1850 = vmatprep.mubr.f32.mxu0 0.0
  %1851 = vmatmul.mubr.f32.gmra.mxu0 %v1581
  %v1852 = vpop.f32.mrf.mxu0
  %v1853 = vadd.f32 0.0, %v1852
  %v1854 = vpop.f32.mrf.mxu0
  %1855 = vmatprep.mubr.f32.mxu0 0.0
  %1856 = vmatmul.mubr.f32.gmra.mxu0 %v1584
  %v1857 = vpop.f32.mrf.mxu0
  %v1858 = vadd.f32 0.0, %v1857
  %v1859 = vpop.f32.mrf.mxu0
  %1860 = vmatprep.mubr.f32.mxu0 0.0
  %1861 = vmatmul.mubr.f32.gmra.mxu0 %v1587
  %v1862 = vpop.f32.mrf.mxu0
  %v1863 = vadd.f32 0.0, %v1862
  %v1864 = vpop.f32.mrf.mxu0
  %1865 = vmatprep.mubr.f32.mxu0 0.0
  %1866 = vmatmul.mubr.f32.gmra.mxu0 %v1590
  %v1867 = vpop.f32.mrf.mxu0
  %v1868 = vadd.f32 0.0, %v1867
  %v1869 = vpop.f32.mrf.mxu0
  %1870 = vmatprep.mubr.f32.mxu0 0.0
  %1871 = vmatmul.mubr.f32.gmra.mxu0 %v1593
  %v1872 = vpop.f32.mrf.mxu0
  %v1873 = vadd.f32 0.0, %v1872
  %v1874 = vpop.f32.mrf.mxu0
  %1875 = vmatprep.mubr.f32.mxu0 0.0
  %1876 = vmatmul.mubr.f32.gmra.mxu0 %v1596
  %v1877 = vpop.f32.mrf.mxu0
  %v1878 = vadd.f32 0.0, %v1877
  %v1879 = vpop.f32.mrf.mxu0
  %1880 = vmatprep.mubr.f32.mxu0 0.0
  %1881 = vmatmul.mubr.f32.gmra.mxu0 %v1599
  %v1882 = vpop.f32.mrf.mxu0
  %v1883 = vadd.f32 0.0, %v1882
  %v1884 = vpop.f32.mrf.mxu0
  %1885 = vmatprep.mubr.f32.mxu0 0.0
  %1886 = vmatmul.mubr.f32.gmra.mxu0 %v1602
  %v1887 = vpop.f32.mrf.mxu0
  %v1888 = vadd.f32 0.0, %v1887
  %v1889 = vpop.f32.mrf.mxu0
  %1890 = vmatprep.mubr.f32.mxu0 0.0
  %1891 = vmatmul.mubr.f32.gmra.mxu0 %v1605
  %v1892 = vpop.f32.mrf.mxu0
  %v1893 = vadd.f32 0.0, %v1892
  %v1894 = vpop.f32.mrf.mxu0
  %1895 = vmatprep.mubr.f32.mxu0 0.0
  %1896 = vmatmul.mubr.f32.gmra.mxu0 %v1608
  %v1897 = vpop.f32.mrf.mxu0
  %v1898 = vadd.f32 0.0, %v1897
  %v1899 = vpop.f32.mrf.mxu0
  %1900 = vmatprep.mubr.f32.mxu0 0.0
  %1901 = vmatmul.mubr.f32.gmra.mxu0 %v1611
  %v1902 = vpop.f32.mrf.mxu0
  %v1903 = vadd.f32 0.0, %v1902
  %v1904 = vpop.f32.mrf.mxu0
  %1905 = vmatprep.mubr.f32.mxu0 0.0
  %1906 = vmatmul.mubr.f32.gmra.mxu0 %v1614
  %v1907 = vpop.f32.mrf.mxu0
  %v1908 = vadd.f32 0.0, %v1907
  %v1909 = vpop.f32.mrf.mxu0
  %1910 = vmatprep.mubr.f32.mxu0 0.0
  %1911 = vmatmul.mubr.f32.gmra.mxu0 %v1617
  %v1912 = vpop.f32.mrf.mxu0
  %v1913 = vadd.f32 0.0, %v1912
  %v1914 = vpop.f32.mrf.mxu0
  %1915 = vmatprep.mubr.f32.mxu0 0.0
  %1916 = vmatmul.mubr.f32.gmra.mxu0 %v1620
  %v1917 = vpop.f32.mrf.mxu0
  %v1918 = vadd.f32 0.0, %v1917
  %v1919 = vpop.f32.mrf.mxu0
  %1920 = vmatprep.mubr.f32.mxu0 0.0
  %1921 = vmatmul.mubr.f32.gmra.mxu0 %v1623
  %v1922 = vpop.f32.mrf.mxu0
  %v1923 = vadd.f32 0.0, %v1922
  %v1924 = vpop.f32.mrf.mxu0
  %1925 = vmatprep.mubr.f32.mxu0 0.0
  %1926 = vmatmul.mubr.f32.gmra.mxu0 %v1626
  %v1927 = vpop.f32.mrf.mxu0
  %v1928 = vadd.f32 0.0, %v1927
  %v1929 = vpop.f32.mrf.mxu0
  %1930 = vmatprep.mubr.f32.mxu0 0.0
  %1931 = vmatmul.mubr.f32.gmra.mxu0 %v1629
  %v1932 = vpop.f32.mrf.mxu0
  %v1933 = vadd.f32 0.0, %v1932
  %v1934 = vpop.f32.mrf.mxu0
  %1935 = vmatprep.mubr.f32.mxu0 0.0
  %1936 = vmatmul.mubr.f32.gmra.mxu0 %v1632
  %v1937 = vpop.f32.mrf.mxu0
  %v1938 = vadd.f32 0.0, %v1937
  %v1939 = vpop.f32.mrf.mxu0
  %1940 = vmatprep.mubr.f32.mxu0 0.0
  %1941 = vmatmul.mubr.f32.gmra.mxu0 %v1635
  %v1942 = vpop.f32.mrf.mxu0
  %v1943 = vadd.f32 0.0, %v1942
  %v1944 = vpop.f32.mrf.mxu0
  %1945 = vmatprep.mubr.f32.mxu0 0.0
  %1946 = vmatmul.mubr.f32.gmra.mxu0 %v1638
  %v1947 = vpop.f32.mrf.mxu0
  %v1948 = vadd.f32 0.0, %v1947
  %v1949 = vpop.f32.mrf.mxu0
  %1950 = vmatprep.mubr.f32.mxu0 0.0
  %1951 = vmatmul.mubr.f32.gmra.mxu0 %v1641
  %v1952 = vpop.f32.mrf.mxu0
  %v1953 = vadd.f32 0.0, %v1952
  %v1954 = vpop.f32.mrf.mxu0
  %1955 = vmatprep.mubr.f32.mxu0 0.0
  %1956 = vmatmul.mubr.f32.gmra.mxu0 %v1644
  %v1957 = vpop.f32.mrf.mxu0
  %v1958 = vadd.f32 0.0, %v1957
  %v1959 = vpop.f32.mrf.mxu0
  %1960 = vmatprep.mubr.f32.mxu0 0.0
  %1961 = vmatmul.mubr.f32.gmra.mxu0 %v1647
  %v1962 = vpop.f32.mrf.mxu0
  %v1963 = vadd.f32 0.0, %v1962
  %v1964 = vpop.f32.mrf.mxu0
  %1965 = vmatprep.mubr.f32.mxu0 0.0
  %1966 = vmatmul.mubr.f32.gmra.mxu0 %v1650
  %v1967 = vpop.f32.mrf.mxu0
  %v1968 = vadd.f32 0.0, %v1967
  %v1969 = vpop.f32.mrf.mxu0
  %1970 = vmatprep.mubr.f32.mxu0 0.0
  %1971 = vmatmul.mubr.f32.gmra.mxu0 %v1653
  %v1972 = vpop.f32.mrf.mxu0
  %v1973 = vadd.f32 0.0, %v1972
  %v1974 = vpop.f32.mrf.mxu0
  %1975 = vmatprep.mubr.f32.mxu0 0.0
  %1976 = vmatmul.mubr.f32.gmra.mxu0 %v1656
  %v1977 = vpop.f32.mrf.mxu0
  %v1978 = vadd.f32 0.0, %v1977
  %v1979 = vpop.f32.mrf.mxu0
  %1980 = vmatprep.mubr.f32.mxu0 0.0
  %1981 = vmatmul.mubr.f32.gmra.mxu0 %v1659
  %v1982 = vpop.f32.mrf.mxu0
  %v1983 = vadd.f32 0.0, %v1982
  %v1984 = vpop.f32.mrf.mxu0
  %1985 = vmatprep.mubr.f32.mxu0 0.0
  %1986 = vmatmul.mubr.f32.gmra.mxu0 %v1662
  %v1987 = vpop.f32.mrf.mxu0
  %v1988 = vadd.f32 0.0, %v1987
  %v1989 = vpop.f32.mrf.mxu0
  %1990 = vmatprep.mubr.f32.mxu0 0.0
  %1991 = vmatmul.mubr.f32.gmra.mxu0 %v1665
  %v1992 = vpop.f32.mrf.mxu0
  %v1993 = vadd.f32 0.0, %v1992
  %v1994 = vpop.f32.mrf.mxu0
  %1995 = vmatprep.mubr.f32.mxu0 0.0
  %1996 = vmatmul.mubr.f32.gmra.mxu0 %v1668
  %v1997 = vpop.f32.mrf.mxu0
  %v1998 = vadd.f32 0.0, %v1997
  %v1999 = vpop.f32.mrf.mxu0
  %2000 = vmatprep.mubr.f32.mxu0 0.0
  %2001 = vmatmul.mubr.f32.gmra.mxu0 %v1671
  %v2002 = vpop.f32.mrf.mxu0
  %v2003 = vadd.f32 0.0, %v2002
  %v2004 = vpop.f32.mrf.mxu0
  %2005 = vmatprep.mubr.f32.mxu0 0.0
  %2006 = vmatmul.mubr.f32.gmra.mxu0 %v1674
  %v2007 = vpop.f32.mrf.mxu0
  %v2008 = vadd.f32 0.0, %v2007
  %v2009 = vpop.f32.mrf.mxu0
  %2010 = vmatprep.mubr.f32.mxu0 0.0
  %2011 = vmatmul.mubr.f32.gmra.mxu0 %v1677
  %v2012 = vpop.f32.mrf.mxu0
  %v2013 = vadd.f32 0.0, %v2012
  %v2014 = vpop.f32.mrf.mxu0
  %2015 = vmatprep.mubr.f32.mxu0 0.0
  %2016 = vmatmul.mubr.f32.gmra.mxu0 %v1680
  %v2017 = vpop.f32.mrf.mxu0
  %v2018 = vadd.f32 0.0, %v2017
  %v2019 = vpop.f32.mrf.mxu0
  %2020 = vmatprep.mubr.f32.mxu0 0.0
  %2021 = vmatmul.mubr.f32.gmra.mxu0 %v1683
  %v2022 = vpop.f32.mrf.mxu0
  %v2023 = vadd.f32 0.0, %v2022
  %v2024 = vpop.f32.mrf.mxu0
  %2025 = vmatprep.mubr.f32.mxu0 0.0
  %2026 = vmatmul.mubr.f32.gmra.mxu0 %v1686
  %v2027 = vpop.f32.mrf.mxu0
  %v2028 = vadd.f32 0.0, %v2027
  %v2029 = vpop.f32.mrf.mxu0
  %2030 = vmatprep.mubr.f32.mxu0 0.0
  %2031 = vmatmul.mubr.f32.gmra.mxu0 %v1689
  %v2032 = vpop.f32.mrf.mxu0
  %v2033 = vadd.f32 0.0, %v2032
  %v2034 = vpop.f32.mrf.mxu0
  %2035 = vmatprep.mubr.f32.mxu0 0.0
  %2036 = vmatmul.mubr.f32.gmra.mxu0 %v1692
  %v2037 = vpop.f32.mrf.mxu0
  %v2038 = vadd.f32 0.0, %v2037
  %v2039 = vpop.f32.mrf.mxu0
  %2040 = vmatprep.mubr.f32.mxu0 0.0
  %2041 = vmatmul.mubr.f32.gmra.mxu0 %v1695
  %v2042 = vpop.f32.mrf.mxu0
  %v2043 = vadd.f32 0.0, %v2042
  %v2044 = vpop.f32.mrf.mxu0
  %2045 = vmatprep.mubr.f32.mxu0 0.0
  %2046 = vmatmul.mubr.f32.gmra.mxu0 %v1698
  %v2047 = vpop.f32.mrf.mxu0
  %v2048 = vadd.f32 0.0, %v2047
  %v2049 = vpop.f32.mrf.mxu0
  %2050 = vmatprep.mubr.f32.mxu0 0.0
  %2051 = vmatmul.mubr.f32.gmra.mxu0 %v1701
  %v2052 = vpop.f32.mrf.mxu0
  %v2053 = vadd.f32 0.0, %v2052
  %v2054 = vpop.f32.mrf.mxu0
  %2055 = vmatprep.mubr.f32.mxu0 0.0
  %2056 = vmatmul.mubr.f32.gmra.mxu0 %v1704
  %v2057 = vpop.f32.mrf.mxu0
  %v2058 = vadd.f32 0.0, %v2057
  %v2059 = vpop.f32.mrf.mxu0
  %2060 = vmatprep.mubr.f32.mxu0 0.0
  %2061 = vmatmul.mubr.f32.gmra.mxu0 %v1707
  %v2062 = vpop.f32.mrf.mxu0
  %v2063 = vadd.f32 0.0, %v2062
  %v2064 = vpop.f32.mrf.mxu0
  %2065 = vmatprep.mubr.f32.mxu0 0.0
  %2066 = vmatmul.mubr.f32.gmra.mxu0 %v1710
  %v2067 = vpop.f32.mrf.mxu0
  %v2068 = vadd.f32 0.0, %v2067
  %v2069 = vpop.f32.mrf.mxu0
  %2070 = vmatprep.mubr.f32.mxu0 0.0
  %2071 = vmatmul.mubr.f32.gmra.mxu0 %v1713
  %v2072 = vpop.f32.mrf.mxu0
  %v2073 = vadd.f32 0.0, %v2072
  %v2074 = vpop.f32.mrf.mxu0
  %2075 = vmatprep.mubr.f32.mxu0 0.0
  %2076 = vmatmul.mubr.f32.gmra.mxu0 %v1716
  %v2077 = vpop.f32.mrf.mxu0
  %v2078 = vadd.f32 0.0, %v2077
  %v2079 = vpop.f32.mrf.mxu0
  %2080 = vmatprep.mubr.f32.mxu0 0.0
  %2081 = vmatmul.mubr.f32.gmra.mxu0 %v1719
  %v2082 = vpop.f32.mrf.mxu0
  %v2083 = vadd.f32 0.0, %v2082
  %v2084 = vpop.f32.mrf.mxu0
  %2085 = vmatprep.mubr.f32.mxu0 0.0
  %2086 = vmatmul.mubr.f32.gmra.mxu0 %v1722
  %v2087 = vpop.f32.mrf.mxu0
  %v2088 = vadd.f32 0.0, %v2087
  %v2089 = vpop.f32.mrf.mxu0
  %2090 = vmatprep.mubr.f32.mxu0 0.0
  %2091 = vmatmul.mubr.f32.gmra.mxu0 %v1725
  %v2092 = vpop.f32.mrf.mxu0
  %v2093 = vadd.f32 0.0, %v2092
  %v2094 = vpop.f32.mrf.mxu0
  %2095 = vmatprep.mubr.f32.mxu0 0.0
  %2096 = vmatmul.mubr.f32.gmra.mxu0 %v1728
  %v2097 = vpop.f32.mrf.mxu0
  %v2098 = vadd.f32 0.0, %v2097
  %v2099 = vpop.f32.mrf.mxu0
  %2100 = vmatprep.mubr.f32.mxu0 0.0
  %2101 = vmatmul.mubr.f32.gmra.mxu0 %v1731
  %v2102 = vpop.f32.mrf.mxu0
  %v2103 = vadd.f32 0.0, %v2102
  %v2104 = vpop.f32.mrf.mxu0
  %2105 = vmatprep.mubr.f32.mxu0 0.0
  %2106 = vmatmul.mubr.f32.gmra.mxu0 %v1734
  %v2107 = vpop.f32.mrf.mxu0
  %v2108 = vadd.f32 0.0, %v2107
  %v2109 = vpop.f32.mrf.mxu0
  %2110 = vmatprep.mubr.f32.mxu0 0.0
  %2111 = vmatmul.mubr.f32.gmra.mxu0 %v1737
  %v2112 = vpop.f32.mrf.mxu0
  %v2113 = vadd.f32 0.0, %v2112
  %v2114 = vpop.f32.mrf.mxu0
  %2115 = vmatprep.mubr.f32.mxu0 0.0
  %2116 = vmatmul.mubr.f32.gmra.mxu0 %v1740
  %v2117 = vpop.f32.mrf.mxu0
  %v2118 = vadd.f32 0.0, %v2117
  %v2119 = vpop.f32.mrf.mxu0
  %2120 = vmatprep.mubr.f32.mxu0 0.0
  %2121 = vmatmul.mubr.f32.gmra.mxu0 %v1743
  %v2122 = vpop.f32.mrf.mxu0
  %v2123 = vadd.f32 0.0, %v2122
  %v2124 = vpop.f32.mrf.mxu0
  %2125 = vmatprep.mubr.f32.mxu0 0.0
  %2126 = vmatmul.mubr.f32.gmra.mxu0 %v1746
  %v2127 = vpop.f32.mrf.mxu0
  %v2128 = vadd.f32 0.0, %v2127
  %v2129 = vpop.f32.mrf.mxu0
  %2130 = vmatprep.mubr.f32.mxu0 0.0
  %2131 = vmatmul.mubr.f32.gmra.mxu0 %v1749
  %v2132 = vpop.f32.mrf.mxu0
  %v2133 = vadd.f32 0.0, %v2132
  %v2134 = vpop.f32.mrf.mxu0
  %2135 = vdwg.mxu0
  %v2136 = vadd.f32 %v1174, %v1818
  %v2137 = vadd.f32 %v1179, %v1823
  %v2138 = vadd.f32 %v1184, %v1828
  %v2139 = vadd.f32 %v1189, %v1833
  %v2140 = vadd.f32 %v1194, %v1838
  %v2141 = vadd.f32 %v1199, %v1843
  %v2142 = vadd.f32 %v1204, %v1848
  %v2143 = vadd.f32 %v1209, %v1853
  %v2144 = vadd.f32 %v1214, %v1858
  %v2145 = vadd.f32 %v1219, %v1863
  %v2146 = vadd.f32 %v1224, %v1868
  %v2147 = vadd.f32 %v1229, %v1873
  %v2148 = vadd.f32 %v1234, %v1878
  %v2149 = vadd.f32 %v1239, %v1883
  %v2150 = vadd.f32 %v1244, %v1888
  %v2151 = vadd.f32 %v1249, %v1893
  %v2152 = vadd.f32 %v1254, %v1898
  %v2153 = vadd.f32 %v1259, %v1903
  %v2154 = vadd.f32 %v1264, %v1908
  %v2155 = vadd.f32 %v1269, %v1913
  %v2156 = vadd.f32 %v1274, %v1918
  %v2157 = vadd.f32 %v1279, %v1923
  %v2158 = vadd.f32 %v1284, %v1928
  %v2159 = vadd.f32 %v1289, %v1933
  %v2160 = vadd.f32 %v1294, %v1938
  %v2161 = vadd.f32 %v1299, %v1943
  %v2162 = vadd.f32 %v1304, %v1948
  %v2163 = vadd.f32 %v1309, %v1953
  %v2164 = vadd.f32 %v1314, %v1958
  %v2165 = vadd.f32 %v1319, %v1963
  %v2166 = vadd.f32 %v1324, %v1968
  %v2167 = vadd.f32 %v1329, %v1973
  %v2168 = vadd.f32 %v1334, %v1978
  %v2169 = vadd.f32 %v1339, %v1983
  %v2170 = vadd.f32 %v1344, %v1988
  %v2171 = vadd.f32 %v1349, %v1993
  %v2172 = vadd.f32 %v1354, %v1998
  %v2173 = vadd.f32 %v1359, %v2003
  %v2174 = vadd.f32 %v1364, %v2008
  %v2175 = vadd.f32 %v1369, %v2013
  %v2176 = vadd.f32 %v1374, %v2018
  %v2177 = vadd.f32 %v1379, %v2023
  %v2178 = vadd.f32 %v1384, %v2028
  %v2179 = vadd.f32 %v1389, %v2033
  %v2180 = vadd.f32 %v1394, %v2038
  %v2181 = vadd.f32 %v1399, %v2043
  %v2182 = vadd.f32 %v1404, %v2048
  %v2183 = vadd.f32 %v1409, %v2053
  %v2184 = vadd.f32 %v1414, %v2058
  %v2185 = vadd.f32 %v1419, %v2063
  %v2186 = vadd.f32 %v1424, %v2068
  %v2187 = vadd.f32 %v1429, %v2073
  %v2188 = vadd.f32 %v1434, %v2078
  %v2189 = vadd.f32 %v1439, %v2083
  %v2190 = vadd.f32 %v1444, %v2088
  %v2191 = vadd.f32 %v1449, %v2093
  %v2192 = vadd.f32 %v1454, %v2098
  %v2193 = vadd.f32 %v1459, %v2103
  %v2194 = vadd.f32 %v1464, %v2108
  %v2195 = vadd.f32 %v1469, %v2113
  %v2196 = vadd.f32 %v1474, %v2118
  %v2197 = vadd.f32 %v1479, %v2123
  %v2198 = vadd.f32 %v1484, %v2128
  %v2199 = vadd.f32 %v1489, %v2133
  %v2200 = vld [vmem:[#allocation2 + $0xd] sm:$0xff]
  %v2201 = vld [vmem:[#allocation2 + $0x15] sm:$0xff]
  %v2202 = vld [vmem:[#allocation2 + $0x1d] sm:$0xff]
  %v2203 = vld [vmem:[#allocation2 + $0x25] sm:$0xff]
  %v2204 = vld [vmem:[#allocation2 + $0x2d] sm:$0xff]
  %v2205 = vld [vmem:[#allocation2 + $0x35] sm:$0xff]
  %v2206 = vld [vmem:[#allocation2 + $0x3d] sm:$0xff]
  %v2207 = vld [vmem:[#allocation2 + $0x45] sm:$0xff]
  %v2208 = vld [vmem:[#allocation2 + $0x4d] sm:$0xff]
  %v2209 = vld [vmem:[#allocation2 + $0x55] sm:$0xff]
  %v2210 = vld [vmem:[#allocation2 + $0x5d] sm:$0xff]
  %v2211 = vld [vmem:[#allocation2 + $0x65] sm:$0xff]
  %v2212 = vld [vmem:[#allocation2 + $0x6d] sm:$0xff]
  %v2213 = vld [vmem:[#allocation2 + $0x75] sm:$0xff]
  %v2214 = vld [vmem:[#allocation2 + $0x7d] sm:$0xff]
  %v2215 = vld [vmem:[#allocation2 + $0x85] sm:$0xff]
  %v2216 = vld [vmem:[#allocation2 + $0x8d] sm:$0xff]
  %v2217 = vld [vmem:[#allocation2 + $0x95] sm:$0xff]
  %v2218 = vld [vmem:[#allocation2 + $0x9d] sm:$0xff]
  %v2219 = vld [vmem:[#allocation2 + $0xa5] sm:$0xff]
  %v2220 = vld [vmem:[#allocation2 + $0xad] sm:$0xff]
  %v2221 = vld [vmem:[#allocation2 + $0xb5] sm:$0xff]
  %v2222 = vld [vmem:[#allocation2 + $0xbd] sm:$0xff]
  %v2223 = vld [vmem:[#allocation2 + $0xc5] sm:$0xff]
  %v2224 = vld [vmem:[#allocation2 + $0xcd] sm:$0xff]
  %v2225 = vld [vmem:[#allocation2 + $0xd5] sm:$0xff]
  %v2226 = vld [vmem:[#allocation2 + $0xdd] sm:$0xff]
  %v2227 = vld [vmem:[#allocation2 + $0xe5] sm:$0xff]
  %v2228 = vld [vmem:[#allocation2 + $0xed] sm:$0xff]
  %v2229 = vld [vmem:[#allocation2 + $0xf5] sm:$0xff]
  %v2230 = vld [vmem:[#allocation2 + $0xfd] sm:$0xff]
  %v2231 = vld [vmem:[#allocation2 + $0x105] sm:$0xff]
  %v2232 = vld [vmem:[#allocation2 + $0x10d] sm:$0xff]
  %v2233 = vld [vmem:[#allocation2 + $0x115] sm:$0xff]
  %v2234 = vld [vmem:[#allocation2 + $0x11d] sm:$0xff]
  %v2235 = vld [vmem:[#allocation2 + $0x125] sm:$0xff]
  %v2236 = vld [vmem:[#allocation2 + $0x12d] sm:$0xff]
  %v2237 = vld [vmem:[#allocation2 + $0x135] sm:$0xff]
  %v2238 = vld [vmem:[#allocation2 + $0x13d] sm:$0xff]
  %v2239 = vld [vmem:[#allocation2 + $0x145] sm:$0xff]
  %v2240 = vld [vmem:[#allocation2 + $0x14d] sm:$0xff]
  %v2241 = vld [vmem:[#allocation2 + $0x155] sm:$0xff]
  %v2242 = vld [vmem:[#allocation2 + $0x15d] sm:$0xff]
  %v2243 = vld [vmem:[#allocation2 + $0x165] sm:$0xff]
  %v2244 = vld [vmem:[#allocation2 + $0x16d] sm:$0xff]
  %v2245 = vld [vmem:[#allocation2 + $0x175] sm:$0xff]
  %v2246 = vld [vmem:[#allocation2 + $0x17d] sm:$0xff]
  %v2247 = vld [vmem:[#allocation2 + $0x185] sm:$0xff]
  %v2248 = vld [vmem:[#allocation2 + $0x18d] sm:$0xff]
  %v2249 = vld [vmem:[#allocation2 + $0x195] sm:$0xff]
  %v2250 = vld [vmem:[#allocation2 + $0x19d] sm:$0xff]
  %v2251 = vld [vmem:[#allocation2 + $0x1a5] sm:$0xff]
  %v2252 = vld [vmem:[#allocation2 + $0x1ad] sm:$0xff]
  %v2253 = vld [vmem:[#allocation2 + $0x1b5] sm:$0xff]
  %v2254 = vld [vmem:[#allocation2 + $0x1bd] sm:$0xff]
  %v2255 = vld [vmem:[#allocation2 + $0x1c5] sm:$0xff]
  %v2256 = vld [vmem:[#allocation2 + $0x1cd] sm:$0xff]
  %v2257 = vld [vmem:[#allocation2 + $0x1d5] sm:$0xff]
  %v2258 = vld [vmem:[#allocation2 + $0x1dd] sm:$0xff]
  %v2259 = vld [vmem:[#allocation2 + $0x1e5] sm:$0xff]
  %v2260 = vld [vmem:[#allocation2 + $0x1ed] sm:$0xff]
  %v2261 = vld [vmem:[#allocation2 + $0x1f5] sm:$0xff]
  %v2262 = vld [vmem:[#allocation2 + $0x1fd] sm:$0xff]
  %v2263 = vld [vmem:[#allocation2 + $0x205] sm:$0xff]
  %s2264 = scalar_lea.vmem %s2, 48
  %v2265 = vld [vmem:[%s2264] sm:$0xff]
  %v2266 = vld [vmem:[%s2264 + $0x8] sm:$0xff]
  %v2268 = vsel %vm108, %v2200, 0
  %v2271 = vsel %vm108, %v2201, 0
  %v2274 = vsel %vm108, %v2202, 0
  %v2277 = vsel %vm108, %v2203, 0
  %v2280 = vsel %vm108, %v2204, 0
  %v2283 = vsel %vm108, %v2205, 0
  %v2286 = vsel %vm108, %v2206, 0
  %v2289 = vsel %vm108, %v2207, 0
  %v2292 = vsel %vm108, %v2208, 0
  %v2295 = vsel %vm108, %v2209, 0
  %v2298 = vsel %vm108, %v2210, 0
  %v2301 = vsel %vm108, %v2211, 0
  %v2304 = vsel %vm108, %v2212, 0
  %v2307 = vsel %vm108, %v2213, 0
  %v2310 = vsel %vm108, %v2214, 0
  %v2313 = vsel %vm108, %v2215, 0
  %v2316 = vsel %vm108, %v2216, 0
  %v2319 = vsel %vm108, %v2217, 0
  %v2322 = vsel %vm108, %v2218, 0
  %v2325 = vsel %vm108, %v2219, 0
  %v2328 = vsel %vm108, %v2220, 0
  %v2331 = vsel %vm108, %v2221, 0
  %v2334 = vsel %vm108, %v2222, 0
  %v2337 = vsel %vm108, %v2223, 0
  %v2340 = vsel %vm108, %v2224, 0
  %v2343 = vsel %vm108, %v2225, 0
  %v2346 = vsel %vm108, %v2226, 0
  %v2349 = vsel %vm108, %v2227, 0
  %v2352 = vsel %vm108, %v2228, 0
  %v2355 = vsel %vm108, %v2229, 0
  %v2358 = vsel %vm108, %v2230, 0
  %v2361 = vsel %vm108, %v2231, 0
  %v2364 = vsel %vm108, %v2232, 0
  %v2367 = vsel %vm108, %v2233, 0
  %v2370 = vsel %vm108, %v2234, 0
  %v2373 = vsel %vm108, %v2235, 0
  %v2376 = vsel %vm108, %v2236, 0
  %v2379 = vsel %vm108, %v2237, 0
  %v2382 = vsel %vm108, %v2238, 0
  %v2385 = vsel %vm108, %v2239, 0
  %v2388 = vsel %vm108, %v2240, 0
  %v2391 = vsel %vm108, %v2241, 0
  %v2394 = vsel %vm108, %v2242, 0
  %v2397 = vsel %vm108, %v2243, 0
  %v2400 = vsel %vm108, %v2244, 0
  %v2403 = vsel %vm108, %v2245, 0
  %v2406 = vsel %vm108, %v2246, 0
  %v2409 = vsel %vm108, %v2247, 0
  %v2412 = vsel %vm108, %v2248, 0
  %v2415 = vsel %vm108, %v2249, 0
  %v2418 = vsel %vm108, %v2250, 0
  %v2421 = vsel %vm108, %v2251, 0
  %v2424 = vsel %vm108, %v2252, 0
  %v2427 = vsel %vm108, %v2253, 0
  %v2430 = vsel %vm108, %v2254, 0
  %v2433 = vsel %vm108, %v2255, 0
  %v2436 = vsel %vm108, %v2256, 0
  %v2439 = vsel %vm108, %v2257, 0
  %v2442 = vsel %vm108, %v2258, 0
  %v2445 = vsel %vm108, %v2259, 0
  %v2448 = vsel %vm108, %v2260, 0
  %v2451 = vsel %vm108, %v2261, 0
  %v2454 = vsel %vm108, %v2262, 0
  %v2457 = vsel %vm108, %v2263, 0
  %2459 = vmatprep.subr.mxu0 0.0
  %2460 = vmatpush1.msra.mxu0 0.0
  %2461 = vmatprep.subr.mxu0 0.0
  %2462 = vmatpush1.msra.mxu0 0.0
  %2463 = vmatprep.subr.mxu0 0.0
  %2464 = vmatpush1.msra.mxu0 0.0
  %2465 = vmatprep.subr.mxu0 0.0
  %2466 = vmatpush1.msra.mxu0 0.0
  %2467 = vmatprep.subr.mxu0 0.0
  %2468 = vmatpush1.msra.mxu0 0.0
  %2469 = vmatprep.subr.mxu0 0.0
  %2470 = vmatpush1.msra.mxu0 0.0
  %2471 = vmatprep.subr.mxu0 0.0
  %2472 = vmatpush1.msra.mxu0 0.0
  %2473 = vmatprep.subr.mxu0 0.0
  %2474 = vmatpush1.msra.mxu0 0.0
  %2475 = vmatprep.subr.mxu0 0.0
  %2476 = vmatpush1.msra.mxu0 0.0
  %2477 = vmatprep.subr.mxu0 0.0
  %2478 = vmatpush1.msra.mxu0 0.0
  %2479 = vmatprep.subr.mxu0 0.0
  %2480 = vmatpush1.msra.mxu0 0.0
  %2481 = vmatprep.subr.mxu0 0.0
  %2482 = vmatpush1.msra.mxu0 0.0
  %2483 = vmatprep.subr.mxu0 0.0
  %2484 = vmatpush1.msra.mxu0 0.0
  %2485 = vmatprep.subr.mxu0 0.0
  %2486 = vmatpush1.msra.mxu0 0.0
  %2487 = vmatprep.subr.mxu0 0.0
  %2488 = vmatpush1.msra.mxu0 %v2266
  %2489 = vmatprep.subr.mxu0 0.0
  %2490 = vmatpush1.msra.mxu0 %v2265
  %2491 = vmatprep.subr.mxu0 0.0
  %2492 = vmatpush2.msra.mxu0 0.0
  %2493 = vmatprep.subr.mxu0 0.0
  %2494 = vmatpush2.msra.mxu0 0.0
  %2495 = vmatprep.subr.mxu0 0.0
  %2496 = vmatpush2.msra.mxu0 0.0
  %2497 = vmatprep.subr.mxu0 0.0
  %2498 = vmatpush2.msra.mxu0 0.0
  %2499 = vmatprep.subr.mxu0 0.0
  %2500 = vmatpush2.msra.mxu0 0.0
  %2501 = vmatprep.subr.mxu0 0.0
  %2502 = vmatpush2.msra.mxu0 0.0
  %2503 = vmatprep.subr.mxu0 0.0
  %2504 = vmatpush2.msra.mxu0 0.0
  %2505 = vmatprep.subr.mxu0 0.0
  %2506 = vmatpush2.msra.mxu0 0.0
  %2507 = vmatprep.subr.mxu0 0.0
  %2508 = vmatpush2.msra.mxu0 0.0
  %2509 = vmatprep.subr.mxu0 0.0
  %2510 = vmatpush2.msra.mxu0 0.0
  %2511 = vmatprep.subr.mxu0 0.0
  %2512 = vmatpush2.msra.mxu0 0.0
  %2513 = vmatprep.subr.mxu0 0.0
  %2514 = vmatpush2.msra.mxu0 0.0
  %2515 = vmatprep.subr.mxu0 0.0
  %2516 = vmatpush2.msra.mxu0 0.0
  %2517 = vmatprep.subr.mxu0 0.0
  %2518 = vmatpush2.msra.mxu0 0.0
  %2519 = vmatprep.subr.mxu0 0.0
  %2520 = vmatpush2.msra.mxu0 0.0
  %2521 = vmatprep.subr.mxu0 0.0
  %2522 = vmatpush2.msra.mxu0 0.0
  %2523 = vmatprep.mubr.f32.mxu0 0.0
  %2524 = vmatmul.mubr.f32.gmra.mxu0 %v2268
  %v2525 = vpop.f32.mrf.mxu0
  %v2526 = vadd.f32 0.0, %v2525
  %v2527 = vpop.f32.mrf.mxu0
  %2528 = vmatprep.mubr.f32.mxu0 0.0
  %2529 = vmatmul.mubr.f32.gmra.mxu0 %v2271
  %v2530 = vpop.f32.mrf.mxu0
  %v2531 = vadd.f32 0.0, %v2530
  %v2532 = vpop.f32.mrf.mxu0
  %2533 = vmatprep.mubr.f32.mxu0 0.0
  %2534 = vmatmul.mubr.f32.gmra.mxu0 %v2274
  %v2535 = vpop.f32.mrf.mxu0
  %v2536 = vadd.f32 0.0, %v2535
  %v2537 = vpop.f32.mrf.mxu0
  %2538 = vmatprep.mubr.f32.mxu0 0.0
  %2539 = vmatmul.mubr.f32.gmra.mxu0 %v2277
  %v2540 = vpop.f32.mrf.mxu0
  %v2541 = vadd.f32 0.0, %v2540
  %v2542 = vpop.f32.mrf.mxu0
  %2543 = vmatprep.mubr.f32.mxu0 0.0
  %2544 = vmatmul.mubr.f32.gmra.mxu0 %v2280
  %v2545 = vpop.f32.mrf.mxu0
  %v2546 = vadd.f32 0.0, %v2545
  %v2547 = vpop.f32.mrf.mxu0
  %2548 = vmatprep.mubr.f32.mxu0 0.0
  %2549 = vmatmul.mubr.f32.gmra.mxu0 %v2283
  %v2550 = vpop.f32.mrf.mxu0
  %v2551 = vadd.f32 0.0, %v2550
  %v2552 = vpop.f32.mrf.mxu0
  %2553 = vmatprep.mubr.f32.mxu0 0.0
  %2554 = vmatmul.mubr.f32.gmra.mxu0 %v2286
  %v2555 = vpop.f32.mrf.mxu0
  %v2556 = vadd.f32 0.0, %v2555
  %v2557 = vpop.f32.mrf.mxu0
  %2558 = vmatprep.mubr.f32.mxu0 0.0
  %2559 = vmatmul.mubr.f32.gmra.mxu0 %v2289
  %v2560 = vpop.f32.mrf.mxu0
  %v2561 = vadd.f32 0.0, %v2560
  %v2562 = vpop.f32.mrf.mxu0
  %2563 = vmatprep.mubr.f32.mxu0 0.0
  %2564 = vmatmul.mubr.f32.gmra.mxu0 %v2292
  %v2565 = vpop.f32.mrf.mxu0
  %v2566 = vadd.f32 0.0, %v2565
  %v2567 = vpop.f32.mrf.mxu0
  %2568 = vmatprep.mubr.f32.mxu0 0.0
  %2569 = vmatmul.mubr.f32.gmra.mxu0 %v2295
  %v2570 = vpop.f32.mrf.mxu0
  %v2571 = vadd.f32 0.0, %v2570
  %v2572 = vpop.f32.mrf.mxu0
  %2573 = vmatprep.mubr.f32.mxu0 0.0
  %2574 = vmatmul.mubr.f32.gmra.mxu0 %v2298
  %v2575 = vpop.f32.mrf.mxu0
  %v2576 = vadd.f32 0.0, %v2575
  %v2577 = vpop.f32.mrf.mxu0
  %2578 = vmatprep.mubr.f32.mxu0 0.0
  %2579 = vmatmul.mubr.f32.gmra.mxu0 %v2301
  %v2580 = vpop.f32.mrf.mxu0
  %v2581 = vadd.f32 0.0, %v2580
  %v2582 = vpop.f32.mrf.mxu0
  %2583 = vmatprep.mubr.f32.mxu0 0.0
  %2584 = vmatmul.mubr.f32.gmra.mxu0 %v2304
  %v2585 = vpop.f32.mrf.mxu0
  %v2586 = vadd.f32 0.0, %v2585
  %v2587 = vpop.f32.mrf.mxu0
  %2588 = vmatprep.mubr.f32.mxu0 0.0
  %2589 = vmatmul.mubr.f32.gmra.mxu0 %v2307
  %v2590 = vpop.f32.mrf.mxu0
  %v2591 = vadd.f32 0.0, %v2590
  %v2592 = vpop.f32.mrf.mxu0
  %2593 = vmatprep.mubr.f32.mxu0 0.0
  %2594 = vmatmul.mubr.f32.gmra.mxu0 %v2310
  %v2595 = vpop.f32.mrf.mxu0
  %v2596 = vadd.f32 0.0, %v2595
  %v2597 = vpop.f32.mrf.mxu0
  %2598 = vmatprep.mubr.f32.mxu0 0.0
  %2599 = vmatmul.mubr.f32.gmra.mxu0 %v2313
  %v2600 = vpop.f32.mrf.mxu0
  %v2601 = vadd.f32 0.0, %v2600
  %v2602 = vpop.f32.mrf.mxu0
  %2603 = vmatprep.mubr.f32.mxu0 0.0
  %2604 = vmatmul.mubr.f32.gmra.mxu0 %v2316
  %v2605 = vpop.f32.mrf.mxu0
  %v2606 = vadd.f32 0.0, %v2605
  %v2607 = vpop.f32.mrf.mxu0
  %2608 = vmatprep.mubr.f32.mxu0 0.0
  %2609 = vmatmul.mubr.f32.gmra.mxu0 %v2319
  %v2610 = vpop.f32.mrf.mxu0
  %v2611 = vadd.f32 0.0, %v2610
  %v2612 = vpop.f32.mrf.mxu0
  %2613 = vmatprep.mubr.f32.mxu0 0.0
  %2614 = vmatmul.mubr.f32.gmra.mxu0 %v2322
  %v2615 = vpop.f32.mrf.mxu0
  %v2616 = vadd.f32 0.0, %v2615
  %v2617 = vpop.f32.mrf.mxu0
  %2618 = vmatprep.mubr.f32.mxu0 0.0
  %2619 = vmatmul.mubr.f32.gmra.mxu0 %v2325
  %v2620 = vpop.f32.mrf.mxu0
  %v2621 = vadd.f32 0.0, %v2620
  %v2622 = vpop.f32.mrf.mxu0
  %2623 = vmatprep.mubr.f32.mxu0 0.0
  %2624 = vmatmul.mubr.f32.gmra.mxu0 %v2328
  %v2625 = vpop.f32.mrf.mxu0
  %v2626 = vadd.f32 0.0, %v2625
  %v2627 = vpop.f32.mrf.mxu0
  %2628 = vmatprep.mubr.f32.mxu0 0.0
  %2629 = vmatmul.mubr.f32.gmra.mxu0 %v2331
  %v2630 = vpop.f32.mrf.mxu0
  %v2631 = vadd.f32 0.0, %v2630
  %v2632 = vpop.f32.mrf.mxu0
  %2633 = vmatprep.mubr.f32.mxu0 0.0
  %2634 = vmatmul.mubr.f32.gmra.mxu0 %v2334
  %v2635 = vpop.f32.mrf.mxu0
  %v2636 = vadd.f32 0.0, %v2635
  %v2637 = vpop.f32.mrf.mxu0
  %2638 = vmatprep.mubr.f32.mxu0 0.0
  %2639 = vmatmul.mubr.f32.gmra.mxu0 %v2337
  %v2640 = vpop.f32.mrf.mxu0
  %v2641 = vadd.f32 0.0, %v2640
  %v2642 = vpop.f32.mrf.mxu0
  %2643 = vmatprep.mubr.f32.mxu0 0.0
  %2644 = vmatmul.mubr.f32.gmra.mxu0 %v2340
  %v2645 = vpop.f32.mrf.mxu0
  %v2646 = vadd.f32 0.0, %v2645
  %v2647 = vpop.f32.mrf.mxu0
  %2648 = vmatprep.mubr.f32.mxu0 0.0
  %2649 = vmatmul.mubr.f32.gmra.mxu0 %v2343
  %v2650 = vpop.f32.mrf.mxu0
  %v2651 = vadd.f32 0.0, %v2650
  %v2652 = vpop.f32.mrf.mxu0
  %2653 = vmatprep.mubr.f32.mxu0 0.0
  %2654 = vmatmul.mubr.f32.gmra.mxu0 %v2346
  %v2655 = vpop.f32.mrf.mxu0
  %v2656 = vadd.f32 0.0, %v2655
  %v2657 = vpop.f32.mrf.mxu0
  %2658 = vmatprep.mubr.f32.mxu0 0.0
  %2659 = vmatmul.mubr.f32.gmra.mxu0 %v2349
  %v2660 = vpop.f32.mrf.mxu0
  %v2661 = vadd.f32 0.0, %v2660
  %v2662 = vpop.f32.mrf.mxu0
  %2663 = vmatprep.mubr.f32.mxu0 0.0
  %2664 = vmatmul.mubr.f32.gmra.mxu0 %v2352
  %v2665 = vpop.f32.mrf.mxu0
  %v2666 = vadd.f32 0.0, %v2665
  %v2667 = vpop.f32.mrf.mxu0
  %2668 = vmatprep.mubr.f32.mxu0 0.0
  %2669 = vmatmul.mubr.f32.gmra.mxu0 %v2355
  %v2670 = vpop.f32.mrf.mxu0
  %v2671 = vadd.f32 0.0, %v2670
  %v2672 = vpop.f32.mrf.mxu0
  %2673 = vmatprep.mubr.f32.mxu0 0.0
  %2674 = vmatmul.mubr.f32.gmra.mxu0 %v2358
  %v2675 = vpop.f32.mrf.mxu0
  %v2676 = vadd.f32 0.0, %v2675
  %v2677 = vpop.f32.mrf.mxu0
  %2678 = vmatprep.mubr.f32.mxu0 0.0
  %2679 = vmatmul.mubr.f32.gmra.mxu0 %v2361
  %v2680 = vpop.f32.mrf.mxu0
  %v2681 = vadd.f32 0.0, %v2680
  %v2682 = vpop.f32.mrf.mxu0
  %2683 = vmatprep.mubr.f32.mxu0 0.0
  %2684 = vmatmul.mubr.f32.gmra.mxu0 %v2364
  %v2685 = vpop.f32.mrf.mxu0
  %v2686 = vadd.f32 0.0, %v2685
  %v2687 = vpop.f32.mrf.mxu0
  %2688 = vmatprep.mubr.f32.mxu0 0.0
  %2689 = vmatmul.mubr.f32.gmra.mxu0 %v2367
  %v2690 = vpop.f32.mrf.mxu0
  %v2691 = vadd.f32 0.0, %v2690
  %v2692 = vpop.f32.mrf.mxu0
  %2693 = vmatprep.mubr.f32.mxu0 0.0
  %2694 = vmatmul.mubr.f32.gmra.mxu0 %v2370
  %v2695 = vpop.f32.mrf.mxu0
  %v2696 = vadd.f32 0.0, %v2695
  %v2697 = vpop.f32.mrf.mxu0
  %2698 = vmatprep.mubr.f32.mxu0 0.0
  %2699 = vmatmul.mubr.f32.gmra.mxu0 %v2373
  %v2700 = vpop.f32.mrf.mxu0
  %v2701 = vadd.f32 0.0, %v2700
  %v2702 = vpop.f32.mrf.mxu0
  %2703 = vmatprep.mubr.f32.mxu0 0.0
  %2704 = vmatmul.mubr.f32.gmra.mxu0 %v2376
  %v2705 = vpop.f32.mrf.mxu0
  %v2706 = vadd.f32 0.0, %v2705
  %v2707 = vpop.f32.mrf.mxu0
  %2708 = vmatprep.mubr.f32.mxu0 0.0
  %2709 = vmatmul.mubr.f32.gmra.mxu0 %v2379
  %v2710 = vpop.f32.mrf.mxu0
  %v2711 = vadd.f32 0.0, %v2710
  %v2712 = vpop.f32.mrf.mxu0
  %2713 = vmatprep.mubr.f32.mxu0 0.0
  %2714 = vmatmul.mubr.f32.gmra.mxu0 %v2382
  %v2715 = vpop.f32.mrf.mxu0
  %v2716 = vadd.f32 0.0, %v2715
  %v2717 = vpop.f32.mrf.mxu0
  %2718 = vmatprep.mubr.f32.mxu0 0.0
  %2719 = vmatmul.mubr.f32.gmra.mxu0 %v2385
  %v2720 = vpop.f32.mrf.mxu0
  %v2721 = vadd.f32 0.0, %v2720
  %v2722 = vpop.f32.mrf.mxu0
  %2723 = vmatprep.mubr.f32.mxu0 0.0
  %2724 = vmatmul.mubr.f32.gmra.mxu0 %v2388
  %v2725 = vpop.f32.mrf.mxu0
  %v2726 = vadd.f32 0.0, %v2725
  %v2727 = vpop.f32.mrf.mxu0
  %2728 = vmatprep.mubr.f32.mxu0 0.0
  %2729 = vmatmul.mubr.f32.gmra.mxu0 %v2391
  %v2730 = vpop.f32.mrf.mxu0
  %v2731 = vadd.f32 0.0, %v2730
  %v2732 = vpop.f32.mrf.mxu0
  %2733 = vmatprep.mubr.f32.mxu0 0.0
  %2734 = vmatmul.mubr.f32.gmra.mxu0 %v2394
  %v2735 = vpop.f32.mrf.mxu0
  %v2736 = vadd.f32 0.0, %v2735
  %v2737 = vpop.f32.mrf.mxu0
  %2738 = vmatprep.mubr.f32.mxu0 0.0
  %2739 = vmatmul.mubr.f32.gmra.mxu0 %v2397
  %v2740 = vpop.f32.mrf.mxu0
  %v2741 = vadd.f32 0.0, %v2740
  %v2742 = vpop.f32.mrf.mxu0
  %2743 = vmatprep.mubr.f32.mxu0 0.0
  %2744 = vmatmul.mubr.f32.gmra.mxu0 %v2400
  %v2745 = vpop.f32.mrf.mxu0
  %v2746 = vadd.f32 0.0, %v2745
  %v2747 = vpop.f32.mrf.mxu0
  %2748 = vmatprep.mubr.f32.mxu0 0.0
  %2749 = vmatmul.mubr.f32.gmra.mxu0 %v2403
  %v2750 = vpop.f32.mrf.mxu0
  %v2751 = vadd.f32 0.0, %v2750
  %v2752 = vpop.f32.mrf.mxu0
  %2753 = vmatprep.mubr.f32.mxu0 0.0
  %2754 = vmatmul.mubr.f32.gmra.mxu0 %v2406
  %v2755 = vpop.f32.mrf.mxu0
  %v2756 = vadd.f32 0.0, %v2755
  %v2757 = vpop.f32.mrf.mxu0
  %2758 = vmatprep.mubr.f32.mxu0 0.0
  %2759 = vmatmul.mubr.f32.gmra.mxu0 %v2409
  %v2760 = vpop.f32.mrf.mxu0
  %v2761 = vadd.f32 0.0, %v2760
  %v2762 = vpop.f32.mrf.mxu0
  %2763 = vmatprep.mubr.f32.mxu0 0.0
  %2764 = vmatmul.mubr.f32.gmra.mxu0 %v2412
  %v2765 = vpop.f32.mrf.mxu0
  %v2766 = vadd.f32 0.0, %v2765
  %v2767 = vpop.f32.mrf.mxu0
  %2768 = vmatprep.mubr.f32.mxu0 0.0
  %2769 = vmatmul.mubr.f32.gmra.mxu0 %v2415
  %v2770 = vpop.f32.mrf.mxu0
  %v2771 = vadd.f32 0.0, %v2770
  %v2772 = vpop.f32.mrf.mxu0
  %2773 = vmatprep.mubr.f32.mxu0 0.0
  %2774 = vmatmul.mubr.f32.gmra.mxu0 %v2418
  %v2775 = vpop.f32.mrf.mxu0
  %v2776 = vadd.f32 0.0, %v2775
  %v2777 = vpop.f32.mrf.mxu0
  %2778 = vmatprep.mubr.f32.mxu0 0.0
  %2779 = vmatmul.mubr.f32.gmra.mxu0 %v2421
  %v2780 = vpop.f32.mrf.mxu0
  %v2781 = vadd.f32 0.0, %v2780
  %v2782 = vpop.f32.mrf.mxu0
  %2783 = vmatprep.mubr.f32.mxu0 0.0
  %2784 = vmatmul.mubr.f32.gmra.mxu0 %v2424
  %v2785 = vpop.f32.mrf.mxu0
  %v2786 = vadd.f32 0.0, %v2785
  %v2787 = vpop.f32.mrf.mxu0
  %2788 = vmatprep.mubr.f32.mxu0 0.0
  %2789 = vmatmul.mubr.f32.gmra.mxu0 %v2427
  %v2790 = vpop.f32.mrf.mxu0
  %v2791 = vadd.f32 0.0, %v2790
  %v2792 = vpop.f32.mrf.mxu0
  %2793 = vmatprep.mubr.f32.mxu0 0.0
  %2794 = vmatmul.mubr.f32.gmra.mxu0 %v2430
  %v2795 = vpop.f32.mrf.mxu0
  %v2796 = vadd.f32 0.0, %v2795
  %v2797 = vpop.f32.mrf.mxu0
  %2798 = vmatprep.mubr.f32.mxu0 0.0
  %2799 = vmatmul.mubr.f32.gmra.mxu0 %v2433
  %v2800 = vpop.f32.mrf.mxu0
  %v2801 = vadd.f32 0.0, %v2800
  %v2802 = vpop.f32.mrf.mxu0
  %2803 = vmatprep.mubr.f32.mxu0 0.0
  %2804 = vmatmul.mubr.f32.gmra.mxu0 %v2436
  %v2805 = vpop.f32.mrf.mxu0
  %v2806 = vadd.f32 0.0, %v2805
  %v2807 = vpop.f32.mrf.mxu0
  %2808 = vmatprep.mubr.f32.mxu0 0.0
  %2809 = vmatmul.mubr.f32.gmra.mxu0 %v2439
  %v2810 = vpop.f32.mrf.mxu0
  %v2811 = vadd.f32 0.0, %v2810
  %v2812 = vpop.f32.mrf.mxu0
  %2813 = vmatprep.mubr.f32.mxu0 0.0
  %2814 = vmatmul.mubr.f32.gmra.mxu0 %v2442
  %v2815 = vpop.f32.mrf.mxu0
  %v2816 = vadd.f32 0.0, %v2815
  %v2817 = vpop.f32.mrf.mxu0
  %2818 = vmatprep.mubr.f32.mxu0 0.0
  %2819 = vmatmul.mubr.f32.gmra.mxu0 %v2445
  %v2820 = vpop.f32.mrf.mxu0
  %v2821 = vadd.f32 0.0, %v2820
  %v2822 = vpop.f32.mrf.mxu0
  %2823 = vmatprep.mubr.f32.mxu0 0.0
  %2824 = vmatmul.mubr.f32.gmra.mxu0 %v2448
  %v2825 = vpop.f32.mrf.mxu0
  %v2826 = vadd.f32 0.0, %v2825
  %v2827 = vpop.f32.mrf.mxu0
  %2828 = vmatprep.mubr.f32.mxu0 0.0
  %2829 = vmatmul.mubr.f32.gmra.mxu0 %v2451
  %v2830 = vpop.f32.mrf.mxu0
  %v2831 = vadd.f32 0.0, %v2830
  %v2832 = vpop.f32.mrf.mxu0
  %2833 = vmatprep.mubr.f32.mxu0 0.0
  %2834 = vmatmul.mubr.f32.gmra.mxu0 %v2454
  %v2835 = vpop.f32.mrf.mxu0
  %v2836 = vadd.f32 0.0, %v2835
  %v2837 = vpop.f32.mrf.mxu0
  %2838 = vmatprep.mubr.f32.mxu0 0.0
  %2839 = vmatmul.mubr.f32.gmra.mxu0 %v2457
  %v2840 = vpop.f32.mrf.mxu0
  %v2841 = vadd.f32 0.0, %v2840
  %v2842 = vpop.f32.mrf.mxu0
  %2843 = vdwg.mxu0
  %v2844 = vadd.f32 %v2136, %v2526
  %v2845 = vadd.f32 %v2137, %v2531
  %v2846 = vadd.f32 %v2138, %v2536
  %v2847 = vadd.f32 %v2139, %v2541
  %v2848 = vadd.f32 %v2140, %v2546
  %v2849 = vadd.f32 %v2141, %v2551
  %v2850 = vadd.f32 %v2142, %v2556
  %v2851 = vadd.f32 %v2143, %v2561
  %v2852 = vadd.f32 %v2144, %v2566
  %v2853 = vadd.f32 %v2145, %v2571
  %v2854 = vadd.f32 %v2146, %v2576
  %v2855 = vadd.f32 %v2147, %v2581
  %v2856 = vadd.f32 %v2148, %v2586
  %v2857 = vadd.f32 %v2149, %v2591
  %v2858 = vadd.f32 %v2150, %v2596
  %v2859 = vadd.f32 %v2151, %v2601
  %v2860 = vadd.f32 %v2152, %v2606
  %v2861 = vadd.f32 %v2153, %v2611
  %v2862 = vadd.f32 %v2154, %v2616
  %v2863 = vadd.f32 %v2155, %v2621
  %v2864 = vadd.f32 %v2156, %v2626
  %v2865 = vadd.f32 %v2157, %v2631
  %v2866 = vadd.f32 %v2158, %v2636
  %v2867 = vadd.f32 %v2159, %v2641
  %v2868 = vadd.f32 %v2160, %v2646
  %v2869 = vadd.f32 %v2161, %v2651
  %v2870 = vadd.f32 %v2162, %v2656
  %v2871 = vadd.f32 %v2163, %v2661
  %v2872 = vadd.f32 %v2164, %v2666
  %v2873 = vadd.f32 %v2165, %v2671
  %v2874 = vadd.f32 %v2166, %v2676
  %v2875 = vadd.f32 %v2167, %v2681
  %v2876 = vadd.f32 %v2168, %v2686
  %v2877 = vadd.f32 %v2169, %v2691
  %v2878 = vadd.f32 %v2170, %v2696
  %v2879 = vadd.f32 %v2171, %v2701
  %v2880 = vadd.f32 %v2172, %v2706
  %v2881 = vadd.f32 %v2173, %v2711
  %v2882 = vadd.f32 %v2174, %v2716
  %v2883 = vadd.f32 %v2175, %v2721
  %v2884 = vadd.f32 %v2176, %v2726
  %v2885 = vadd.f32 %v2177, %v2731
  %v2886 = vadd.f32 %v2178, %v2736
  %v2887 = vadd.f32 %v2179, %v2741
  %v2888 = vadd.f32 %v2180, %v2746
  %v2889 = vadd.f32 %v2181, %v2751
  %v2890 = vadd.f32 %v2182, %v2756
  %v2891 = vadd.f32 %v2183, %v2761
  %v2892 = vadd.f32 %v2184, %v2766
  %v2893 = vadd.f32 %v2185, %v2771
  %v2894 = vadd.f32 %v2186, %v2776
  %v2895 = vadd.f32 %v2187, %v2781
  %v2896 = vadd.f32 %v2188, %v2786
  %v2897 = vadd.f32 %v2189, %v2791
  %v2898 = vadd.f32 %v2190, %v2796
  %v2899 = vadd.f32 %v2191, %v2801
  %v2900 = vadd.f32 %v2192, %v2806
  %v2901 = vadd.f32 %v2193, %v2811
  %v2902 = vadd.f32 %v2194, %v2816
  %v2903 = vadd.f32 %v2195, %v2821
  %v2904 = vadd.f32 %v2196, %v2826
  %v2905 = vadd.f32 %v2197, %v2831
  %v2906 = vadd.f32 %v2198, %v2836
  %v2907 = vadd.f32 %v2199, %v2841
  %v2908 = vld [vmem:[#allocation2 + $0xe] sm:$0xff]
  %v2909 = vld [vmem:[#allocation2 + $0x16] sm:$0xff]
  %v2910 = vld [vmem:[#allocation2 + $0x1e] sm:$0xff]
  %v2911 = vld [vmem:[#allocation2 + $0x26] sm:$0xff]
  %v2912 = vld [vmem:[#allocation2 + $0x2e] sm:$0xff]
  %v2913 = vld [vmem:[#allocation2 + $0x36] sm:$0xff]
  %v2914 = vld [vmem:[#allocation2 + $0x3e] sm:$0xff]
  %v2915 = vld [vmem:[#allocation2 + $0x46] sm:$0xff]
  %v2916 = vld [vmem:[#allocation2 + $0x4e] sm:$0xff]
  %v2917 = vld [vmem:[#allocation2 + $0x56] sm:$0xff]
  %v2918 = vld [vmem:[#allocation2 + $0x5e] sm:$0xff]
  %v2919 = vld [vmem:[#allocation2 + $0x66] sm:$0xff]
  %v2920 = vld [vmem:[#allocation2 + $0x6e] sm:$0xff]
  %v2921 = vld [vmem:[#allocation2 + $0x76] sm:$0xff]
  %v2922 = vld [vmem:[#allocation2 + $0x7e] sm:$0xff]
  %v2923 = vld [vmem:[#allocation2 + $0x86] sm:$0xff]
  %v2924 = vld [vmem:[#allocation2 + $0x8e] sm:$0xff]
  %v2925 = vld [vmem:[#allocation2 + $0x96] sm:$0xff]
  %v2926 = vld [vmem:[#allocation2 + $0x9e] sm:$0xff]
  %v2927 = vld [vmem:[#allocation2 + $0xa6] sm:$0xff]
  %v2928 = vld [vmem:[#allocation2 + $0xae] sm:$0xff]
  %v2929 = vld [vmem:[#allocation2 + $0xb6] sm:$0xff]
  %v2930 = vld [vmem:[#allocation2 + $0xbe] sm:$0xff]
  %v2931 = vld [vmem:[#allocation2 + $0xc6] sm:$0xff]
  %v2932 = vld [vmem:[#allocation2 + $0xce] sm:$0xff]
  %v2933 = vld [vmem:[#allocation2 + $0xd6] sm:$0xff]
  %v2934 = vld [vmem:[#allocation2 + $0xde] sm:$0xff]
  %v2935 = vld [vmem:[#allocation2 + $0xe6] sm:$0xff]
  %v2936 = vld [vmem:[#allocation2 + $0xee] sm:$0xff]
  %v2937 = vld [vmem:[#allocation2 + $0xf6] sm:$0xff]
  %v2938 = vld [vmem:[#allocation2 + $0xfe] sm:$0xff]
  %v2939 = vld [vmem:[#allocation2 + $0x106] sm:$0xff]
  %v2940 = vld [vmem:[#allocation2 + $0x10e] sm:$0xff]
  %v2941 = vld [vmem:[#allocation2 + $0x116] sm:$0xff]
  %v2942 = vld [vmem:[#allocation2 + $0x11e] sm:$0xff]
  %v2943 = vld [vmem:[#allocation2 + $0x126] sm:$0xff]
  %v2944 = vld [vmem:[#allocation2 + $0x12e] sm:$0xff]
  %v2945 = vld [vmem:[#allocation2 + $0x136] sm:$0xff]
  %v2946 = vld [vmem:[#allocation2 + $0x13e] sm:$0xff]
  %v2947 = vld [vmem:[#allocation2 + $0x146] sm:$0xff]
  %v2948 = vld [vmem:[#allocation2 + $0x14e] sm:$0xff]
  %v2949 = vld [vmem:[#allocation2 + $0x156] sm:$0xff]
  %v2950 = vld [vmem:[#allocation2 + $0x15e] sm:$0xff]
  %v2951 = vld [vmem:[#allocation2 + $0x166] sm:$0xff]
  %v2952 = vld [vmem:[#allocation2 + $0x16e] sm:$0xff]
  %v2953 = vld [vmem:[#allocation2 + $0x176] sm:$0xff]
  %v2954 = vld [vmem:[#allocation2 + $0x17e] sm:$0xff]
  %v2955 = vld [vmem:[#allocation2 + $0x186] sm:$0xff]
  %v2956 = vld [vmem:[#allocation2 + $0x18e] sm:$0xff]
  %v2957 = vld [vmem:[#allocation2 + $0x196] sm:$0xff]
  %v2958 = vld [vmem:[#allocation2 + $0x19e] sm:$0xff]
  %v2959 = vld [vmem:[#allocation2 + $0x1a6] sm:$0xff]
  %v2960 = vld [vmem:[#allocation2 + $0x1ae] sm:$0xff]
  %v2961 = vld [vmem:[#allocation2 + $0x1b6] sm:$0xff]
  %v2962 = vld [vmem:[#allocation2 + $0x1be] sm:$0xff]
  %v2963 = vld [vmem:[#allocation2 + $0x1c6] sm:$0xff]
  %v2964 = vld [vmem:[#allocation2 + $0x1ce] sm:$0xff]
  %v2965 = vld [vmem:[#allocation2 + $0x1d6] sm:$0xff]
  %v2966 = vld [vmem:[#allocation2 + $0x1de] sm:$0xff]
  %v2967 = vld [vmem:[#allocation2 + $0x1e6] sm:$0xff]
  %v2968 = vld [vmem:[#allocation2 + $0x1ee] sm:$0xff]
  %v2969 = vld [vmem:[#allocation2 + $0x1f6] sm:$0xff]
  %v2970 = vld [vmem:[#allocation2 + $0x1fe] sm:$0xff]
  %v2971 = vld [vmem:[#allocation2 + $0x206] sm:$0xff]
  %s2972 = scalar_lea.vmem %s2, 64
  %v2973 = vld [vmem:[%s2972] sm:$0xff]
  %v2974 = vld [vmem:[%s2972 + $0x8] sm:$0xff]
  %v2976 = vsel %vm108, %v2908, 0
  %v2979 = vsel %vm108, %v2909, 0
  %v2982 = vsel %vm108, %v2910, 0
  %v2985 = vsel %vm108, %v2911, 0
  %v2988 = vsel %vm108, %v2912, 0
  %v2991 = vsel %vm108, %v2913, 0
  %v2994 = vsel %vm108, %v2914, 0
  %v2997 = vsel %vm108, %v2915, 0
  %v3000 = vsel %vm108, %v2916, 0
  %v3003 = vsel %vm108, %v2917, 0
  %v3006 = vsel %vm108, %v2918, 0
  %v3009 = vsel %vm108, %v2919, 0
  %v3012 = vsel %vm108, %v2920, 0
  %v3015 = vsel %vm108, %v2921, 0
  %v3018 = vsel %vm108, %v2922, 0
  %v3021 = vsel %vm108, %v2923, 0
  %v3024 = vsel %vm108, %v2924, 0
  %v3027 = vsel %vm108, %v2925, 0
  %v3030 = vsel %vm108, %v2926, 0
  %v3033 = vsel %vm108, %v2927, 0
  %v3036 = vsel %vm108, %v2928, 0
  %v3039 = vsel %vm108, %v2929, 0
  %v3042 = vsel %vm108, %v2930, 0
  %v3045 = vsel %vm108, %v2931, 0
  %v3048 = vsel %vm108, %v2932, 0
  %v3051 = vsel %vm108, %v2933, 0
  %v3054 = vsel %vm108, %v2934, 0
  %v3057 = vsel %vm108, %v2935, 0
  %v3060 = vsel %vm108, %v2936, 0
  %v3063 = vsel %vm108, %v2937, 0
  %v3066 = vsel %vm108, %v2938, 0
  %v3069 = vsel %vm108, %v2939, 0
  %v3072 = vsel %vm108, %v2940, 0
  %v3075 = vsel %vm108, %v2941, 0
  %v3078 = vsel %vm108, %v2942, 0
  %v3081 = vsel %vm108, %v2943, 0
  %v3084 = vsel %vm108, %v2944, 0
  %v3087 = vsel %vm108, %v2945, 0
  %v3090 = vsel %vm108, %v2946, 0
  %v3093 = vsel %vm108, %v2947, 0
  %v3096 = vsel %vm108, %v2948, 0
  %v3099 = vsel %vm108, %v2949, 0
  %v3102 = vsel %vm108, %v2950, 0
  %v3105 = vsel %vm108, %v2951, 0
  %v3108 = vsel %vm108, %v2952, 0
  %v3111 = vsel %vm108, %v2953, 0
  %v3114 = vsel %vm108, %v2954, 0
  %v3117 = vsel %vm108, %v2955, 0
  %v3120 = vsel %vm108, %v2956, 0
  %v3123 = vsel %vm108, %v2957, 0
  %v3126 = vsel %vm108, %v2958, 0
  %v3129 = vsel %vm108, %v2959, 0
  %v3132 = vsel %vm108, %v2960, 0
  %v3135 = vsel %vm108, %v2961, 0
  %v3138 = vsel %vm108, %v2962, 0
  %v3141 = vsel %vm108, %v2963, 0
  %v3144 = vsel %vm108, %v2964, 0
  %v3147 = vsel %vm108, %v2965, 0
  %v3150 = vsel %vm108, %v2966, 0
  %v3153 = vsel %vm108, %v2967, 0
  %v3156 = vsel %vm108, %v2968, 0
  %v3159 = vsel %vm108, %v2969, 0
  %v3162 = vsel %vm108, %v2970, 0
  %v3165 = vsel %vm108, %v2971, 0
  %3167 = vmatprep.subr.mxu0 0.0
  %3168 = vmatpush1.msra.mxu0 0.0
  %3169 = vmatprep.subr.mxu0 0.0
  %3170 = vmatpush1.msra.mxu0 0.0
  %3171 = vmatprep.subr.mxu0 0.0
  %3172 = vmatpush1.msra.mxu0 0.0
  %3173 = vmatprep.subr.mxu0 0.0
  %3174 = vmatpush1.msra.mxu0 0.0
  %3175 = vmatprep.subr.mxu0 0.0
  %3176 = vmatpush1.msra.mxu0 0.0
  %3177 = vmatprep.subr.mxu0 0.0
  %3178 = vmatpush1.msra.mxu0 0.0
  %3179 = vmatprep.subr.mxu0 0.0
  %3180 = vmatpush1.msra.mxu0 0.0
  %3181 = vmatprep.subr.mxu0 0.0
  %3182 = vmatpush1.msra.mxu0 0.0
  %3183 = vmatprep.subr.mxu0 0.0
  %3184 = vmatpush1.msra.mxu0 0.0
  %3185 = vmatprep.subr.mxu0 0.0
  %3186 = vmatpush1.msra.mxu0 0.0
  %3187 = vmatprep.subr.mxu0 0.0
  %3188 = vmatpush1.msra.mxu0 0.0
  %3189 = vmatprep.subr.mxu0 0.0
  %3190 = vmatpush1.msra.mxu0 0.0
  %3191 = vmatprep.subr.mxu0 0.0
  %3192 = vmatpush1.msra.mxu0 0.0
  %3193 = vmatprep.subr.mxu0 0.0
  %3194 = vmatpush1.msra.mxu0 0.0
  %3195 = vmatprep.subr.mxu0 0.0
  %3196 = vmatpush1.msra.mxu0 %v2974
  %3197 = vmatprep.subr.mxu0 0.0
  %3198 = vmatpush1.msra.mxu0 %v2973
  %3199 = vmatprep.subr.mxu0 0.0
  %3200 = vmatpush2.msra.mxu0 0.0
  %3201 = vmatprep.subr.mxu0 0.0
  %3202 = vmatpush2.msra.mxu0 0.0
  %3203 = vmatprep.subr.mxu0 0.0
  %3204 = vmatpush2.msra.mxu0 0.0
  %3205 = vmatprep.subr.mxu0 0.0
  %3206 = vmatpush2.msra.mxu0 0.0
  %3207 = vmatprep.subr.mxu0 0.0
  %3208 = vmatpush2.msra.mxu0 0.0
  %3209 = vmatprep.subr.mxu0 0.0
  %3210 = vmatpush2.msra.mxu0 0.0
  %3211 = vmatprep.subr.mxu0 0.0
  %3212 = vmatpush2.msra.mxu0 0.0
  %3213 = vmatprep.subr.mxu0 0.0
  %3214 = vmatpush2.msra.mxu0 0.0
  %3215 = vmatprep.subr.mxu0 0.0
  %3216 = vmatpush2.msra.mxu0 0.0
  %3217 = vmatprep.subr.mxu0 0.0
  %3218 = vmatpush2.msra.mxu0 0.0
  %3219 = vmatprep.subr.mxu0 0.0
  %3220 = vmatpush2.msra.mxu0 0.0
  %3221 = vmatprep.subr.mxu0 0.0
  %3222 = vmatpush2.msra.mxu0 0.0
  %3223 = vmatprep.subr.mxu0 0.0
  %3224 = vmatpush2.msra.mxu0 0.0
  %3225 = vmatprep.subr.mxu0 0.0
  %3226 = vmatpush2.msra.mxu0 0.0
  %3227 = vmatprep.subr.mxu0 0.0
  %3228 = vmatpush2.msra.mxu0 0.0
  %3229 = vmatprep.subr.mxu0 0.0
  %3230 = vmatpush2.msra.mxu0 0.0
  %3231 = vmatprep.mubr.f32.mxu0 0.0
  %3232 = vmatmul.mubr.f32.gmra.mxu0 %v2976
  %v3233 = vpop.f32.mrf.mxu0
  %v3234 = vadd.f32 0.0, %v3233
  %v3235 = vpop.f32.mrf.mxu0
  %3236 = vmatprep.mubr.f32.mxu0 0.0
  %3237 = vmatmul.mubr.f32.gmra.mxu0 %v2979
  %v3238 = vpop.f32.mrf.mxu0
  %v3239 = vadd.f32 0.0, %v3238
  %v3240 = vpop.f32.mrf.mxu0
  %3241 = vmatprep.mubr.f32.mxu0 0.0
  %3242 = vmatmul.mubr.f32.gmra.mxu0 %v2982
  %v3243 = vpop.f32.mrf.mxu0
  %v3244 = vadd.f32 0.0, %v3243
  %v3245 = vpop.f32.mrf.mxu0
  %3246 = vmatprep.mubr.f32.mxu0 0.0
  %3247 = vmatmul.mubr.f32.gmra.mxu0 %v2985
  %v3248 = vpop.f32.mrf.mxu0
  %v3249 = vadd.f32 0.0, %v3248
  %v3250 = vpop.f32.mrf.mxu0
  %3251 = vmatprep.mubr.f32.mxu0 0.0
  %3252 = vmatmul.mubr.f32.gmra.mxu0 %v2988
  %v3253 = vpop.f32.mrf.mxu0
  %v3254 = vadd.f32 0.0, %v3253
  %v3255 = vpop.f32.mrf.mxu0
  %3256 = vmatprep.mubr.f32.mxu0 0.0
  %3257 = vmatmul.mubr.f32.gmra.mxu0 %v2991
  %v3258 = vpop.f32.mrf.mxu0
  %v3259 = vadd.f32 0.0, %v3258
  %v3260 = vpop.f32.mrf.mxu0
  %3261 = vmatprep.mubr.f32.mxu0 0.0
  %3262 = vmatmul.mubr.f32.gmra.mxu0 %v2994
  %v3263 = vpop.f32.mrf.mxu0
  %v3264 = vadd.f32 0.0, %v3263
  %v3265 = vpop.f32.mrf.mxu0
  %3266 = vmatprep.mubr.f32.mxu0 0.0
  %3267 = vmatmul.mubr.f32.gmra.mxu0 %v2997
  %v3268 = vpop.f32.mrf.mxu0
  %v3269 = vadd.f32 0.0, %v3268
  %v3270 = vpop.f32.mrf.mxu0
  %3271 = vmatprep.mubr.f32.mxu0 0.0
  %3272 = vmatmul.mubr.f32.gmra.mxu0 %v3000
  %v3273 = vpop.f32.mrf.mxu0
  %v3274 = vadd.f32 0.0, %v3273
  %v3275 = vpop.f32.mrf.mxu0
  %3276 = vmatprep.mubr.f32.mxu0 0.0
  %3277 = vmatmul.mubr.f32.gmra.mxu0 %v3003
  %v3278 = vpop.f32.mrf.mxu0
  %v3279 = vadd.f32 0.0, %v3278
  %v3280 = vpop.f32.mrf.mxu0
  %3281 = vmatprep.mubr.f32.mxu0 0.0
  %3282 = vmatmul.mubr.f32.gmra.mxu0 %v3006
  %v3283 = vpop.f32.mrf.mxu0
  %v3284 = vadd.f32 0.0, %v3283
  %v3285 = vpop.f32.mrf.mxu0
  %3286 = vmatprep.mubr.f32.mxu0 0.0
  %3287 = vmatmul.mubr.f32.gmra.mxu0 %v3009
  %v3288 = vpop.f32.mrf.mxu0
  %v3289 = vadd.f32 0.0, %v3288
  %v3290 = vpop.f32.mrf.mxu0
  %3291 = vmatprep.mubr.f32.mxu0 0.0
  %3292 = vmatmul.mubr.f32.gmra.mxu0 %v3012
  %v3293 = vpop.f32.mrf.mxu0
  %v3294 = vadd.f32 0.0, %v3293
  %v3295 = vpop.f32.mrf.mxu0
  %3296 = vmatprep.mubr.f32.mxu0 0.0
  %3297 = vmatmul.mubr.f32.gmra.mxu0 %v3015
  %v3298 = vpop.f32.mrf.mxu0
  %v3299 = vadd.f32 0.0, %v3298
  %v3300 = vpop.f32.mrf.mxu0
  %3301 = vmatprep.mubr.f32.mxu0 0.0
  %3302 = vmatmul.mubr.f32.gmra.mxu0 %v3018
  %v3303 = vpop.f32.mrf.mxu0
  %v3304 = vadd.f32 0.0, %v3303
  %v3305 = vpop.f32.mrf.mxu0
  %3306 = vmatprep.mubr.f32.mxu0 0.0
  %3307 = vmatmul.mubr.f32.gmra.mxu0 %v3021
  %v3308 = vpop.f32.mrf.mxu0
  %v3309 = vadd.f32 0.0, %v3308
  %v3310 = vpop.f32.mrf.mxu0
  %3311 = vmatprep.mubr.f32.mxu0 0.0
  %3312 = vmatmul.mubr.f32.gmra.mxu0 %v3024
  %v3313 = vpop.f32.mrf.mxu0
  %v3314 = vadd.f32 0.0, %v3313
  %v3315 = vpop.f32.mrf.mxu0
  %3316 = vmatprep.mubr.f32.mxu0 0.0
  %3317 = vmatmul.mubr.f32.gmra.mxu0 %v3027
  %v3318 = vpop.f32.mrf.mxu0
  %v3319 = vadd.f32 0.0, %v3318
  %v3320 = vpop.f32.mrf.mxu0
  %3321 = vmatprep.mubr.f32.mxu0 0.0
  %3322 = vmatmul.mubr.f32.gmra.mxu0 %v3030
  %v3323 = vpop.f32.mrf.mxu0
  %v3324 = vadd.f32 0.0, %v3323
  %v3325 = vpop.f32.mrf.mxu0
  %3326 = vmatprep.mubr.f32.mxu0 0.0
  %3327 = vmatmul.mubr.f32.gmra.mxu0 %v3033
  %v3328 = vpop.f32.mrf.mxu0
  %v3329 = vadd.f32 0.0, %v3328
  %v3330 = vpop.f32.mrf.mxu0
  %3331 = vmatprep.mubr.f32.mxu0 0.0
  %3332 = vmatmul.mubr.f32.gmra.mxu0 %v3036
  %v3333 = vpop.f32.mrf.mxu0
  %v3334 = vadd.f32 0.0, %v3333
  %v3335 = vpop.f32.mrf.mxu0
  %3336 = vmatprep.mubr.f32.mxu0 0.0
  %3337 = vmatmul.mubr.f32.gmra.mxu0 %v3039
  %v3338 = vpop.f32.mrf.mxu0
  %v3339 = vadd.f32 0.0, %v3338
  %v3340 = vpop.f32.mrf.mxu0
  %3341 = vmatprep.mubr.f32.mxu0 0.0
  %3342 = vmatmul.mubr.f32.gmra.mxu0 %v3042
  %v3343 = vpop.f32.mrf.mxu0
  %v3344 = vadd.f32 0.0, %v3343
  %v3345 = vpop.f32.mrf.mxu0
  %3346 = vmatprep.mubr.f32.mxu0 0.0
  %3347 = vmatmul.mubr.f32.gmra.mxu0 %v3045
  %v3348 = vpop.f32.mrf.mxu0
  %v3349 = vadd.f32 0.0, %v3348
  %v3350 = vpop.f32.mrf.mxu0
  %3351 = vmatprep.mubr.f32.mxu0 0.0
  %3352 = vmatmul.mubr.f32.gmra.mxu0 %v3048
  %v3353 = vpop.f32.mrf.mxu0
  %v3354 = vadd.f32 0.0, %v3353
  %v3355 = vpop.f32.mrf.mxu0
  %3356 = vmatprep.mubr.f32.mxu0 0.0
  %3357 = vmatmul.mubr.f32.gmra.mxu0 %v3051
  %v3358 = vpop.f32.mrf.mxu0
  %v3359 = vadd.f32 0.0, %v3358
  %v3360 = vpop.f32.mrf.mxu0
  %3361 = vmatprep.mubr.f32.mxu0 0.0
  %3362 = vmatmul.mubr.f32.gmra.mxu0 %v3054
  %v3363 = vpop.f32.mrf.mxu0
  %v3364 = vadd.f32 0.0, %v3363
  %v3365 = vpop.f32.mrf.mxu0
  %3366 = vmatprep.mubr.f32.mxu0 0.0
  %3367 = vmatmul.mubr.f32.gmra.mxu0 %v3057
  %v3368 = vpop.f32.mrf.mxu0
  %v3369 = vadd.f32 0.0, %v3368
  %v3370 = vpop.f32.mrf.mxu0
  %3371 = vmatprep.mubr.f32.mxu0 0.0
  %3372 = vmatmul.mubr.f32.gmra.mxu0 %v3060
  %v3373 = vpop.f32.mrf.mxu0
  %v3374 = vadd.f32 0.0, %v3373
  %v3375 = vpop.f32.mrf.mxu0
  %3376 = vmatprep.mubr.f32.mxu0 0.0
  %3377 = vmatmul.mubr.f32.gmra.mxu0 %v3063
  %v3378 = vpop.f32.mrf.mxu0
  %v3379 = vadd.f32 0.0, %v3378
  %v3380 = vpop.f32.mrf.mxu0
  %3381 = vmatprep.mubr.f32.mxu0 0.0
  %3382 = vmatmul.mubr.f32.gmra.mxu0 %v3066
  %v3383 = vpop.f32.mrf.mxu0
  %v3384 = vadd.f32 0.0, %v3383
  %v3385 = vpop.f32.mrf.mxu0
  %3386 = vmatprep.mubr.f32.mxu0 0.0
  %3387 = vmatmul.mubr.f32.gmra.mxu0 %v3069
  %v3388 = vpop.f32.mrf.mxu0
  %v3389 = vadd.f32 0.0, %v3388
  %v3390 = vpop.f32.mrf.mxu0
  %3391 = vmatprep.mubr.f32.mxu0 0.0
  %3392 = vmatmul.mubr.f32.gmra.mxu0 %v3072
  %v3393 = vpop.f32.mrf.mxu0
  %v3394 = vadd.f32 0.0, %v3393
  %v3395 = vpop.f32.mrf.mxu0
  %3396 = vmatprep.mubr.f32.mxu0 0.0
  %3397 = vmatmul.mubr.f32.gmra.mxu0 %v3075
  %v3398 = vpop.f32.mrf.mxu0
  %v3399 = vadd.f32 0.0, %v3398
  %v3400 = vpop.f32.mrf.mxu0
  %3401 = vmatprep.mubr.f32.mxu0 0.0
  %3402 = vmatmul.mubr.f32.gmra.mxu0 %v3078
  %v3403 = vpop.f32.mrf.mxu0
  %v3404 = vadd.f32 0.0, %v3403
  %v3405 = vpop.f32.mrf.mxu0
  %3406 = vmatprep.mubr.f32.mxu0 0.0
  %3407 = vmatmul.mubr.f32.gmra.mxu0 %v3081
  %v3408 = vpop.f32.mrf.mxu0
  %v3409 = vadd.f32 0.0, %v3408
  %v3410 = vpop.f32.mrf.mxu0
  %3411 = vmatprep.mubr.f32.mxu0 0.0
  %3412 = vmatmul.mubr.f32.gmra.mxu0 %v3084
  %v3413 = vpop.f32.mrf.mxu0
  %v3414 = vadd.f32 0.0, %v3413
  %v3415 = vpop.f32.mrf.mxu0
  %3416 = vmatprep.mubr.f32.mxu0 0.0
  %3417 = vmatmul.mubr.f32.gmra.mxu0 %v3087
  %v3418 = vpop.f32.mrf.mxu0
  %v3419 = vadd.f32 0.0, %v3418
  %v3420 = vpop.f32.mrf.mxu0
  %3421 = vmatprep.mubr.f32.mxu0 0.0
  %3422 = vmatmul.mubr.f32.gmra.mxu0 %v3090
  %v3423 = vpop.f32.mrf.mxu0
  %v3424 = vadd.f32 0.0, %v3423
  %v3425 = vpop.f32.mrf.mxu0
  %3426 = vmatprep.mubr.f32.mxu0 0.0
  %3427 = vmatmul.mubr.f32.gmra.mxu0 %v3093
  %v3428 = vpop.f32.mrf.mxu0
  %v3429 = vadd.f32 0.0, %v3428
  %v3430 = vpop.f32.mrf.mxu0
  %3431 = vmatprep.mubr.f32.mxu0 0.0
  %3432 = vmatmul.mubr.f32.gmra.mxu0 %v3096
  %v3433 = vpop.f32.mrf.mxu0
  %v3434 = vadd.f32 0.0, %v3433
  %v3435 = vpop.f32.mrf.mxu0
  %3436 = vmatprep.mubr.f32.mxu0 0.0
  %3437 = vmatmul.mubr.f32.gmra.mxu0 %v3099
  %v3438 = vpop.f32.mrf.mxu0
  %v3439 = vadd.f32 0.0, %v3438
  %v3440 = vpop.f32.mrf.mxu0
  %3441 = vmatprep.mubr.f32.mxu0 0.0
  %3442 = vmatmul.mubr.f32.gmra.mxu0 %v3102
  %v3443 = vpop.f32.mrf.mxu0
  %v3444 = vadd.f32 0.0, %v3443
  %v3445 = vpop.f32.mrf.mxu0
  %3446 = vmatprep.mubr.f32.mxu0 0.0
  %3447 = vmatmul.mubr.f32.gmra.mxu0 %v3105
  %v3448 = vpop.f32.mrf.mxu0
  %v3449 = vadd.f32 0.0, %v3448
  %v3450 = vpop.f32.mrf.mxu0
  %3451 = vmatprep.mubr.f32.mxu0 0.0
  %3452 = vmatmul.mubr.f32.gmra.mxu0 %v3108
  %v3453 = vpop.f32.mrf.mxu0
  %v3454 = vadd.f32 0.0, %v3453
  %v3455 = vpop.f32.mrf.mxu0
  %3456 = vmatprep.mubr.f32.mxu0 0.0
  %3457 = vmatmul.mubr.f32.gmra.mxu0 %v3111
  %v3458 = vpop.f32.mrf.mxu0
  %v3459 = vadd.f32 0.0, %v3458
  %v3460 = vpop.f32.mrf.mxu0
  %3461 = vmatprep.mubr.f32.mxu0 0.0
  %3462 = vmatmul.mubr.f32.gmra.mxu0 %v3114
  %v3463 = vpop.f32.mrf.mxu0
  %v3464 = vadd.f32 0.0, %v3463
  %v3465 = vpop.f32.mrf.mxu0
  %3466 = vmatprep.mubr.f32.mxu0 0.0
  %3467 = vmatmul.mubr.f32.gmra.mxu0 %v3117
  %v3468 = vpop.f32.mrf.mxu0
  %v3469 = vadd.f32 0.0, %v3468
  %v3470 = vpop.f32.mrf.mxu0
  %3471 = vmatprep.mubr.f32.mxu0 0.0
  %3472 = vmatmul.mubr.f32.gmra.mxu0 %v3120
  %v3473 = vpop.f32.mrf.mxu0
  %v3474 = vadd.f32 0.0, %v3473
  %v3475 = vpop.f32.mrf.mxu0
  %3476 = vmatprep.mubr.f32.mxu0 0.0
  %3477 = vmatmul.mubr.f32.gmra.mxu0 %v3123
  %v3478 = vpop.f32.mrf.mxu0
  %v3479 = vadd.f32 0.0, %v3478
  %v3480 = vpop.f32.mrf.mxu0
  %3481 = vmatprep.mubr.f32.mxu0 0.0
  %3482 = vmatmul.mubr.f32.gmra.mxu0 %v3126
  %v3483 = vpop.f32.mrf.mxu0
  %v3484 = vadd.f32 0.0, %v3483
  %v3485 = vpop.f32.mrf.mxu0
  %3486 = vmatprep.mubr.f32.mxu0 0.0
  %3487 = vmatmul.mubr.f32.gmra.mxu0 %v3129
  %v3488 = vpop.f32.mrf.mxu0
  %v3489 = vadd.f32 0.0, %v3488
  %v3490 = vpop.f32.mrf.mxu0
  %3491 = vmatprep.mubr.f32.mxu0 0.0
  %3492 = vmatmul.mubr.f32.gmra.mxu0 %v3132
  %v3493 = vpop.f32.mrf.mxu0
  %v3494 = vadd.f32 0.0, %v3493
  %v3495 = vpop.f32.mrf.mxu0
  %3496 = vmatprep.mubr.f32.mxu0 0.0
  %3497 = vmatmul.mubr.f32.gmra.mxu0 %v3135
  %v3498 = vpop.f32.mrf.mxu0
  %v3499 = vadd.f32 0.0, %v3498
  %v3500 = vpop.f32.mrf.mxu0
  %3501 = vmatprep.mubr.f32.mxu0 0.0
  %3502 = vmatmul.mubr.f32.gmra.mxu0 %v3138
  %v3503 = vpop.f32.mrf.mxu0
  %v3504 = vadd.f32 0.0, %v3503
  %v3505 = vpop.f32.mrf.mxu0
  %3506 = vmatprep.mubr.f32.mxu0 0.0
  %3507 = vmatmul.mubr.f32.gmra.mxu0 %v3141
  %v3508 = vpop.f32.mrf.mxu0
  %v3509 = vadd.f32 0.0, %v3508
  %v3510 = vpop.f32.mrf.mxu0
  %3511 = vmatprep.mubr.f32.mxu0 0.0
  %3512 = vmatmul.mubr.f32.gmra.mxu0 %v3144
  %v3513 = vpop.f32.mrf.mxu0
  %v3514 = vadd.f32 0.0, %v3513
  %v3515 = vpop.f32.mrf.mxu0
  %3516 = vmatprep.mubr.f32.mxu0 0.0
  %3517 = vmatmul.mubr.f32.gmra.mxu0 %v3147
  %v3518 = vpop.f32.mrf.mxu0
  %v3519 = vadd.f32 0.0, %v3518
  %v3520 = vpop.f32.mrf.mxu0
  %3521 = vmatprep.mubr.f32.mxu0 0.0
  %3522 = vmatmul.mubr.f32.gmra.mxu0 %v3150
  %v3523 = vpop.f32.mrf.mxu0
  %v3524 = vadd.f32 0.0, %v3523
  %v3525 = vpop.f32.mrf.mxu0
  %3526 = vmatprep.mubr.f32.mxu0 0.0
  %3527 = vmatmul.mubr.f32.gmra.mxu0 %v3153
  %v3528 = vpop.f32.mrf.mxu0
  %v3529 = vadd.f32 0.0, %v3528
  %v3530 = vpop.f32.mrf.mxu0
  %3531 = vmatprep.mubr.f32.mxu0 0.0
  %3532 = vmatmul.mubr.f32.gmra.mxu0 %v3156
  %v3533 = vpop.f32.mrf.mxu0
  %v3534 = vadd.f32 0.0, %v3533
  %v3535 = vpop.f32.mrf.mxu0
  %3536 = vmatprep.mubr.f32.mxu0 0.0
  %3537 = vmatmul.mubr.f32.gmra.mxu0 %v3159
  %v3538 = vpop.f32.mrf.mxu0
  %v3539 = vadd.f32 0.0, %v3538
  %v3540 = vpop.f32.mrf.mxu0
  %3541 = vmatprep.mubr.f32.mxu0 0.0
  %3542 = vmatmul.mubr.f32.gmra.mxu0 %v3162
  %v3543 = vpop.f32.mrf.mxu0
  %v3544 = vadd.f32 0.0, %v3543
  %v3545 = vpop.f32.mrf.mxu0
  %3546 = vmatprep.mubr.f32.mxu0 0.0
  %3547 = vmatmul.mubr.f32.gmra.mxu0 %v3165
  %v3548 = vpop.f32.mrf.mxu0
  %v3549 = vadd.f32 0.0, %v3548
  %v3550 = vpop.f32.mrf.mxu0
  %3551 = vdwg.mxu0
  %v3552 = vadd.f32 %v2844, %v3234
  %v3553 = vadd.f32 %v2845, %v3239
  %v3554 = vadd.f32 %v2846, %v3244
  %v3555 = vadd.f32 %v2847, %v3249
  %v3556 = vadd.f32 %v2848, %v3254
  %v3557 = vadd.f32 %v2849, %v3259
  %v3558 = vadd.f32 %v2850, %v3264
  %v3559 = vadd.f32 %v2851, %v3269
  %v3560 = vadd.f32 %v2852, %v3274
  %v3561 = vadd.f32 %v2853, %v3279
  %v3562 = vadd.f32 %v2854, %v3284
  %v3563 = vadd.f32 %v2855, %v3289
  %v3564 = vadd.f32 %v2856, %v3294
  %v3565 = vadd.f32 %v2857, %v3299
  %v3566 = vadd.f32 %v2858, %v3304
  %v3567 = vadd.f32 %v2859, %v3309
  %v3568 = vadd.f32 %v2860, %v3314
  %v3569 = vadd.f32 %v2861, %v3319
  %v3570 = vadd.f32 %v2862, %v3324
  %v3571 = vadd.f32 %v2863, %v3329
  %v3572 = vadd.f32 %v2864, %v3334
  %v3573 = vadd.f32 %v2865, %v3339
  %v3574 = vadd.f32 %v2866, %v3344
  %v3575 = vadd.f32 %v2867, %v3349
  %v3576 = vadd.f32 %v2868, %v3354
  %v3577 = vadd.f32 %v2869, %v3359
  %v3578 = vadd.f32 %v2870, %v3364
  %v3579 = vadd.f32 %v2871, %v3369
  %v3580 = vadd.f32 %v2872, %v3374
  %v3581 = vadd.f32 %v2873, %v3379
  %v3582 = vadd.f32 %v2874, %v3384
  %v3583 = vadd.f32 %v2875, %v3389
  %v3584 = vadd.f32 %v2876, %v3394
  %v3585 = vadd.f32 %v2877, %v3399
  %v3586 = vadd.f32 %v2878, %v3404
  %v3587 = vadd.f32 %v2879, %v3409
  %v3588 = vadd.f32 %v2880, %v3414
  %v3589 = vadd.f32 %v2881, %v3419
  %v3590 = vadd.f32 %v2882, %v3424
  %v3591 = vadd.f32 %v2883, %v3429
  %v3592 = vadd.f32 %v2884, %v3434
  %v3593 = vadd.f32 %v2885, %v3439
  %v3594 = vadd.f32 %v2886, %v3444
  %v3595 = vadd.f32 %v2887, %v3449
  %v3596 = vadd.f32 %v2888, %v3454
  %v3597 = vadd.f32 %v2889, %v3459
  %v3598 = vadd.f32 %v2890, %v3464
  %v3599 = vadd.f32 %v2891, %v3469
  %v3600 = vadd.f32 %v2892, %v3474
  %v3601 = vadd.f32 %v2893, %v3479
  %v3602 = vadd.f32 %v2894, %v3484
  %v3603 = vadd.f32 %v2895, %v3489
  %v3604 = vadd.f32 %v2896, %v3494
  %v3605 = vadd.f32 %v2897, %v3499
  %v3606 = vadd.f32 %v2898, %v3504
  %v3607 = vadd.f32 %v2899, %v3509
  %v3608 = vadd.f32 %v2900, %v3514
  %v3609 = vadd.f32 %v2901, %v3519
  %v3610 = vadd.f32 %v2902, %v3524
  %v3611 = vadd.f32 %v2903, %v3529
  %v3612 = vadd.f32 %v2904, %v3534
  %v3613 = vadd.f32 %v2905, %v3539
  %v3614 = vadd.f32 %v2906, %v3544
  %v3615 = vadd.f32 %v2907, %v3549
  %v3616 = vld [vmem:[#allocation2 + $0xf] sm:$0xff]
  %v3617 = vld [vmem:[#allocation2 + $0x17] sm:$0xff]
  %v3618 = vld [vmem:[#allocation2 + $0x1f] sm:$0xff]
  %v3619 = vld [vmem:[#allocation2 + $0x27] sm:$0xff]
  %v3620 = vld [vmem:[#allocation2 + $0x2f] sm:$0xff]
  %v3621 = vld [vmem:[#allocation2 + $0x37] sm:$0xff]
  %v3622 = vld [vmem:[#allocation2 + $0x3f] sm:$0xff]
  %v3623 = vld [vmem:[#allocation2 + $0x47] sm:$0xff]
  %v3624 = vld [vmem:[#allocation2 + $0x4f] sm:$0xff]
  %v3625 = vld [vmem:[#allocation2 + $0x57] sm:$0xff]
  %v3626 = vld [vmem:[#allocation2 + $0x5f] sm:$0xff]
  %v3627 = vld [vmem:[#allocation2 + $0x67] sm:$0xff]
  %v3628 = vld [vmem:[#allocation2 + $0x6f] sm:$0xff]
  %v3629 = vld [vmem:[#allocation2 + $0x77] sm:$0xff]
  %v3630 = vld [vmem:[#allocation2 + $0x7f] sm:$0xff]
  %v3631 = vld [vmem:[#allocation2 + $0x87] sm:$0xff]
  %v3632 = vld [vmem:[#allocation2 + $0x8f] sm:$0xff]
  %v3633 = vld [vmem:[#allocation2 + $0x97] sm:$0xff]
  %v3634 = vld [vmem:[#allocation2 + $0x9f] sm:$0xff]
  %v3635 = vld [vmem:[#allocation2 + $0xa7] sm:$0xff]
  %v3636 = vld [vmem:[#allocation2 + $0xaf] sm:$0xff]
  %v3637 = vld [vmem:[#allocation2 + $0xb7] sm:$0xff]
  %v3638 = vld [vmem:[#allocation2 + $0xbf] sm:$0xff]
  %v3639 = vld [vmem:[#allocation2 + $0xc7] sm:$0xff]
  %v3640 = vld [vmem:[#allocation2 + $0xcf] sm:$0xff]
  %v3641 = vld [vmem:[#allocation2 + $0xd7] sm:$0xff]
  %v3642 = vld [vmem:[#allocation2 + $0xdf] sm:$0xff]
  %v3643 = vld [vmem:[#allocation2 + $0xe7] sm:$0xff]
  %v3644 = vld [vmem:[#allocation2 + $0xef] sm:$0xff]
  %v3645 = vld [vmem:[#allocation2 + $0xf7] sm:$0xff]
  %v3646 = vld [vmem:[#allocation2 + $0xff] sm:$0xff]
  %v3647 = vld [vmem:[#allocation2 + $0x107] sm:$0xff]
  %v3648 = vld [vmem:[#allocation2 + $0x10f] sm:$0xff]
  %v3649 = vld [vmem:[#allocation2 + $0x117] sm:$0xff]
  %v3650 = vld [vmem:[#allocation2 + $0x11f] sm:$0xff]
  %v3651 = vld [vmem:[#allocation2 + $0x127] sm:$0xff]
  %v3652 = vld [vmem:[#allocation2 + $0x12f] sm:$0xff]
  %v3653 = vld [vmem:[#allocation2 + $0x137] sm:$0xff]
  %v3654 = vld [vmem:[#allocation2 + $0x13f] sm:$0xff]
  %v3655 = vld [vmem:[#allocation2 + $0x147] sm:$0xff]
  %v3656 = vld [vmem:[#allocation2 + $0x14f] sm:$0xff]
  %v3657 = vld [vmem:[#allocation2 + $0x157] sm:$0xff]
  %v3658 = vld [vmem:[#allocation2 + $0x15f] sm:$0xff]
  %v3659 = vld [vmem:[#allocation2 + $0x167] sm:$0xff]
  %v3660 = vld [vmem:[#allocation2 + $0x16f] sm:$0xff]
  %v3661 = vld [vmem:[#allocation2 + $0x177] sm:$0xff]
  %v3662 = vld [vmem:[#allocation2 + $0x17f] sm:$0xff]
  %v3663 = vld [vmem:[#allocation2 + $0x187] sm:$0xff]
  %v3664 = vld [vmem:[#allocation2 + $0x18f] sm:$0xff]
  %v3665 = vld [vmem:[#allocation2 + $0x197] sm:$0xff]
  %v3666 = vld [vmem:[#allocation2 + $0x19f] sm:$0xff]
  %v3667 = vld [vmem:[#allocation2 + $0x1a7] sm:$0xff]
  %v3668 = vld [vmem:[#allocation2 + $0x1af] sm:$0xff]
  %v3669 = vld [vmem:[#allocation2 + $0x1b7] sm:$0xff]
  %v3670 = vld [vmem:[#allocation2 + $0x1bf] sm:$0xff]
  %v3671 = vld [vmem:[#allocation2 + $0x1c7] sm:$0xff]
  %v3672 = vld [vmem:[#allocation2 + $0x1cf] sm:$0xff]
  %v3673 = vld [vmem:[#allocation2 + $0x1d7] sm:$0xff]
  %v3674 = vld [vmem:[#allocation2 + $0x1df] sm:$0xff]
  %v3675 = vld [vmem:[#allocation2 + $0x1e7] sm:$0xff]
  %v3676 = vld [vmem:[#allocation2 + $0x1ef] sm:$0xff]
  %v3677 = vld [vmem:[#allocation2 + $0x1f7] sm:$0xff]
  %v3678 = vld [vmem:[#allocation2 + $0x1ff] sm:$0xff]
  %v3679 = vld [vmem:[#allocation2 + $0x207] sm:$0xff]
  %s3680 = scalar_lea.vmem %s2, 80
  %v3681 = vld [vmem:[%s3680] sm:$0xff]
  %v3682 = vld [vmem:[%s3680 + $0x8] sm:$0xff]
  %v3684 = vsel %vm108, %v3616, 0
  %v3687 = vsel %vm108, %v3617, 0
  %v3690 = vsel %vm108, %v3618, 0
  %v3693 = vsel %vm108, %v3619, 0
  %v3696 = vsel %vm108, %v3620, 0
  %v3699 = vsel %vm108, %v3621, 0
  %v3702 = vsel %vm108, %v3622, 0
  %v3705 = vsel %vm108, %v3623, 0
  %v3708 = vsel %vm108, %v3624, 0
  %v3711 = vsel %vm108, %v3625, 0
  %v3714 = vsel %vm108, %v3626, 0
  %v3717 = vsel %vm108, %v3627, 0
  %v3720 = vsel %vm108, %v3628, 0
  %v3723 = vsel %vm108, %v3629, 0
  %v3726 = vsel %vm108, %v3630, 0
  %v3729 = vsel %vm108, %v3631, 0
  %v3732 = vsel %vm108, %v3632, 0
  %v3735 = vsel %vm108, %v3633, 0
  %v3738 = vsel %vm108, %v3634, 0
  %v3741 = vsel %vm108, %v3635, 0
  %v3744 = vsel %vm108, %v3636, 0
  %v3747 = vsel %vm108, %v3637, 0
  %v3750 = vsel %vm108, %v3638, 0
  %v3753 = vsel %vm108, %v3639, 0
  %v3756 = vsel %vm108, %v3640, 0
  %v3759 = vsel %vm108, %v3641, 0
  %v3762 = vsel %vm108, %v3642, 0
  %v3765 = vsel %vm108, %v3643, 0
  %v3768 = vsel %vm108, %v3644, 0
  %v3771 = vsel %vm108, %v3645, 0
  %v3774 = vsel %vm108, %v3646, 0
  %v3777 = vsel %vm108, %v3647, 0
  %v3780 = vsel %vm108, %v3648, 0
  %v3783 = vsel %vm108, %v3649, 0
  %v3786 = vsel %vm108, %v3650, 0
  %v3789 = vsel %vm108, %v3651, 0
  %v3792 = vsel %vm108, %v3652, 0
  %v3795 = vsel %vm108, %v3653, 0
  %v3798 = vsel %vm108, %v3654, 0
  %v3801 = vsel %vm108, %v3655, 0
  %v3804 = vsel %vm108, %v3656, 0
  %v3807 = vsel %vm108, %v3657, 0
  %v3810 = vsel %vm108, %v3658, 0
  %v3813 = vsel %vm108, %v3659, 0
  %v3816 = vsel %vm108, %v3660, 0
  %v3819 = vsel %vm108, %v3661, 0
  %v3822 = vsel %vm108, %v3662, 0
  %v3825 = vsel %vm108, %v3663, 0
  %v3828 = vsel %vm108, %v3664, 0
  %v3831 = vsel %vm108, %v3665, 0
  %v3834 = vsel %vm108, %v3666, 0
  %v3837 = vsel %vm108, %v3667, 0
  %v3840 = vsel %vm108, %v3668, 0
  %v3843 = vsel %vm108, %v3669, 0
  %v3846 = vsel %vm108, %v3670, 0
  %v3849 = vsel %vm108, %v3671, 0
  %v3852 = vsel %vm108, %v3672, 0
  %v3855 = vsel %vm108, %v3673, 0
  %v3858 = vsel %vm108, %v3674, 0
  %v3861 = vsel %vm108, %v3675, 0
  %v3864 = vsel %vm108, %v3676, 0
  %v3867 = vsel %vm108, %v3677, 0
  %v3870 = vsel %vm108, %v3678, 0
  %v3873 = vsel %vm108, %v3679, 0
  %3875 = vmatprep.subr.mxu0 0.0
  %3876 = vmatpush1.msra.mxu0 0.0
  %3877 = vmatprep.subr.mxu0 0.0
  %3878 = vmatpush1.msra.mxu0 0.0
  %3879 = vmatprep.subr.mxu0 0.0
  %3880 = vmatpush1.msra.mxu0 0.0
  %3881 = vmatprep.subr.mxu0 0.0
  %3882 = vmatpush1.msra.mxu0 0.0
  %3883 = vmatprep.subr.mxu0 0.0
  %3884 = vmatpush1.msra.mxu0 0.0
  %3885 = vmatprep.subr.mxu0 0.0
  %3886 = vmatpush1.msra.mxu0 0.0
  %3887 = vmatprep.subr.mxu0 0.0
  %3888 = vmatpush1.msra.mxu0 0.0
  %3889 = vmatprep.subr.mxu0 0.0
  %3890 = vmatpush1.msra.mxu0 0.0
  %3891 = vmatprep.subr.mxu0 0.0
  %3892 = vmatpush1.msra.mxu0 0.0
  %3893 = vmatprep.subr.mxu0 0.0
  %3894 = vmatpush1.msra.mxu0 0.0
  %3895 = vmatprep.subr.mxu0 0.0
  %3896 = vmatpush1.msra.mxu0 0.0
  %3897 = vmatprep.subr.mxu0 0.0
  %3898 = vmatpush1.msra.mxu0 0.0
  %3899 = vmatprep.subr.mxu0 0.0
  %3900 = vmatpush1.msra.mxu0 0.0
  %3901 = vmatprep.subr.mxu0 0.0
  %3902 = vmatpush1.msra.mxu0 0.0
  %3903 = vmatprep.subr.mxu0 0.0
  %3904 = vmatpush1.msra.mxu0 %v3682
  %3905 = vmatprep.subr.mxu0 0.0
  %3906 = vmatpush1.msra.mxu0 %v3681
  %3907 = vmatprep.subr.mxu0 0.0
  %3908 = vmatpush2.msra.mxu0 0.0
  %3909 = vmatprep.subr.mxu0 0.0
  %3910 = vmatpush2.msra.mxu0 0.0
  %3911 = vmatprep.subr.mxu0 0.0
  %3912 = vmatpush2.msra.mxu0 0.0
  %3913 = vmatprep.subr.mxu0 0.0
  %3914 = vmatpush2.msra.mxu0 0.0
  %3915 = vmatprep.subr.mxu0 0.0
  %3916 = vmatpush2.msra.mxu0 0.0
  %3917 = vmatprep.subr.mxu0 0.0
  %3918 = vmatpush2.msra.mxu0 0.0
  %3919 = vmatprep.subr.mxu0 0.0
  %3920 = vmatpush2.msra.mxu0 0.0
  %3921 = vmatprep.subr.mxu0 0.0
  %3922 = vmatpush2.msra.mxu0 0.0
  %3923 = vmatprep.subr.mxu0 0.0
  %3924 = vmatpush2.msra.mxu0 0.0
  %3925 = vmatprep.subr.mxu0 0.0
  %3926 = vmatpush2.msra.mxu0 0.0
  %3927 = vmatprep.subr.mxu0 0.0
  %3928 = vmatpush2.msra.mxu0 0.0
  %3929 = vmatprep.subr.mxu0 0.0
  %3930 = vmatpush2.msra.mxu0 0.0
  %3931 = vmatprep.subr.mxu0 0.0
  %3932 = vmatpush2.msra.mxu0 0.0
  %3933 = vmatprep.subr.mxu0 0.0
  %3934 = vmatpush2.msra.mxu0 0.0
  %3935 = vmatprep.subr.mxu0 0.0
  %3936 = vmatpush2.msra.mxu0 0.0
  %3937 = vmatprep.subr.mxu0 0.0
  %3938 = vmatpush2.msra.mxu0 0.0
  %3939 = vmatprep.mubr.f32.mxu0 0.0
  %3940 = vmatmul.mubr.f32.gmra.mxu0 %v3684
  %v3941 = vpop.f32.mrf.mxu0
  %v3942 = vadd.f32 0.0, %v3941
  %v3943 = vpop.f32.mrf.mxu0
  %3944 = vmatprep.mubr.f32.mxu0 0.0
  %3945 = vmatmul.mubr.f32.gmra.mxu0 %v3687
  %v3946 = vpop.f32.mrf.mxu0
  %v3947 = vadd.f32 0.0, %v3946
  %v3948 = vpop.f32.mrf.mxu0
  %3949 = vmatprep.mubr.f32.mxu0 0.0
  %3950 = vmatmul.mubr.f32.gmra.mxu0 %v3690
  %v3951 = vpop.f32.mrf.mxu0
  %v3952 = vadd.f32 0.0, %v3951
  %v3953 = vpop.f32.mrf.mxu0
  %3954 = vmatprep.mubr.f32.mxu0 0.0
  %3955 = vmatmul.mubr.f32.gmra.mxu0 %v3693
  %v3956 = vpop.f32.mrf.mxu0
  %v3957 = vadd.f32 0.0, %v3956
  %v3958 = vpop.f32.mrf.mxu0
  %3959 = vmatprep.mubr.f32.mxu0 0.0
  %3960 = vmatmul.mubr.f32.gmra.mxu0 %v3696
  %v3961 = vpop.f32.mrf.mxu0
  %v3962 = vadd.f32 0.0, %v3961
  %v3963 = vpop.f32.mrf.mxu0
  %3964 = vmatprep.mubr.f32.mxu0 0.0
  %3965 = vmatmul.mubr.f32.gmra.mxu0 %v3699
  %v3966 = vpop.f32.mrf.mxu0
  %v3967 = vadd.f32 0.0, %v3966
  %v3968 = vpop.f32.mrf.mxu0
  %3969 = vmatprep.mubr.f32.mxu0 0.0
  %3970 = vmatmul.mubr.f32.gmra.mxu0 %v3702
  %v3971 = vpop.f32.mrf.mxu0
  %v3972 = vadd.f32 0.0, %v3971
  %v3973 = vpop.f32.mrf.mxu0
  %3974 = vmatprep.mubr.f32.mxu0 0.0
  %3975 = vmatmul.mubr.f32.gmra.mxu0 %v3705
  %v3976 = vpop.f32.mrf.mxu0
  %v3977 = vadd.f32 0.0, %v3976
  %v3978 = vpop.f32.mrf.mxu0
  %3979 = vmatprep.mubr.f32.mxu0 0.0
  %3980 = vmatmul.mubr.f32.gmra.mxu0 %v3708
  %v3981 = vpop.f32.mrf.mxu0
  %v3982 = vadd.f32 0.0, %v3981
  %v3983 = vpop.f32.mrf.mxu0
  %3984 = vmatprep.mubr.f32.mxu0 0.0
  %3985 = vmatmul.mubr.f32.gmra.mxu0 %v3711
  %v3986 = vpop.f32.mrf.mxu0
  %v3987 = vadd.f32 0.0, %v3986
  %v3988 = vpop.f32.mrf.mxu0
  %3989 = vmatprep.mubr.f32.mxu0 0.0
  %3990 = vmatmul.mubr.f32.gmra.mxu0 %v3714
  %v3991 = vpop.f32.mrf.mxu0
  %v3992 = vadd.f32 0.0, %v3991
  %v3993 = vpop.f32.mrf.mxu0
  %3994 = vmatprep.mubr.f32.mxu0 0.0
  %3995 = vmatmul.mubr.f32.gmra.mxu0 %v3717
  %v3996 = vpop.f32.mrf.mxu0
  %v3997 = vadd.f32 0.0, %v3996
  %v3998 = vpop.f32.mrf.mxu0
  %3999 = vmatprep.mubr.f32.mxu0 0.0
  %4000 = vmatmul.mubr.f32.gmra.mxu0 %v3720
  %v4001 = vpop.f32.mrf.mxu0
  %v4002 = vadd.f32 0.0, %v4001
  %v4003 = vpop.f32.mrf.mxu0
  %4004 = vmatprep.mubr.f32.mxu0 0.0
  %4005 = vmatmul.mubr.f32.gmra.mxu0 %v3723
  %v4006 = vpop.f32.mrf.mxu0
  %v4007 = vadd.f32 0.0, %v4006
  %v4008 = vpop.f32.mrf.mxu0
  %4009 = vmatprep.mubr.f32.mxu0 0.0
  %4010 = vmatmul.mubr.f32.gmra.mxu0 %v3726
  %v4011 = vpop.f32.mrf.mxu0
  %v4012 = vadd.f32 0.0, %v4011
  %v4013 = vpop.f32.mrf.mxu0
  %4014 = vmatprep.mubr.f32.mxu0 0.0
  %4015 = vmatmul.mubr.f32.gmra.mxu0 %v3729
  %v4016 = vpop.f32.mrf.mxu0
  %v4017 = vadd.f32 0.0, %v4016
  %v4018 = vpop.f32.mrf.mxu0
  %4019 = vmatprep.mubr.f32.mxu0 0.0
  %4020 = vmatmul.mubr.f32.gmra.mxu0 %v3732
  %v4021 = vpop.f32.mrf.mxu0
  %v4022 = vadd.f32 0.0, %v4021
  %v4023 = vpop.f32.mrf.mxu0
  %4024 = vmatprep.mubr.f32.mxu0 0.0
  %4025 = vmatmul.mubr.f32.gmra.mxu0 %v3735
  %v4026 = vpop.f32.mrf.mxu0
  %v4027 = vadd.f32 0.0, %v4026
  %v4028 = vpop.f32.mrf.mxu0
  %4029 = vmatprep.mubr.f32.mxu0 0.0
  %4030 = vmatmul.mubr.f32.gmra.mxu0 %v3738
  %v4031 = vpop.f32.mrf.mxu0
  %v4032 = vadd.f32 0.0, %v4031
  %v4033 = vpop.f32.mrf.mxu0
  %4034 = vmatprep.mubr.f32.mxu0 0.0
  %4035 = vmatmul.mubr.f32.gmra.mxu0 %v3741
  %v4036 = vpop.f32.mrf.mxu0
  %v4037 = vadd.f32 0.0, %v4036
  %v4038 = vpop.f32.mrf.mxu0
  %4039 = vmatprep.mubr.f32.mxu0 0.0
  %4040 = vmatmul.mubr.f32.gmra.mxu0 %v3744
  %v4041 = vpop.f32.mrf.mxu0
  %v4042 = vadd.f32 0.0, %v4041
  %v4043 = vpop.f32.mrf.mxu0
  %4044 = vmatprep.mubr.f32.mxu0 0.0
  %4045 = vmatmul.mubr.f32.gmra.mxu0 %v3747
  %v4046 = vpop.f32.mrf.mxu0
  %v4047 = vadd.f32 0.0, %v4046
  %v4048 = vpop.f32.mrf.mxu0
  %4049 = vmatprep.mubr.f32.mxu0 0.0
  %4050 = vmatmul.mubr.f32.gmra.mxu0 %v3750
  %v4051 = vpop.f32.mrf.mxu0
  %v4052 = vadd.f32 0.0, %v4051
  %v4053 = vpop.f32.mrf.mxu0
  %4054 = vmatprep.mubr.f32.mxu0 0.0
  %4055 = vmatmul.mubr.f32.gmra.mxu0 %v3753
  %v4056 = vpop.f32.mrf.mxu0
  %v4057 = vadd.f32 0.0, %v4056
  %v4058 = vpop.f32.mrf.mxu0
  %4059 = vmatprep.mubr.f32.mxu0 0.0
  %4060 = vmatmul.mubr.f32.gmra.mxu0 %v3756
  %v4061 = vpop.f32.mrf.mxu0
  %v4062 = vadd.f32 0.0, %v4061
  %v4063 = vpop.f32.mrf.mxu0
  %4064 = vmatprep.mubr.f32.mxu0 0.0
  %4065 = vmatmul.mubr.f32.gmra.mxu0 %v3759
  %v4066 = vpop.f32.mrf.mxu0
  %v4067 = vadd.f32 0.0, %v4066
  %v4068 = vpop.f32.mrf.mxu0
  %4069 = vmatprep.mubr.f32.mxu0 0.0
  %4070 = vmatmul.mubr.f32.gmra.mxu0 %v3762
  %v4071 = vpop.f32.mrf.mxu0
  %v4072 = vadd.f32 0.0, %v4071
  %v4073 = vpop.f32.mrf.mxu0
  %4074 = vmatprep.mubr.f32.mxu0 0.0
  %4075 = vmatmul.mubr.f32.gmra.mxu0 %v3765
  %v4076 = vpop.f32.mrf.mxu0
  %v4077 = vadd.f32 0.0, %v4076
  %v4078 = vpop.f32.mrf.mxu0
  %4079 = vmatprep.mubr.f32.mxu0 0.0
  %4080 = vmatmul.mubr.f32.gmra.mxu0 %v3768
  %v4081 = vpop.f32.mrf.mxu0
  %v4082 = vadd.f32 0.0, %v4081
  %v4083 = vpop.f32.mrf.mxu0
  %4084 = vmatprep.mubr.f32.mxu0 0.0
  %4085 = vmatmul.mubr.f32.gmra.mxu0 %v3771
  %v4086 = vpop.f32.mrf.mxu0
  %v4087 = vadd.f32 0.0, %v4086
  %v4088 = vpop.f32.mrf.mxu0
  %4089 = vmatprep.mubr.f32.mxu0 0.0
  %4090 = vmatmul.mubr.f32.gmra.mxu0 %v3774
  %v4091 = vpop.f32.mrf.mxu0
  %v4092 = vadd.f32 0.0, %v4091
  %v4093 = vpop.f32.mrf.mxu0
  %4094 = vmatprep.mubr.f32.mxu0 0.0
  %4095 = vmatmul.mubr.f32.gmra.mxu0 %v3777
  %v4096 = vpop.f32.mrf.mxu0
  %v4097 = vadd.f32 0.0, %v4096
  %v4098 = vpop.f32.mrf.mxu0
  %4099 = vmatprep.mubr.f32.mxu0 0.0
  %4100 = vmatmul.mubr.f32.gmra.mxu0 %v3780
  %v4101 = vpop.f32.mrf.mxu0
  %v4102 = vadd.f32 0.0, %v4101
  %v4103 = vpop.f32.mrf.mxu0
  %4104 = vmatprep.mubr.f32.mxu0 0.0
  %4105 = vmatmul.mubr.f32.gmra.mxu0 %v3783
  %v4106 = vpop.f32.mrf.mxu0
  %v4107 = vadd.f32 0.0, %v4106
  %v4108 = vpop.f32.mrf.mxu0
  %4109 = vmatprep.mubr.f32.mxu0 0.0
  %4110 = vmatmul.mubr.f32.gmra.mxu0 %v3786
  %v4111 = vpop.f32.mrf.mxu0
  %v4112 = vadd.f32 0.0, %v4111
  %v4113 = vpop.f32.mrf.mxu0
  %4114 = vmatprep.mubr.f32.mxu0 0.0
  %4115 = vmatmul.mubr.f32.gmra.mxu0 %v3789
  %v4116 = vpop.f32.mrf.mxu0
  %v4117 = vadd.f32 0.0, %v4116
  %v4118 = vpop.f32.mrf.mxu0
  %4119 = vmatprep.mubr.f32.mxu0 0.0
  %4120 = vmatmul.mubr.f32.gmra.mxu0 %v3792
  %v4121 = vpop.f32.mrf.mxu0
  %v4122 = vadd.f32 0.0, %v4121
  %v4123 = vpop.f32.mrf.mxu0
  %4124 = vmatprep.mubr.f32.mxu0 0.0
  %4125 = vmatmul.mubr.f32.gmra.mxu0 %v3795
  %v4126 = vpop.f32.mrf.mxu0
  %v4127 = vadd.f32 0.0, %v4126
  %v4128 = vpop.f32.mrf.mxu0
  %4129 = vmatprep.mubr.f32.mxu0 0.0
  %4130 = vmatmul.mubr.f32.gmra.mxu0 %v3798
  %v4131 = vpop.f32.mrf.mxu0
  %v4132 = vadd.f32 0.0, %v4131
  %v4133 = vpop.f32.mrf.mxu0
  %4134 = vmatprep.mubr.f32.mxu0 0.0
  %4135 = vmatmul.mubr.f32.gmra.mxu0 %v3801
  %v4136 = vpop.f32.mrf.mxu0
  %v4137 = vadd.f32 0.0, %v4136
  %v4138 = vpop.f32.mrf.mxu0
  %4139 = vmatprep.mubr.f32.mxu0 0.0
  %4140 = vmatmul.mubr.f32.gmra.mxu0 %v3804
  %v4141 = vpop.f32.mrf.mxu0
  %v4142 = vadd.f32 0.0, %v4141
  %v4143 = vpop.f32.mrf.mxu0
  %4144 = vmatprep.mubr.f32.mxu0 0.0
  %4145 = vmatmul.mubr.f32.gmra.mxu0 %v3807
  %v4146 = vpop.f32.mrf.mxu0
  %v4147 = vadd.f32 0.0, %v4146
  %v4148 = vpop.f32.mrf.mxu0
  %4149 = vmatprep.mubr.f32.mxu0 0.0
  %4150 = vmatmul.mubr.f32.gmra.mxu0 %v3810
  %v4151 = vpop.f32.mrf.mxu0
  %v4152 = vadd.f32 0.0, %v4151
  %v4153 = vpop.f32.mrf.mxu0
  %4154 = vmatprep.mubr.f32.mxu0 0.0
  %4155 = vmatmul.mubr.f32.gmra.mxu0 %v3813
  %v4156 = vpop.f32.mrf.mxu0
  %v4157 = vadd.f32 0.0, %v4156
  %v4158 = vpop.f32.mrf.mxu0
  %4159 = vmatprep.mubr.f32.mxu0 0.0
  %4160 = vmatmul.mubr.f32.gmra.mxu0 %v3816
  %v4161 = vpop.f32.mrf.mxu0
  %v4162 = vadd.f32 0.0, %v4161
  %v4163 = vpop.f32.mrf.mxu0
  %4164 = vmatprep.mubr.f32.mxu0 0.0
  %4165 = vmatmul.mubr.f32.gmra.mxu0 %v3819
  %v4166 = vpop.f32.mrf.mxu0
  %v4167 = vadd.f32 0.0, %v4166
  %v4168 = vpop.f32.mrf.mxu0
  %4169 = vmatprep.mubr.f32.mxu0 0.0
  %4170 = vmatmul.mubr.f32.gmra.mxu0 %v3822
  %v4171 = vpop.f32.mrf.mxu0
  %v4172 = vadd.f32 0.0, %v4171
  %v4173 = vpop.f32.mrf.mxu0
  %4174 = vmatprep.mubr.f32.mxu0 0.0
  %4175 = vmatmul.mubr.f32.gmra.mxu0 %v3825
  %v4176 = vpop.f32.mrf.mxu0
  %v4177 = vadd.f32 0.0, %v4176
  %v4178 = vpop.f32.mrf.mxu0
  %4179 = vmatprep.mubr.f32.mxu0 0.0
  %4180 = vmatmul.mubr.f32.gmra.mxu0 %v3828
  %v4181 = vpop.f32.mrf.mxu0
  %v4182 = vadd.f32 0.0, %v4181
  %v4183 = vpop.f32.mrf.mxu0
  %4184 = vmatprep.mubr.f32.mxu0 0.0
  %4185 = vmatmul.mubr.f32.gmra.mxu0 %v3831
  %v4186 = vpop.f32.mrf.mxu0
  %v4187 = vadd.f32 0.0, %v4186
  %v4188 = vpop.f32.mrf.mxu0
  %4189 = vmatprep.mubr.f32.mxu0 0.0
  %4190 = vmatmul.mubr.f32.gmra.mxu0 %v3834
  %v4191 = vpop.f32.mrf.mxu0
  %v4192 = vadd.f32 0.0, %v4191
  %v4193 = vpop.f32.mrf.mxu0
  %4194 = vmatprep.mubr.f32.mxu0 0.0
  %4195 = vmatmul.mubr.f32.gmra.mxu0 %v3837
  %v4196 = vpop.f32.mrf.mxu0
  %v4197 = vadd.f32 0.0, %v4196
  %v4198 = vpop.f32.mrf.mxu0
  %4199 = vmatprep.mubr.f32.mxu0 0.0
  %4200 = vmatmul.mubr.f32.gmra.mxu0 %v3840
  %v4201 = vpop.f32.mrf.mxu0
  %v4202 = vadd.f32 0.0, %v4201
  %v4203 = vpop.f32.mrf.mxu0
  %4204 = vmatprep.mubr.f32.mxu0 0.0
  %4205 = vmatmul.mubr.f32.gmra.mxu0 %v3843
  %v4206 = vpop.f32.mrf.mxu0
  %v4207 = vadd.f32 0.0, %v4206
  %v4208 = vpop.f32.mrf.mxu0
  %4209 = vmatprep.mubr.f32.mxu0 0.0
  %4210 = vmatmul.mubr.f32.gmra.mxu0 %v3846
  %v4211 = vpop.f32.mrf.mxu0
  %v4212 = vadd.f32 0.0, %v4211
  %v4213 = vpop.f32.mrf.mxu0
  %4214 = vmatprep.mubr.f32.mxu0 0.0
  %4215 = vmatmul.mubr.f32.gmra.mxu0 %v3849
  %v4216 = vpop.f32.mrf.mxu0
  %v4217 = vadd.f32 0.0, %v4216
  %v4218 = vpop.f32.mrf.mxu0
  %4219 = vmatprep.mubr.f32.mxu0 0.0
  %4220 = vmatmul.mubr.f32.gmra.mxu0 %v3852
  %v4221 = vpop.f32.mrf.mxu0
  %v4222 = vadd.f32 0.0, %v4221
  %v4223 = vpop.f32.mrf.mxu0
  %4224 = vmatprep.mubr.f32.mxu0 0.0
  %4225 = vmatmul.mubr.f32.gmra.mxu0 %v3855
  %v4226 = vpop.f32.mrf.mxu0
  %v4227 = vadd.f32 0.0, %v4226
  %v4228 = vpop.f32.mrf.mxu0
  %4229 = vmatprep.mubr.f32.mxu0 0.0
  %4230 = vmatmul.mubr.f32.gmra.mxu0 %v3858
  %v4231 = vpop.f32.mrf.mxu0
  %v4232 = vadd.f32 0.0, %v4231
  %v4233 = vpop.f32.mrf.mxu0
  %4234 = vmatprep.mubr.f32.mxu0 0.0
  %4235 = vmatmul.mubr.f32.gmra.mxu0 %v3861
  %v4236 = vpop.f32.mrf.mxu0
  %v4237 = vadd.f32 0.0, %v4236
  %v4238 = vpop.f32.mrf.mxu0
  %4239 = vmatprep.mubr.f32.mxu0 0.0
  %4240 = vmatmul.mubr.f32.gmra.mxu0 %v3864
  %v4241 = vpop.f32.mrf.mxu0
  %v4242 = vadd.f32 0.0, %v4241
  %v4243 = vpop.f32.mrf.mxu0
  %4244 = vmatprep.mubr.f32.mxu0 0.0
  %4245 = vmatmul.mubr.f32.gmra.mxu0 %v3867
  %v4246 = vpop.f32.mrf.mxu0
  %v4247 = vadd.f32 0.0, %v4246
  %v4248 = vpop.f32.mrf.mxu0
  %4249 = vmatprep.mubr.f32.mxu0 0.0
  %4250 = vmatmul.mubr.f32.gmra.mxu0 %v3870
  %v4251 = vpop.f32.mrf.mxu0
  %v4252 = vadd.f32 0.0, %v4251
  %v4253 = vpop.f32.mrf.mxu0
  %4254 = vmatprep.mubr.f32.mxu0 0.0
  %4255 = vmatmul.mubr.f32.gmra.mxu0 %v3873
  %v4256 = vpop.f32.mrf.mxu0
  %v4257 = vadd.f32 0.0, %v4256
  %v4258 = vpop.f32.mrf.mxu0
  %4259 = vdwg.mxu0
  %v4260 = vadd.f32 %v3552, %v3942
  %v4261 = vadd.f32 %v3553, %v3947
  %v4262 = vadd.f32 %v3554, %v3952
  %v4263 = vadd.f32 %v3555, %v3957
  %v4264 = vadd.f32 %v3556, %v3962
  %v4265 = vadd.f32 %v3557, %v3967
  %v4266 = vadd.f32 %v3558, %v3972
  %v4267 = vadd.f32 %v3559, %v3977
  %v4268 = vadd.f32 %v3560, %v3982
  %v4269 = vadd.f32 %v3561, %v3987
  %v4270 = vadd.f32 %v3562, %v3992
  %v4271 = vadd.f32 %v3563, %v3997
  %v4272 = vadd.f32 %v3564, %v4002
  %v4273 = vadd.f32 %v3565, %v4007
  %v4274 = vadd.f32 %v3566, %v4012
  %v4275 = vadd.f32 %v3567, %v4017
  %v4276 = vadd.f32 %v3568, %v4022
  %v4277 = vadd.f32 %v3569, %v4027
  %v4278 = vadd.f32 %v3570, %v4032
  %v4279 = vadd.f32 %v3571, %v4037
  %v4280 = vadd.f32 %v3572, %v4042
  %v4281 = vadd.f32 %v3573, %v4047
  %v4282 = vadd.f32 %v3574, %v4052
  %v4283 = vadd.f32 %v3575, %v4057
  %v4284 = vadd.f32 %v3576, %v4062
  %v4285 = vadd.f32 %v3577, %v4067
  %v4286 = vadd.f32 %v3578, %v4072
  %v4287 = vadd.f32 %v3579, %v4077
  %v4288 = vadd.f32 %v3580, %v4082
  %v4289 = vadd.f32 %v3581, %v4087
  %v4290 = vadd.f32 %v3582, %v4092
  %v4291 = vadd.f32 %v3583, %v4097
  %v4292 = vadd.f32 %v3584, %v4102
  %v4293 = vadd.f32 %v3585, %v4107
  %v4294 = vadd.f32 %v3586, %v4112
  %v4295 = vadd.f32 %v3587, %v4117
  %v4296 = vadd.f32 %v3588, %v4122
  %v4297 = vadd.f32 %v3589, %v4127
  %v4298 = vadd.f32 %v3590, %v4132
  %v4299 = vadd.f32 %v3591, %v4137
  %v4300 = vadd.f32 %v3592, %v4142
  %v4301 = vadd.f32 %v3593, %v4147
  %v4302 = vadd.f32 %v3594, %v4152
  %v4303 = vadd.f32 %v3595, %v4157
  %v4304 = vadd.f32 %v3596, %v4162
  %v4305 = vadd.f32 %v3597, %v4167
  %v4306 = vadd.f32 %v3598, %v4172
  %v4307 = vadd.f32 %v3599, %v4177
  %v4308 = vadd.f32 %v3600, %v4182
  %v4309 = vadd.f32 %v3601, %v4187
  %v4310 = vadd.f32 %v3602, %v4192
  %v4311 = vadd.f32 %v3603, %v4197
  %v4312 = vadd.f32 %v3604, %v4202
  %v4313 = vadd.f32 %v3605, %v4207
  %v4314 = vadd.f32 %v3606, %v4212
  %v4315 = vadd.f32 %v3607, %v4217
  %v4316 = vadd.f32 %v3608, %v4222
  %v4317 = vadd.f32 %v3609, %v4227
  %v4318 = vadd.f32 %v3610, %v4232
  %v4319 = vadd.f32 %v3611, %v4237
  %v4320 = vadd.f32 %v3612, %v4242
  %v4321 = vadd.f32 %v3613, %v4247
  %v4322 = vadd.f32 %v3614, %v4252
  %v4323 = vadd.f32 %v3615, %v4257
  %v4324 = vld [vmem:[#allocation2 + $0x1a] sm:$0xff]
  %v4325 = vld [vmem:[#allocation2 + $0x22] sm:$0xff]
  %v4326 = vld [vmem:[#allocation2 + $0x2a] sm:$0xff]
  %v4327 = vld [vmem:[#allocation2 + $0x32] sm:$0xff]
  %v4328 = vld [vmem:[#allocation2 + $0x3a] sm:$0xff]
  %v4329 = vld [vmem:[#allocation2 + $0x42] sm:$0xff]
  %v4330 = vld [vmem:[#allocation2 + $0x4a] sm:$0xff]
  %v4331 = vld [vmem:[#allocation2 + $0x52] sm:$0xff]
  %v4332 = vld [vmem:[#allocation2 + $0x5a] sm:$0xff]
  %v4333 = vld [vmem:[#allocation2 + $0x62] sm:$0xff]
  %v4334 = vld [vmem:[#allocation2 + $0x6a] sm:$0xff]
  %v4335 = vld [vmem:[#allocation2 + $0x72] sm:$0xff]
  %v4336 = vld [vmem:[#allocation2 + $0x7a] sm:$0xff]
  %v4337 = vld [vmem:[#allocation2 + $0x82] sm:$0xff]
  %v4338 = vld [vmem:[#allocation2 + $0x8a] sm:$0xff]
  %v4339 = vld [vmem:[#allocation2 + $0x92] sm:$0xff]
  %v4340 = vld [vmem:[#allocation2 + $0x9a] sm:$0xff]
  %v4341 = vld [vmem:[#allocation2 + $0xa2] sm:$0xff]
  %v4342 = vld [vmem:[#allocation2 + $0xaa] sm:$0xff]
  %v4343 = vld [vmem:[#allocation2 + $0xb2] sm:$0xff]
  %v4344 = vld [vmem:[#allocation2 + $0xba] sm:$0xff]
  %v4345 = vld [vmem:[#allocation2 + $0xc2] sm:$0xff]
  %v4346 = vld [vmem:[#allocation2 + $0xca] sm:$0xff]
  %v4347 = vld [vmem:[#allocation2 + $0xd2] sm:$0xff]
  %v4348 = vld [vmem:[#allocation2 + $0xda] sm:$0xff]
  %v4349 = vld [vmem:[#allocation2 + $0xe2] sm:$0xff]
  %v4350 = vld [vmem:[#allocation2 + $0xea] sm:$0xff]
  %v4351 = vld [vmem:[#allocation2 + $0xf2] sm:$0xff]
  %v4352 = vld [vmem:[#allocation2 + $0xfa] sm:$0xff]
  %v4353 = vld [vmem:[#allocation2 + $0x102] sm:$0xff]
  %v4354 = vld [vmem:[#allocation2 + $0x10a] sm:$0xff]
  %v4355 = vld [vmem:[#allocation2 + $0x112] sm:$0xff]
  %v4356 = vld [vmem:[#allocation2 + $0x11a] sm:$0xff]
  %v4357 = vld [vmem:[#allocation2 + $0x122] sm:$0xff]
  %v4358 = vld [vmem:[#allocation2 + $0x12a] sm:$0xff]
  %v4359 = vld [vmem:[#allocation2 + $0x132] sm:$0xff]
  %v4360 = vld [vmem:[#allocation2 + $0x13a] sm:$0xff]
  %v4361 = vld [vmem:[#allocation2 + $0x142] sm:$0xff]
  %v4362 = vld [vmem:[#allocation2 + $0x14a] sm:$0xff]
  %v4363 = vld [vmem:[#allocation2 + $0x152] sm:$0xff]
  %v4364 = vld [vmem:[#allocation2 + $0x15a] sm:$0xff]
  %v4365 = vld [vmem:[#allocation2 + $0x162] sm:$0xff]
  %v4366 = vld [vmem:[#allocation2 + $0x16a] sm:$0xff]
  %v4367 = vld [vmem:[#allocation2 + $0x172] sm:$0xff]
  %v4368 = vld [vmem:[#allocation2 + $0x17a] sm:$0xff]
  %v4369 = vld [vmem:[#allocation2 + $0x182] sm:$0xff]
  %v4370 = vld [vmem:[#allocation2 + $0x18a] sm:$0xff]
  %v4371 = vld [vmem:[#allocation2 + $0x192] sm:$0xff]
  %v4372 = vld [vmem:[#allocation2 + $0x19a] sm:$0xff]
  %v4373 = vld [vmem:[#allocation2 + $0x1a2] sm:$0xff]
  %v4374 = vld [vmem:[#allocation2 + $0x1aa] sm:$0xff]
  %v4375 = vld [vmem:[#allocation2 + $0x1b2] sm:$0xff]
  %v4376 = vld [vmem:[#allocation2 + $0x1ba] sm:$0xff]
  %v4377 = vld [vmem:[#allocation2 + $0x1c2] sm:$0xff]
  %v4378 = vld [vmem:[#allocation2 + $0x1ca] sm:$0xff]
  %v4379 = vld [vmem:[#allocation2 + $0x1d2] sm:$0xff]
  %v4380 = vld [vmem:[#allocation2 + $0x1da] sm:$0xff]
  %v4381 = vld [vmem:[#allocation2 + $0x1e2] sm:$0xff]
  %v4382 = vld [vmem:[#allocation2 + $0x1ea] sm:$0xff]
  %v4383 = vld [vmem:[#allocation2 + $0x1f2] sm:$0xff]
  %v4384 = vld [vmem:[#allocation2 + $0x1fa] sm:$0xff]
  %v4385 = vld [vmem:[#allocation2 + $0x202] sm:$0xff]
  %v4386 = vld [vmem:[#allocation2 + $0x20a] sm:$0xff]
  %v4387 = vld [vmem:[#allocation2 + $0x212] sm:$0xff]
  %s4388 = scalar_lea.vmem %s2, 96
  %v4389 = vld [vmem:[%s4388] sm:$0xff]
  %v4390 = vld [vmem:[%s4388 + $0x8] sm:$0xff]
  %v4392 = vsel %vm108, %v4324, 0
  %v4395 = vsel %vm108, %v4325, 0
  %v4398 = vsel %vm108, %v4326, 0
  %v4401 = vsel %vm108, %v4327, 0
  %v4404 = vsel %vm108, %v4328, 0
  %v4407 = vsel %vm108, %v4329, 0
  %v4410 = vsel %vm108, %v4330, 0
  %v4413 = vsel %vm108, %v4331, 0
  %v4416 = vsel %vm108, %v4332, 0
  %v4419 = vsel %vm108, %v4333, 0
  %v4422 = vsel %vm108, %v4334, 0
  %v4425 = vsel %vm108, %v4335, 0
  %v4428 = vsel %vm108, %v4336, 0
  %v4431 = vsel %vm108, %v4337, 0
  %v4434 = vsel %vm108, %v4338, 0
  %v4437 = vsel %vm108, %v4339, 0
  %v4440 = vsel %vm108, %v4340, 0
  %v4443 = vsel %vm108, %v4341, 0
  %v4446 = vsel %vm108, %v4342, 0
  %v4449 = vsel %vm108, %v4343, 0
  %v4452 = vsel %vm108, %v4344, 0
  %v4455 = vsel %vm108, %v4345, 0
  %v4458 = vsel %vm108, %v4346, 0
  %v4461 = vsel %vm108, %v4347, 0
  %v4464 = vsel %vm108, %v4348, 0
  %v4467 = vsel %vm108, %v4349, 0
  %v4470 = vsel %vm108, %v4350, 0
  %v4473 = vsel %vm108, %v4351, 0
  %v4476 = vsel %vm108, %v4352, 0
  %v4479 = vsel %vm108, %v4353, 0
  %v4482 = vsel %vm108, %v4354, 0
  %v4485 = vsel %vm108, %v4355, 0
  %v4488 = vsel %vm108, %v4356, 0
  %v4491 = vsel %vm108, %v4357, 0
  %v4494 = vsel %vm108, %v4358, 0
  %v4497 = vsel %vm108, %v4359, 0
  %v4500 = vsel %vm108, %v4360, 0
  %v4503 = vsel %vm108, %v4361, 0
  %v4506 = vsel %vm108, %v4362, 0
  %v4509 = vsel %vm108, %v4363, 0
  %v4512 = vsel %vm108, %v4364, 0
  %v4515 = vsel %vm108, %v4365, 0
  %v4518 = vsel %vm108, %v4366, 0
  %v4521 = vsel %vm108, %v4367, 0
  %v4524 = vsel %vm108, %v4368, 0
  %v4527 = vsel %vm108, %v4369, 0
  %v4530 = vsel %vm108, %v4370, 0
  %v4533 = vsel %vm108, %v4371, 0
  %v4536 = vsel %vm108, %v4372, 0
  %v4539 = vsel %vm108, %v4373, 0
  %v4542 = vsel %vm108, %v4374, 0
  %v4545 = vsel %vm108, %v4375, 0
  %v4548 = vsel %vm108, %v4376, 0
  %v4551 = vsel %vm108, %v4377, 0
  %v4554 = vsel %vm108, %v4378, 0
  %v4557 = vsel %vm108, %v4379, 0
  %v4560 = vsel %vm108, %v4380, 0
  %v4563 = vsel %vm108, %v4381, 0
  %v4566 = vsel %vm108, %v4382, 0
  %v4569 = vsel %vm108, %v4383, 0
  %v4572 = vsel %vm108, %v4384, 0
  %v4575 = vsel %vm108, %v4385, 0
  %v4578 = vsel %vm108, %v4386, 0
  %v4581 = vsel %vm108, %v4387, 0
  %4583 = vmatprep.subr.mxu0 0.0
  %4584 = vmatpush1.msra.mxu0 0.0
  %4585 = vmatprep.subr.mxu0 0.0
  %4586 = vmatpush1.msra.mxu0 0.0
  %4587 = vmatprep.subr.mxu0 0.0
  %4588 = vmatpush1.msra.mxu0 0.0
  %4589 = vmatprep.subr.mxu0 0.0
  %4590 = vmatpush1.msra.mxu0 0.0
  %4591 = vmatprep.subr.mxu0 0.0
  %4592 = vmatpush1.msra.mxu0 0.0
  %4593 = vmatprep.subr.mxu0 0.0
  %4594 = vmatpush1.msra.mxu0 0.0
  %4595 = vmatprep.subr.mxu0 0.0
  %4596 = vmatpush1.msra.mxu0 0.0
  %4597 = vmatprep.subr.mxu0 0.0
  %4598 = vmatpush1.msra.mxu0 0.0
  %4599 = vmatprep.subr.mxu0 0.0
  %4600 = vmatpush1.msra.mxu0 0.0
  %4601 = vmatprep.subr.mxu0 0.0
  %4602 = vmatpush1.msra.mxu0 0.0
  %4603 = vmatprep.subr.mxu0 0.0
  %4604 = vmatpush1.msra.mxu0 0.0
  %4605 = vmatprep.subr.mxu0 0.0
  %4606 = vmatpush1.msra.mxu0 0.0
  %4607 = vmatprep.subr.mxu0 0.0
  %4608 = vmatpush1.msra.mxu0 0.0
  %4609 = vmatprep.subr.mxu0 0.0
  %4610 = vmatpush1.msra.mxu0 0.0
  %4611 = vmatprep.subr.mxu0 0.0
  %4612 = vmatpush1.msra.mxu0 %v4390
  %4613 = vmatprep.subr.mxu0 0.0
  %4614 = vmatpush1.msra.mxu0 %v4389
  %4615 = vmatprep.subr.mxu0 0.0
  %4616 = vmatpush2.msra.mxu0 0.0
  %4617 = vmatprep.subr.mxu0 0.0
  %4618 = vmatpush2.msra.mxu0 0.0
  %4619 = vmatprep.subr.mxu0 0.0
  %4620 = vmatpush2.msra.mxu0 0.0
  %4621 = vmatprep.subr.mxu0 0.0
  %4622 = vmatpush2.msra.mxu0 0.0
  %4623 = vmatprep.subr.mxu0 0.0
  %4624 = vmatpush2.msra.mxu0 0.0
  %4625 = vmatprep.subr.mxu0 0.0
  %4626 = vmatpush2.msra.mxu0 0.0
  %4627 = vmatprep.subr.mxu0 0.0
  %4628 = vmatpush2.msra.mxu0 0.0
  %4629 = vmatprep.subr.mxu0 0.0
  %4630 = vmatpush2.msra.mxu0 0.0
  %4631 = vmatprep.subr.mxu0 0.0
  %4632 = vmatpush2.msra.mxu0 0.0
  %4633 = vmatprep.subr.mxu0 0.0
  %4634 = vmatpush2.msra.mxu0 0.0
  %4635 = vmatprep.subr.mxu0 0.0
  %4636 = vmatpush2.msra.mxu0 0.0
  %4637 = vmatprep.subr.mxu0 0.0
  %4638 = vmatpush2.msra.mxu0 0.0
  %4639 = vmatprep.subr.mxu0 0.0
  %4640 = vmatpush2.msra.mxu0 0.0
  %4641 = vmatprep.subr.mxu0 0.0
  %4642 = vmatpush2.msra.mxu0 0.0
  %4643 = vmatprep.subr.mxu0 0.0
  %4644 = vmatpush2.msra.mxu0 0.0
  %4645 = vmatprep.subr.mxu0 0.0
  %4646 = vmatpush2.msra.mxu0 0.0
  %4647 = vmatprep.mubr.f32.mxu0 0.0
  %4648 = vmatmul.mubr.f32.gmra.mxu0 %v4392
  %v4649 = vpop.f32.mrf.mxu0
  %v4650 = vadd.f32 0.0, %v4649
  %v4651 = vpop.f32.mrf.mxu0
  %4652 = vmatprep.mubr.f32.mxu0 0.0
  %4653 = vmatmul.mubr.f32.gmra.mxu0 %v4395
  %v4654 = vpop.f32.mrf.mxu0
  %v4655 = vadd.f32 0.0, %v4654
  %v4656 = vpop.f32.mrf.mxu0
  %4657 = vmatprep.mubr.f32.mxu0 0.0
  %4658 = vmatmul.mubr.f32.gmra.mxu0 %v4398
  %v4659 = vpop.f32.mrf.mxu0
  %v4660 = vadd.f32 0.0, %v4659
  %v4661 = vpop.f32.mrf.mxu0
  %4662 = vmatprep.mubr.f32.mxu0 0.0
  %4663 = vmatmul.mubr.f32.gmra.mxu0 %v4401
  %v4664 = vpop.f32.mrf.mxu0
  %v4665 = vadd.f32 0.0, %v4664
  %v4666 = vpop.f32.mrf.mxu0
  %4667 = vmatprep.mubr.f32.mxu0 0.0
  %4668 = vmatmul.mubr.f32.gmra.mxu0 %v4404
  %v4669 = vpop.f32.mrf.mxu0
  %v4670 = vadd.f32 0.0, %v4669
  %v4671 = vpop.f32.mrf.mxu0
  %4672 = vmatprep.mubr.f32.mxu0 0.0
  %4673 = vmatmul.mubr.f32.gmra.mxu0 %v4407
  %v4674 = vpop.f32.mrf.mxu0
  %v4675 = vadd.f32 0.0, %v4674
  %v4676 = vpop.f32.mrf.mxu0
  %4677 = vmatprep.mubr.f32.mxu0 0.0
  %4678 = vmatmul.mubr.f32.gmra.mxu0 %v4410
  %v4679 = vpop.f32.mrf.mxu0
  %v4680 = vadd.f32 0.0, %v4679
  %v4681 = vpop.f32.mrf.mxu0
  %4682 = vmatprep.mubr.f32.mxu0 0.0
  %4683 = vmatmul.mubr.f32.gmra.mxu0 %v4413
  %v4684 = vpop.f32.mrf.mxu0
  %v4685 = vadd.f32 0.0, %v4684
  %v4686 = vpop.f32.mrf.mxu0
  %4687 = vmatprep.mubr.f32.mxu0 0.0
  %4688 = vmatmul.mubr.f32.gmra.mxu0 %v4416
  %v4689 = vpop.f32.mrf.mxu0
  %v4690 = vadd.f32 0.0, %v4689
  %v4691 = vpop.f32.mrf.mxu0
  %4692 = vmatprep.mubr.f32.mxu0 0.0
  %4693 = vmatmul.mubr.f32.gmra.mxu0 %v4419
  %v4694 = vpop.f32.mrf.mxu0
  %v4695 = vadd.f32 0.0, %v4694
  %v4696 = vpop.f32.mrf.mxu0
  %4697 = vmatprep.mubr.f32.mxu0 0.0
  %4698 = vmatmul.mubr.f32.gmra.mxu0 %v4422
  %v4699 = vpop.f32.mrf.mxu0
  %v4700 = vadd.f32 0.0, %v4699
  %v4701 = vpop.f32.mrf.mxu0
  %4702 = vmatprep.mubr.f32.mxu0 0.0
  %4703 = vmatmul.mubr.f32.gmra.mxu0 %v4425
  %v4704 = vpop.f32.mrf.mxu0
  %v4705 = vadd.f32 0.0, %v4704
  %v4706 = vpop.f32.mrf.mxu0
  %4707 = vmatprep.mubr.f32.mxu0 0.0
  %4708 = vmatmul.mubr.f32.gmra.mxu0 %v4428
  %v4709 = vpop.f32.mrf.mxu0
  %v4710 = vadd.f32 0.0, %v4709
  %v4711 = vpop.f32.mrf.mxu0
  %4712 = vmatprep.mubr.f32.mxu0 0.0
  %4713 = vmatmul.mubr.f32.gmra.mxu0 %v4431
  %v4714 = vpop.f32.mrf.mxu0
  %v4715 = vadd.f32 0.0, %v4714
  %v4716 = vpop.f32.mrf.mxu0
  %4717 = vmatprep.mubr.f32.mxu0 0.0
  %4718 = vmatmul.mubr.f32.gmra.mxu0 %v4434
  %v4719 = vpop.f32.mrf.mxu0
  %v4720 = vadd.f32 0.0, %v4719
  %v4721 = vpop.f32.mrf.mxu0
  %4722 = vmatprep.mubr.f32.mxu0 0.0
  %4723 = vmatmul.mubr.f32.gmra.mxu0 %v4437
  %v4724 = vpop.f32.mrf.mxu0
  %v4725 = vadd.f32 0.0, %v4724
  %v4726 = vpop.f32.mrf.mxu0
  %4727 = vmatprep.mubr.f32.mxu0 0.0
  %4728 = vmatmul.mubr.f32.gmra.mxu0 %v4440
  %v4729 = vpop.f32.mrf.mxu0
  %v4730 = vadd.f32 0.0, %v4729
  %v4731 = vpop.f32.mrf.mxu0
  %4732 = vmatprep.mubr.f32.mxu0 0.0
  %4733 = vmatmul.mubr.f32.gmra.mxu0 %v4443
  %v4734 = vpop.f32.mrf.mxu0
  %v4735 = vadd.f32 0.0, %v4734
  %v4736 = vpop.f32.mrf.mxu0
  %4737 = vmatprep.mubr.f32.mxu0 0.0
  %4738 = vmatmul.mubr.f32.gmra.mxu0 %v4446
  %v4739 = vpop.f32.mrf.mxu0
  %v4740 = vadd.f32 0.0, %v4739
  %v4741 = vpop.f32.mrf.mxu0
  %4742 = vmatprep.mubr.f32.mxu0 0.0
  %4743 = vmatmul.mubr.f32.gmra.mxu0 %v4449
  %v4744 = vpop.f32.mrf.mxu0
  %v4745 = vadd.f32 0.0, %v4744
  %v4746 = vpop.f32.mrf.mxu0
  %4747 = vmatprep.mubr.f32.mxu0 0.0
  %4748 = vmatmul.mubr.f32.gmra.mxu0 %v4452
  %v4749 = vpop.f32.mrf.mxu0
  %v4750 = vadd.f32 0.0, %v4749
  %v4751 = vpop.f32.mrf.mxu0
  %4752 = vmatprep.mubr.f32.mxu0 0.0
  %4753 = vmatmul.mubr.f32.gmra.mxu0 %v4455
  %v4754 = vpop.f32.mrf.mxu0
  %v4755 = vadd.f32 0.0, %v4754
  %v4756 = vpop.f32.mrf.mxu0
  %4757 = vmatprep.mubr.f32.mxu0 0.0
  %4758 = vmatmul.mubr.f32.gmra.mxu0 %v4458
  %v4759 = vpop.f32.mrf.mxu0
  %v4760 = vadd.f32 0.0, %v4759
  %v4761 = vpop.f32.mrf.mxu0
  %4762 = vmatprep.mubr.f32.mxu0 0.0
  %4763 = vmatmul.mubr.f32.gmra.mxu0 %v4461
  %v4764 = vpop.f32.mrf.mxu0
  %v4765 = vadd.f32 0.0, %v4764
  %v4766 = vpop.f32.mrf.mxu0
  %4767 = vmatprep.mubr.f32.mxu0 0.0
  %4768 = vmatmul.mubr.f32.gmra.mxu0 %v4464
  %v4769 = vpop.f32.mrf.mxu0
  %v4770 = vadd.f32 0.0, %v4769
  %v4771 = vpop.f32.mrf.mxu0
  %4772 = vmatprep.mubr.f32.mxu0 0.0
  %4773 = vmatmul.mubr.f32.gmra.mxu0 %v4467
  %v4774 = vpop.f32.mrf.mxu0
  %v4775 = vadd.f32 0.0, %v4774
  %v4776 = vpop.f32.mrf.mxu0
  %4777 = vmatprep.mubr.f32.mxu0 0.0
  %4778 = vmatmul.mubr.f32.gmra.mxu0 %v4470
  %v4779 = vpop.f32.mrf.mxu0
  %v4780 = vadd.f32 0.0, %v4779
  %v4781 = vpop.f32.mrf.mxu0
  %4782 = vmatprep.mubr.f32.mxu0 0.0
  %4783 = vmatmul.mubr.f32.gmra.mxu0 %v4473
  %v4784 = vpop.f32.mrf.mxu0
  %v4785 = vadd.f32 0.0, %v4784
  %v4786 = vpop.f32.mrf.mxu0
  %4787 = vmatprep.mubr.f32.mxu0 0.0
  %4788 = vmatmul.mubr.f32.gmra.mxu0 %v4476
  %v4789 = vpop.f32.mrf.mxu0
  %v4790 = vadd.f32 0.0, %v4789
  %v4791 = vpop.f32.mrf.mxu0
  %4792 = vmatprep.mubr.f32.mxu0 0.0
  %4793 = vmatmul.mubr.f32.gmra.mxu0 %v4479
  %v4794 = vpop.f32.mrf.mxu0
  %v4795 = vadd.f32 0.0, %v4794
  %v4796 = vpop.f32.mrf.mxu0
  %4797 = vmatprep.mubr.f32.mxu0 0.0
  %4798 = vmatmul.mubr.f32.gmra.mxu0 %v4482
  %v4799 = vpop.f32.mrf.mxu0
  %v4800 = vadd.f32 0.0, %v4799
  %v4801 = vpop.f32.mrf.mxu0
  %4802 = vmatprep.mubr.f32.mxu0 0.0
  %4803 = vmatmul.mubr.f32.gmra.mxu0 %v4485
  %v4804 = vpop.f32.mrf.mxu0
  %v4805 = vadd.f32 0.0, %v4804
  %v4806 = vpop.f32.mrf.mxu0
  %4807 = vmatprep.mubr.f32.mxu0 0.0
  %4808 = vmatmul.mubr.f32.gmra.mxu0 %v4488
  %v4809 = vpop.f32.mrf.mxu0
  %v4810 = vadd.f32 0.0, %v4809
  %v4811 = vpop.f32.mrf.mxu0
  %4812 = vmatprep.mubr.f32.mxu0 0.0
  %4813 = vmatmul.mubr.f32.gmra.mxu0 %v4491
  %v4814 = vpop.f32.mrf.mxu0
  %v4815 = vadd.f32 0.0, %v4814
  %v4816 = vpop.f32.mrf.mxu0
  %4817 = vmatprep.mubr.f32.mxu0 0.0
  %4818 = vmatmul.mubr.f32.gmra.mxu0 %v4494
  %v4819 = vpop.f32.mrf.mxu0
  %v4820 = vadd.f32 0.0, %v4819
  %v4821 = vpop.f32.mrf.mxu0
  %4822 = vmatprep.mubr.f32.mxu0 0.0
  %4823 = vmatmul.mubr.f32.gmra.mxu0 %v4497
  %v4824 = vpop.f32.mrf.mxu0
  %v4825 = vadd.f32 0.0, %v4824
  %v4826 = vpop.f32.mrf.mxu0
  %4827 = vmatprep.mubr.f32.mxu0 0.0
  %4828 = vmatmul.mubr.f32.gmra.mxu0 %v4500
  %v4829 = vpop.f32.mrf.mxu0
  %v4830 = vadd.f32 0.0, %v4829
  %v4831 = vpop.f32.mrf.mxu0
  %4832 = vmatprep.mubr.f32.mxu0 0.0
  %4833 = vmatmul.mubr.f32.gmra.mxu0 %v4503
  %v4834 = vpop.f32.mrf.mxu0
  %v4835 = vadd.f32 0.0, %v4834
  %v4836 = vpop.f32.mrf.mxu0
  %4837 = vmatprep.mubr.f32.mxu0 0.0
  %4838 = vmatmul.mubr.f32.gmra.mxu0 %v4506
  %v4839 = vpop.f32.mrf.mxu0
  %v4840 = vadd.f32 0.0, %v4839
  %v4841 = vpop.f32.mrf.mxu0
  %4842 = vmatprep.mubr.f32.mxu0 0.0
  %4843 = vmatmul.mubr.f32.gmra.mxu0 %v4509
  %v4844 = vpop.f32.mrf.mxu0
  %v4845 = vadd.f32 0.0, %v4844
  %v4846 = vpop.f32.mrf.mxu0
  %4847 = vmatprep.mubr.f32.mxu0 0.0
  %4848 = vmatmul.mubr.f32.gmra.mxu0 %v4512
  %v4849 = vpop.f32.mrf.mxu0
  %v4850 = vadd.f32 0.0, %v4849
  %v4851 = vpop.f32.mrf.mxu0
  %4852 = vmatprep.mubr.f32.mxu0 0.0
  %4853 = vmatmul.mubr.f32.gmra.mxu0 %v4515
  %v4854 = vpop.f32.mrf.mxu0
  %v4855 = vadd.f32 0.0, %v4854
  %v4856 = vpop.f32.mrf.mxu0
  %4857 = vmatprep.mubr.f32.mxu0 0.0
  %4858 = vmatmul.mubr.f32.gmra.mxu0 %v4518
  %v4859 = vpop.f32.mrf.mxu0
  %v4860 = vadd.f32 0.0, %v4859
  %v4861 = vpop.f32.mrf.mxu0
  %4862 = vmatprep.mubr.f32.mxu0 0.0
  %4863 = vmatmul.mubr.f32.gmra.mxu0 %v4521
  %v4864 = vpop.f32.mrf.mxu0
  %v4865 = vadd.f32 0.0, %v4864
  %v4866 = vpop.f32.mrf.mxu0
  %4867 = vmatprep.mubr.f32.mxu0 0.0
  %4868 = vmatmul.mubr.f32.gmra.mxu0 %v4524
  %v4869 = vpop.f32.mrf.mxu0
  %v4870 = vadd.f32 0.0, %v4869
  %v4871 = vpop.f32.mrf.mxu0
  %4872 = vmatprep.mubr.f32.mxu0 0.0
  %4873 = vmatmul.mubr.f32.gmra.mxu0 %v4527
  %v4874 = vpop.f32.mrf.mxu0
  %v4875 = vadd.f32 0.0, %v4874
  %v4876 = vpop.f32.mrf.mxu0
  %4877 = vmatprep.mubr.f32.mxu0 0.0
  %4878 = vmatmul.mubr.f32.gmra.mxu0 %v4530
  %v4879 = vpop.f32.mrf.mxu0
  %v4880 = vadd.f32 0.0, %v4879
  %v4881 = vpop.f32.mrf.mxu0
  %4882 = vmatprep.mubr.f32.mxu0 0.0
  %4883 = vmatmul.mubr.f32.gmra.mxu0 %v4533
  %v4884 = vpop.f32.mrf.mxu0
  %v4885 = vadd.f32 0.0, %v4884
  %v4886 = vpop.f32.mrf.mxu0
  %4887 = vmatprep.mubr.f32.mxu0 0.0
  %4888 = vmatmul.mubr.f32.gmra.mxu0 %v4536
  %v4889 = vpop.f32.mrf.mxu0
  %v4890 = vadd.f32 0.0, %v4889
  %v4891 = vpop.f32.mrf.mxu0
  %4892 = vmatprep.mubr.f32.mxu0 0.0
  %4893 = vmatmul.mubr.f32.gmra.mxu0 %v4539
  %v4894 = vpop.f32.mrf.mxu0
  %v4895 = vadd.f32 0.0, %v4894
  %v4896 = vpop.f32.mrf.mxu0
  %4897 = vmatprep.mubr.f32.mxu0 0.0
  %4898 = vmatmul.mubr.f32.gmra.mxu0 %v4542
  %v4899 = vpop.f32.mrf.mxu0
  %v4900 = vadd.f32 0.0, %v4899
  %v4901 = vpop.f32.mrf.mxu0
  %4902 = vmatprep.mubr.f32.mxu0 0.0
  %4903 = vmatmul.mubr.f32.gmra.mxu0 %v4545
  %v4904 = vpop.f32.mrf.mxu0
  %v4905 = vadd.f32 0.0, %v4904
  %v4906 = vpop.f32.mrf.mxu0
  %4907 = vmatprep.mubr.f32.mxu0 0.0
  %4908 = vmatmul.mubr.f32.gmra.mxu0 %v4548
  %v4909 = vpop.f32.mrf.mxu0
  %v4910 = vadd.f32 0.0, %v4909
  %v4911 = vpop.f32.mrf.mxu0
  %4912 = vmatprep.mubr.f32.mxu0 0.0
  %4913 = vmatmul.mubr.f32.gmra.mxu0 %v4551
  %v4914 = vpop.f32.mrf.mxu0
  %v4915 = vadd.f32 0.0, %v4914
  %v4916 = vpop.f32.mrf.mxu0
  %4917 = vmatprep.mubr.f32.mxu0 0.0
  %4918 = vmatmul.mubr.f32.gmra.mxu0 %v4554
  %v4919 = vpop.f32.mrf.mxu0
  %v4920 = vadd.f32 0.0, %v4919
  %v4921 = vpop.f32.mrf.mxu0
  %4922 = vmatprep.mubr.f32.mxu0 0.0
  %4923 = vmatmul.mubr.f32.gmra.mxu0 %v4557
  %v4924 = vpop.f32.mrf.mxu0
  %v4925 = vadd.f32 0.0, %v4924
  %v4926 = vpop.f32.mrf.mxu0
  %4927 = vmatprep.mubr.f32.mxu0 0.0
  %4928 = vmatmul.mubr.f32.gmra.mxu0 %v4560
  %v4929 = vpop.f32.mrf.mxu0
  %v4930 = vadd.f32 0.0, %v4929
  %v4931 = vpop.f32.mrf.mxu0
  %4932 = vmatprep.mubr.f32.mxu0 0.0
  %4933 = vmatmul.mubr.f32.gmra.mxu0 %v4563
  %v4934 = vpop.f32.mrf.mxu0
  %v4935 = vadd.f32 0.0, %v4934
  %v4936 = vpop.f32.mrf.mxu0
  %4937 = vmatprep.mubr.f32.mxu0 0.0
  %4938 = vmatmul.mubr.f32.gmra.mxu0 %v4566
  %v4939 = vpop.f32.mrf.mxu0
  %v4940 = vadd.f32 0.0, %v4939
  %v4941 = vpop.f32.mrf.mxu0
  %4942 = vmatprep.mubr.f32.mxu0 0.0
  %4943 = vmatmul.mubr.f32.gmra.mxu0 %v4569
  %v4944 = vpop.f32.mrf.mxu0
  %v4945 = vadd.f32 0.0, %v4944
  %v4946 = vpop.f32.mrf.mxu0
  %4947 = vmatprep.mubr.f32.mxu0 0.0
  %4948 = vmatmul.mubr.f32.gmra.mxu0 %v4572
  %v4949 = vpop.f32.mrf.mxu0
  %v4950 = vadd.f32 0.0, %v4949
  %v4951 = vpop.f32.mrf.mxu0
  %4952 = vmatprep.mubr.f32.mxu0 0.0
  %4953 = vmatmul.mubr.f32.gmra.mxu0 %v4575
  %v4954 = vpop.f32.mrf.mxu0
  %v4955 = vadd.f32 0.0, %v4954
  %v4956 = vpop.f32.mrf.mxu0
  %4957 = vmatprep.mubr.f32.mxu0 0.0
  %4958 = vmatmul.mubr.f32.gmra.mxu0 %v4578
  %v4959 = vpop.f32.mrf.mxu0
  %v4960 = vadd.f32 0.0, %v4959
  %v4961 = vpop.f32.mrf.mxu0
  %4962 = vmatprep.mubr.f32.mxu0 0.0
  %4963 = vmatmul.mubr.f32.gmra.mxu0 %v4581
  %v4964 = vpop.f32.mrf.mxu0
  %v4965 = vadd.f32 0.0, %v4964
  %v4966 = vpop.f32.mrf.mxu0
  %4967 = vdwg.mxu0
  %v4968 = vadd.f32 %v4260, %v4650
  %v4969 = vadd.f32 %v4261, %v4655
  %v4970 = vadd.f32 %v4262, %v4660
  %v4971 = vadd.f32 %v4263, %v4665
  %v4972 = vadd.f32 %v4264, %v4670
  %v4973 = vadd.f32 %v4265, %v4675
  %v4974 = vadd.f32 %v4266, %v4680
  %v4975 = vadd.f32 %v4267, %v4685
  %v4976 = vadd.f32 %v4268, %v4690
  %v4977 = vadd.f32 %v4269, %v4695
  %v4978 = vadd.f32 %v4270, %v4700
  %v4979 = vadd.f32 %v4271, %v4705
  %v4980 = vadd.f32 %v4272, %v4710
  %v4981 = vadd.f32 %v4273, %v4715
  %v4982 = vadd.f32 %v4274, %v4720
  %v4983 = vadd.f32 %v4275, %v4725
  %v4984 = vadd.f32 %v4276, %v4730
  %v4985 = vadd.f32 %v4277, %v4735
  %v4986 = vadd.f32 %v4278, %v4740
  %v4987 = vadd.f32 %v4279, %v4745
  %v4988 = vadd.f32 %v4280, %v4750
  %v4989 = vadd.f32 %v4281, %v4755
  %v4990 = vadd.f32 %v4282, %v4760
  %v4991 = vadd.f32 %v4283, %v4765
  %v4992 = vadd.f32 %v4284, %v4770
  %v4993 = vadd.f32 %v4285, %v4775
  %v4994 = vadd.f32 %v4286, %v4780
  %v4995 = vadd.f32 %v4287, %v4785
  %v4996 = vadd.f32 %v4288, %v4790
  %v4997 = vadd.f32 %v4289, %v4795
  %v4998 = vadd.f32 %v4290, %v4800
  %v4999 = vadd.f32 %v4291, %v4805
  %v5000 = vadd.f32 %v4292, %v4810
  %v5001 = vadd.f32 %v4293, %v4815
  %v5002 = vadd.f32 %v4294, %v4820
  %v5003 = vadd.f32 %v4295, %v4825
  %v5004 = vadd.f32 %v4296, %v4830
  %v5005 = vadd.f32 %v4297, %v4835
  %v5006 = vadd.f32 %v4298, %v4840
  %v5007 = vadd.f32 %v4299, %v4845
  %v5008 = vadd.f32 %v4300, %v4850
  %v5009 = vadd.f32 %v4301, %v4855
  %v5010 = vadd.f32 %v4302, %v4860
  %v5011 = vadd.f32 %v4303, %v4865
  %v5012 = vadd.f32 %v4304, %v4870
  %v5013 = vadd.f32 %v4305, %v4875
  %v5014 = vadd.f32 %v4306, %v4880
  %v5015 = vadd.f32 %v4307, %v4885
  %v5016 = vadd.f32 %v4308, %v4890
  %v5017 = vadd.f32 %v4309, %v4895
  %v5018 = vadd.f32 %v4310, %v4900
  %v5019 = vadd.f32 %v4311, %v4905
  %v5020 = vadd.f32 %v4312, %v4910
  %v5021 = vadd.f32 %v4313, %v4915
  %v5022 = vadd.f32 %v4314, %v4920
  %v5023 = vadd.f32 %v4315, %v4925
  %v5024 = vadd.f32 %v4316, %v4930
  %v5025 = vadd.f32 %v4317, %v4935
  %v5026 = vadd.f32 %v4318, %v4940
  %v5027 = vadd.f32 %v4319, %v4945
  %v5028 = vadd.f32 %v4320, %v4950
  %v5029 = vadd.f32 %v4321, %v4955
  %v5030 = vadd.f32 %v4322, %v4960
  %v5031 = vadd.f32 %v4323, %v4965
  %v5032 = vld [vmem:[#allocation2 + $0x1b] sm:$0xff]
  %v5033 = vld [vmem:[#allocation2 + $0x23] sm:$0xff]
  %v5034 = vld [vmem:[#allocation2 + $0x2b] sm:$0xff]
  %v5035 = vld [vmem:[#allocation2 + $0x33] sm:$0xff]
  %v5036 = vld [vmem:[#allocation2 + $0x3b] sm:$0xff]
  %v5037 = vld [vmem:[#allocation2 + $0x43] sm:$0xff]
  %v5038 = vld [vmem:[#allocation2 + $0x4b] sm:$0xff]
  %v5039 = vld [vmem:[#allocation2 + $0x53] sm:$0xff]
  %v5040 = vld [vmem:[#allocation2 + $0x5b] sm:$0xff]
  %v5041 = vld [vmem:[#allocation2 + $0x63] sm:$0xff]
  %v5042 = vld [vmem:[#allocation2 + $0x6b] sm:$0xff]
  %v5043 = vld [vmem:[#allocation2 + $0x73] sm:$0xff]
  %v5044 = vld [vmem:[#allocation2 + $0x7b] sm:$0xff]
  %v5045 = vld [vmem:[#allocation2 + $0x83] sm:$0xff]
  %v5046 = vld [vmem:[#allocation2 + $0x8b] sm:$0xff]
  %v5047 = vld [vmem:[#allocation2 + $0x93] sm:$0xff]
  %v5048 = vld [vmem:[#allocation2 + $0x9b] sm:$0xff]
  %v5049 = vld [vmem:[#allocation2 + $0xa3] sm:$0xff]
  %v5050 = vld [vmem:[#allocation2 + $0xab] sm:$0xff]
  %v5051 = vld [vmem:[#allocation2 + $0xb3] sm:$0xff]
  %v5052 = vld [vmem:[#allocation2 + $0xbb] sm:$0xff]
  %v5053 = vld [vmem:[#allocation2 + $0xc3] sm:$0xff]
  %v5054 = vld [vmem:[#allocation2 + $0xcb] sm:$0xff]
  %v5055 = vld [vmem:[#allocation2 + $0xd3] sm:$0xff]
  %v5056 = vld [vmem:[#allocation2 + $0xdb] sm:$0xff]
  %v5057 = vld [vmem:[#allocation2 + $0xe3] sm:$0xff]
  %v5058 = vld [vmem:[#allocation2 + $0xeb] sm:$0xff]
  %v5059 = vld [vmem:[#allocation2 + $0xf3] sm:$0xff]
  %v5060 = vld [vmem:[#allocation2 + $0xfb] sm:$0xff]
  %v5061 = vld [vmem:[#allocation2 + $0x103] sm:$0xff]
  %v5062 = vld [vmem:[#allocation2 + $0x10b] sm:$0xff]
  %v5063 = vld [vmem:[#allocation2 + $0x113] sm:$0xff]
  %v5064 = vld [vmem:[#allocation2 + $0x11b] sm:$0xff]
  %v5065 = vld [vmem:[#allocation2 + $0x123] sm:$0xff]
  %v5066 = vld [vmem:[#allocation2 + $0x12b] sm:$0xff]
  %v5067 = vld [vmem:[#allocation2 + $0x133] sm:$0xff]
  %v5068 = vld [vmem:[#allocation2 + $0x13b] sm:$0xff]
  %v5069 = vld [vmem:[#allocation2 + $0x143] sm:$0xff]
  %v5070 = vld [vmem:[#allocation2 + $0x14b] sm:$0xff]
  %v5071 = vld [vmem:[#allocation2 + $0x153] sm:$0xff]
  %v5072 = vld [vmem:[#allocation2 + $0x15b] sm:$0xff]
  %v5073 = vld [vmem:[#allocation2 + $0x163] sm:$0xff]
  %v5074 = vld [vmem:[#allocation2 + $0x16b] sm:$0xff]
  %v5075 = vld [vmem:[#allocation2 + $0x173] sm:$0xff]
  %v5076 = vld [vmem:[#allocation2 + $0x17b] sm:$0xff]
  %v5077 = vld [vmem:[#allocation2 + $0x183] sm:$0xff]
  %v5078 = vld [vmem:[#allocation2 + $0x18b] sm:$0xff]
  %v5079 = vld [vmem:[#allocation2 + $0x193] sm:$0xff]
  %v5080 = vld [vmem:[#allocation2 + $0x19b] sm:$0xff]
  %v5081 = vld [vmem:[#allocation2 + $0x1a3] sm:$0xff]
  %v5082 = vld [vmem:[#allocation2 + $0x1ab] sm:$0xff]
  %v5083 = vld [vmem:[#allocation2 + $0x1b3] sm:$0xff]
  %v5084 = vld [vmem:[#allocation2 + $0x1bb] sm:$0xff]
  %v5085 = vld [vmem:[#allocation2 + $0x1c3] sm:$0xff]
  %v5086 = vld [vmem:[#allocation2 + $0x1cb] sm:$0xff]
  %v5087 = vld [vmem:[#allocation2 + $0x1d3] sm:$0xff]
  %v5088 = vld [vmem:[#allocation2 + $0x1db] sm:$0xff]
  %v5089 = vld [vmem:[#allocation2 + $0x1e3] sm:$0xff]
  %v5090 = vld [vmem:[#allocation2 + $0x1eb] sm:$0xff]
  %v5091 = vld [vmem:[#allocation2 + $0x1f3] sm:$0xff]
  %v5092 = vld [vmem:[#allocation2 + $0x1fb] sm:$0xff]
  %v5093 = vld [vmem:[#allocation2 + $0x203] sm:$0xff]
  %v5094 = vld [vmem:[#allocation2 + $0x20b] sm:$0xff]
  %v5095 = vld [vmem:[#allocation2 + $0x213] sm:$0xff]
  %s5096 = scalar_lea.vmem %s2, 112
  %v5097 = vld [vmem:[%s5096] sm:$0xff]
  %v5098 = vld [vmem:[%s5096 + $0x8] sm:$0xff]
  %v5100 = vsel %vm108, %v5032, 0
  %v5103 = vsel %vm108, %v5033, 0
  %v5106 = vsel %vm108, %v5034, 0
  %v5109 = vsel %vm108, %v5035, 0
  %v5112 = vsel %vm108, %v5036, 0
  %v5115 = vsel %vm108, %v5037, 0
  %v5118 = vsel %vm108, %v5038, 0
  %v5121 = vsel %vm108, %v5039, 0
  %v5124 = vsel %vm108, %v5040, 0
  %v5127 = vsel %vm108, %v5041, 0
  %v5130 = vsel %vm108, %v5042, 0
  %v5133 = vsel %vm108, %v5043, 0
  %v5136 = vsel %vm108, %v5044, 0
  %v5139 = vsel %vm108, %v5045, 0
  %v5142 = vsel %vm108, %v5046, 0
  %v5145 = vsel %vm108, %v5047, 0
  %v5148 = vsel %vm108, %v5048, 0
  %v5151 = vsel %vm108, %v5049, 0
  %v5154 = vsel %vm108, %v5050, 0
  %v5157 = vsel %vm108, %v5051, 0
  %v5160 = vsel %vm108, %v5052, 0
  %v5163 = vsel %vm108, %v5053, 0
  %v5166 = vsel %vm108, %v5054, 0
  %v5169 = vsel %vm108, %v5055, 0
  %v5172 = vsel %vm108, %v5056, 0
  %v5175 = vsel %vm108, %v5057, 0
  %v5178 = vsel %vm108, %v5058, 0
  %v5181 = vsel %vm108, %v5059, 0
  %v5184 = vsel %vm108, %v5060, 0
  %v5187 = vsel %vm108, %v5061, 0
  %v5190 = vsel %vm108, %v5062, 0
  %v5193 = vsel %vm108, %v5063, 0
  %v5196 = vsel %vm108, %v5064, 0
  %v5199 = vsel %vm108, %v5065, 0
  %v5202 = vsel %vm108, %v5066, 0
  %v5205 = vsel %vm108, %v5067, 0
  %v5208 = vsel %vm108, %v5068, 0
  %v5211 = vsel %vm108, %v5069, 0
  %v5214 = vsel %vm108, %v5070, 0
  %v5217 = vsel %vm108, %v5071, 0
  %v5220 = vsel %vm108, %v5072, 0
  %v5223 = vsel %vm108, %v5073, 0
  %v5226 = vsel %vm108, %v5074, 0
  %v5229 = vsel %vm108, %v5075, 0
  %v5232 = vsel %vm108, %v5076, 0
  %v5235 = vsel %vm108, %v5077, 0
  %v5238 = vsel %vm108, %v5078, 0
  %v5241 = vsel %vm108, %v5079, 0
  %v5244 = vsel %vm108, %v5080, 0
  %v5247 = vsel %vm108, %v5081, 0
  %v5250 = vsel %vm108, %v5082, 0
  %v5253 = vsel %vm108, %v5083, 0
  %v5256 = vsel %vm108, %v5084, 0
  %v5259 = vsel %vm108, %v5085, 0
  %v5262 = vsel %vm108, %v5086, 0
  %v5265 = vsel %vm108, %v5087, 0
  %v5268 = vsel %vm108, %v5088, 0
  %v5271 = vsel %vm108, %v5089, 0
  %v5274 = vsel %vm108, %v5090, 0
  %v5277 = vsel %vm108, %v5091, 0
  %v5280 = vsel %vm108, %v5092, 0
  %v5283 = vsel %vm108, %v5093, 0
  %v5286 = vsel %vm108, %v5094, 0
  %v5289 = vsel %vm108, %v5095, 0
  %5291 = vmatprep.subr.mxu0 0.0
  %5292 = vmatpush1.msra.mxu0 0.0
  %5293 = vmatprep.subr.mxu0 0.0
  %5294 = vmatpush1.msra.mxu0 0.0
  %5295 = vmatprep.subr.mxu0 0.0
  %5296 = vmatpush1.msra.mxu0 0.0
  %5297 = vmatprep.subr.mxu0 0.0
  %5298 = vmatpush1.msra.mxu0 0.0
  %5299 = vmatprep.subr.mxu0 0.0
  %5300 = vmatpush1.msra.mxu0 0.0
  %5301 = vmatprep.subr.mxu0 0.0
  %5302 = vmatpush1.msra.mxu0 0.0
  %5303 = vmatprep.subr.mxu0 0.0
  %5304 = vmatpush1.msra.mxu0 0.0
  %5305 = vmatprep.subr.mxu0 0.0
  %5306 = vmatpush1.msra.mxu0 0.0
  %5307 = vmatprep.subr.mxu0 0.0
  %5308 = vmatpush1.msra.mxu0 0.0
  %5309 = vmatprep.subr.mxu0 0.0
  %5310 = vmatpush1.msra.mxu0 0.0
  %5311 = vmatprep.subr.mxu0 0.0
  %5312 = vmatpush1.msra.mxu0 0.0
  %5313 = vmatprep.subr.mxu0 0.0
  %5314 = vmatpush1.msra.mxu0 0.0
  %5315 = vmatprep.subr.mxu0 0.0
  %5316 = vmatpush1.msra.mxu0 0.0
  %5317 = vmatprep.subr.mxu0 0.0
  %5318 = vmatpush1.msra.mxu0 0.0
  %5319 = vmatprep.subr.mxu0 0.0
  %5320 = vmatpush1.msra.mxu0 %v5098
  %5321 = vmatprep.subr.mxu0 0.0
  %5322 = vmatpush1.msra.mxu0 %v5097
  %5323 = vmatprep.subr.mxu0 0.0
  %5324 = vmatpush2.msra.mxu0 0.0
  %5325 = vmatprep.subr.mxu0 0.0
  %5326 = vmatpush2.msra.mxu0 0.0
  %5327 = vmatprep.subr.mxu0 0.0
  %5328 = vmatpush2.msra.mxu0 0.0
  %5329 = vmatprep.subr.mxu0 0.0
  %5330 = vmatpush2.msra.mxu0 0.0
  %5331 = vmatprep.subr.mxu0 0.0
  %5332 = vmatpush2.msra.mxu0 0.0
  %5333 = vmatprep.subr.mxu0 0.0
  %5334 = vmatpush2.msra.mxu0 0.0
  %5335 = vmatprep.subr.mxu0 0.0
  %5336 = vmatpush2.msra.mxu0 0.0
  %5337 = vmatprep.subr.mxu0 0.0
  %5338 = vmatpush2.msra.mxu0 0.0
  %5339 = vmatprep.subr.mxu0 0.0
  %5340 = vmatpush2.msra.mxu0 0.0
  %5341 = vmatprep.subr.mxu0 0.0
  %5342 = vmatpush2.msra.mxu0 0.0
  %5343 = vmatprep.subr.mxu0 0.0
  %5344 = vmatpush2.msra.mxu0 0.0
  %5345 = vmatprep.subr.mxu0 0.0
  %5346 = vmatpush2.msra.mxu0 0.0
  %5347 = vmatprep.subr.mxu0 0.0
  %5348 = vmatpush2.msra.mxu0 0.0
  %5349 = vmatprep.subr.mxu0 0.0
  %5350 = vmatpush2.msra.mxu0 0.0
  %5351 = vmatprep.subr.mxu0 0.0
  %5352 = vmatpush2.msra.mxu0 0.0
  %5353 = vmatprep.subr.mxu0 0.0
  %5354 = vmatpush2.msra.mxu0 0.0
  %5355 = vmatprep.mubr.f32.mxu0 0.0
  %5356 = vmatmul.mubr.f32.gmra.mxu0 %v5100
  %v5357 = vpop.f32.mrf.mxu0
  %v5358 = vadd.f32 0.0, %v5357
  %v5359 = vpop.f32.mrf.mxu0
  %5360 = vmatprep.mubr.f32.mxu0 0.0
  %5361 = vmatmul.mubr.f32.gmra.mxu0 %v5103
  %v5362 = vpop.f32.mrf.mxu0
  %v5363 = vadd.f32 0.0, %v5362
  %v5364 = vpop.f32.mrf.mxu0
  %5365 = vmatprep.mubr.f32.mxu0 0.0
  %5366 = vmatmul.mubr.f32.gmra.mxu0 %v5106
  %v5367 = vpop.f32.mrf.mxu0
  %v5368 = vadd.f32 0.0, %v5367
  %v5369 = vpop.f32.mrf.mxu0
  %5370 = vmatprep.mubr.f32.mxu0 0.0
  %5371 = vmatmul.mubr.f32.gmra.mxu0 %v5109
  %v5372 = vpop.f32.mrf.mxu0
  %v5373 = vadd.f32 0.0, %v5372
  %v5374 = vpop.f32.mrf.mxu0
  %5375 = vmatprep.mubr.f32.mxu0 0.0
  %5376 = vmatmul.mubr.f32.gmra.mxu0 %v5112
  %v5377 = vpop.f32.mrf.mxu0
  %v5378 = vadd.f32 0.0, %v5377
  %v5379 = vpop.f32.mrf.mxu0
  %5380 = vmatprep.mubr.f32.mxu0 0.0
  %5381 = vmatmul.mubr.f32.gmra.mxu0 %v5115
  %v5382 = vpop.f32.mrf.mxu0
  %v5383 = vadd.f32 0.0, %v5382
  %v5384 = vpop.f32.mrf.mxu0
  %5385 = vmatprep.mubr.f32.mxu0 0.0
  %5386 = vmatmul.mubr.f32.gmra.mxu0 %v5118
  %v5387 = vpop.f32.mrf.mxu0
  %v5388 = vadd.f32 0.0, %v5387
  %v5389 = vpop.f32.mrf.mxu0
  %5390 = vmatprep.mubr.f32.mxu0 0.0
  %5391 = vmatmul.mubr.f32.gmra.mxu0 %v5121
  %v5392 = vpop.f32.mrf.mxu0
  %v5393 = vadd.f32 0.0, %v5392
  %v5394 = vpop.f32.mrf.mxu0
  %5395 = vmatprep.mubr.f32.mxu0 0.0
  %5396 = vmatmul.mubr.f32.gmra.mxu0 %v5124
  %v5397 = vpop.f32.mrf.mxu0
  %v5398 = vadd.f32 0.0, %v5397
  %v5399 = vpop.f32.mrf.mxu0
  %5400 = vmatprep.mubr.f32.mxu0 0.0
  %5401 = vmatmul.mubr.f32.gmra.mxu0 %v5127
  %v5402 = vpop.f32.mrf.mxu0
  %v5403 = vadd.f32 0.0, %v5402
  %v5404 = vpop.f32.mrf.mxu0
  %5405 = vmatprep.mubr.f32.mxu0 0.0
  %5406 = vmatmul.mubr.f32.gmra.mxu0 %v5130
  %v5407 = vpop.f32.mrf.mxu0
  %v5408 = vadd.f32 0.0, %v5407
  %v5409 = vpop.f32.mrf.mxu0
  %5410 = vmatprep.mubr.f32.mxu0 0.0
  %5411 = vmatmul.mubr.f32.gmra.mxu0 %v5133
  %v5412 = vpop.f32.mrf.mxu0
  %v5413 = vadd.f32 0.0, %v5412
  %v5414 = vpop.f32.mrf.mxu0
  %5415 = vmatprep.mubr.f32.mxu0 0.0
  %5416 = vmatmul.mubr.f32.gmra.mxu0 %v5136
  %v5417 = vpop.f32.mrf.mxu0
  %v5418 = vadd.f32 0.0, %v5417
  %v5419 = vpop.f32.mrf.mxu0
  %5420 = vmatprep.mubr.f32.mxu0 0.0
  %5421 = vmatmul.mubr.f32.gmra.mxu0 %v5139
  %v5422 = vpop.f32.mrf.mxu0
  %v5423 = vadd.f32 0.0, %v5422
  %v5424 = vpop.f32.mrf.mxu0
  %5425 = vmatprep.mubr.f32.mxu0 0.0
  %5426 = vmatmul.mubr.f32.gmra.mxu0 %v5142
  %v5427 = vpop.f32.mrf.mxu0
  %v5428 = vadd.f32 0.0, %v5427
  %v5429 = vpop.f32.mrf.mxu0
  %5430 = vmatprep.mubr.f32.mxu0 0.0
  %5431 = vmatmul.mubr.f32.gmra.mxu0 %v5145
  %v5432 = vpop.f32.mrf.mxu0
  %v5433 = vadd.f32 0.0, %v5432
  %v5434 = vpop.f32.mrf.mxu0
  %5435 = vmatprep.mubr.f32.mxu0 0.0
  %5436 = vmatmul.mubr.f32.gmra.mxu0 %v5148
  %v5437 = vpop.f32.mrf.mxu0
  %v5438 = vadd.f32 0.0, %v5437
  %v5439 = vpop.f32.mrf.mxu0
  %5440 = vmatprep.mubr.f32.mxu0 0.0
  %5441 = vmatmul.mubr.f32.gmra.mxu0 %v5151
  %v5442 = vpop.f32.mrf.mxu0
  %v5443 = vadd.f32 0.0, %v5442
  %v5444 = vpop.f32.mrf.mxu0
  %5445 = vmatprep.mubr.f32.mxu0 0.0
  %5446 = vmatmul.mubr.f32.gmra.mxu0 %v5154
  %v5447 = vpop.f32.mrf.mxu0
  %v5448 = vadd.f32 0.0, %v5447
  %v5449 = vpop.f32.mrf.mxu0
  %5450 = vmatprep.mubr.f32.mxu0 0.0
  %5451 = vmatmul.mubr.f32.gmra.mxu0 %v5157
  %v5452 = vpop.f32.mrf.mxu0
  %v5453 = vadd.f32 0.0, %v5452
  %v5454 = vpop.f32.mrf.mxu0
  %5455 = vmatprep.mubr.f32.mxu0 0.0
  %5456 = vmatmul.mubr.f32.gmra.mxu0 %v5160
  %v5457 = vpop.f32.mrf.mxu0
  %v5458 = vadd.f32 0.0, %v5457
  %v5459 = vpop.f32.mrf.mxu0
  %5460 = vmatprep.mubr.f32.mxu0 0.0
  %5461 = vmatmul.mubr.f32.gmra.mxu0 %v5163
  %v5462 = vpop.f32.mrf.mxu0
  %v5463 = vadd.f32 0.0, %v5462
  %v5464 = vpop.f32.mrf.mxu0
  %5465 = vmatprep.mubr.f32.mxu0 0.0
  %5466 = vmatmul.mubr.f32.gmra.mxu0 %v5166
  %v5467 = vpop.f32.mrf.mxu0
  %v5468 = vadd.f32 0.0, %v5467
  %v5469 = vpop.f32.mrf.mxu0
  %5470 = vmatprep.mubr.f32.mxu0 0.0
  %5471 = vmatmul.mubr.f32.gmra.mxu0 %v5169
  %v5472 = vpop.f32.mrf.mxu0
  %v5473 = vadd.f32 0.0, %v5472
  %v5474 = vpop.f32.mrf.mxu0
  %5475 = vmatprep.mubr.f32.mxu0 0.0
  %5476 = vmatmul.mubr.f32.gmra.mxu0 %v5172
  %v5477 = vpop.f32.mrf.mxu0
  %v5478 = vadd.f32 0.0, %v5477
  %v5479 = vpop.f32.mrf.mxu0
  %5480 = vmatprep.mubr.f32.mxu0 0.0
  %5481 = vmatmul.mubr.f32.gmra.mxu0 %v5175
  %v5482 = vpop.f32.mrf.mxu0
  %v5483 = vadd.f32 0.0, %v5482
  %v5484 = vpop.f32.mrf.mxu0
  %5485 = vmatprep.mubr.f32.mxu0 0.0
  %5486 = vmatmul.mubr.f32.gmra.mxu0 %v5178
  %v5487 = vpop.f32.mrf.mxu0
  %v5488 = vadd.f32 0.0, %v5487
  %v5489 = vpop.f32.mrf.mxu0
  %5490 = vmatprep.mubr.f32.mxu0 0.0
  %5491 = vmatmul.mubr.f32.gmra.mxu0 %v5181
  %v5492 = vpop.f32.mrf.mxu0
  %v5493 = vadd.f32 0.0, %v5492
  %v5494 = vpop.f32.mrf.mxu0
  %5495 = vmatprep.mubr.f32.mxu0 0.0
  %5496 = vmatmul.mubr.f32.gmra.mxu0 %v5184
  %v5497 = vpop.f32.mrf.mxu0
  %v5498 = vadd.f32 0.0, %v5497
  %v5499 = vpop.f32.mrf.mxu0
  %5500 = vmatprep.mubr.f32.mxu0 0.0
  %5501 = vmatmul.mubr.f32.gmra.mxu0 %v5187
  %v5502 = vpop.f32.mrf.mxu0
  %v5503 = vadd.f32 0.0, %v5502
  %v5504 = vpop.f32.mrf.mxu0
  %5505 = vmatprep.mubr.f32.mxu0 0.0
  %5506 = vmatmul.mubr.f32.gmra.mxu0 %v5190
  %v5507 = vpop.f32.mrf.mxu0
  %v5508 = vadd.f32 0.0, %v5507
  %v5509 = vpop.f32.mrf.mxu0
  %5510 = vmatprep.mubr.f32.mxu0 0.0
  %5511 = vmatmul.mubr.f32.gmra.mxu0 %v5193
  %v5512 = vpop.f32.mrf.mxu0
  %v5513 = vadd.f32 0.0, %v5512
  %v5514 = vpop.f32.mrf.mxu0
  %5515 = vmatprep.mubr.f32.mxu0 0.0
  %5516 = vmatmul.mubr.f32.gmra.mxu0 %v5196
  %v5517 = vpop.f32.mrf.mxu0
  %v5518 = vadd.f32 0.0, %v5517
  %v5519 = vpop.f32.mrf.mxu0
  %5520 = vmatprep.mubr.f32.mxu0 0.0
  %5521 = vmatmul.mubr.f32.gmra.mxu0 %v5199
  %v5522 = vpop.f32.mrf.mxu0
  %v5523 = vadd.f32 0.0, %v5522
  %v5524 = vpop.f32.mrf.mxu0
  %5525 = vmatprep.mubr.f32.mxu0 0.0
  %5526 = vmatmul.mubr.f32.gmra.mxu0 %v5202
  %v5527 = vpop.f32.mrf.mxu0
  %v5528 = vadd.f32 0.0, %v5527
  %v5529 = vpop.f32.mrf.mxu0
  %5530 = vmatprep.mubr.f32.mxu0 0.0
  %5531 = vmatmul.mubr.f32.gmra.mxu0 %v5205
  %v5532 = vpop.f32.mrf.mxu0
  %v5533 = vadd.f32 0.0, %v5532
  %v5534 = vpop.f32.mrf.mxu0
  %5535 = vmatprep.mubr.f32.mxu0 0.0
  %5536 = vmatmul.mubr.f32.gmra.mxu0 %v5208
  %v5537 = vpop.f32.mrf.mxu0
  %v5538 = vadd.f32 0.0, %v5537
  %v5539 = vpop.f32.mrf.mxu0
  %5540 = vmatprep.mubr.f32.mxu0 0.0
  %5541 = vmatmul.mubr.f32.gmra.mxu0 %v5211
  %v5542 = vpop.f32.mrf.mxu0
  %v5543 = vadd.f32 0.0, %v5542
  %v5544 = vpop.f32.mrf.mxu0
  %5545 = vmatprep.mubr.f32.mxu0 0.0
  %5546 = vmatmul.mubr.f32.gmra.mxu0 %v5214
  %v5547 = vpop.f32.mrf.mxu0
  %v5548 = vadd.f32 0.0, %v5547
  %v5549 = vpop.f32.mrf.mxu0
  %5550 = vmatprep.mubr.f32.mxu0 0.0
  %5551 = vmatmul.mubr.f32.gmra.mxu0 %v5217
  %v5552 = vpop.f32.mrf.mxu0
  %v5553 = vadd.f32 0.0, %v5552
  %v5554 = vpop.f32.mrf.mxu0
  %5555 = vmatprep.mubr.f32.mxu0 0.0
  %5556 = vmatmul.mubr.f32.gmra.mxu0 %v5220
  %v5557 = vpop.f32.mrf.mxu0
  %v5558 = vadd.f32 0.0, %v5557
  %v5559 = vpop.f32.mrf.mxu0
  %5560 = vmatprep.mubr.f32.mxu0 0.0
  %5561 = vmatmul.mubr.f32.gmra.mxu0 %v5223
  %v5562 = vpop.f32.mrf.mxu0
  %v5563 = vadd.f32 0.0, %v5562
  %v5564 = vpop.f32.mrf.mxu0
  %5565 = vmatprep.mubr.f32.mxu0 0.0
  %5566 = vmatmul.mubr.f32.gmra.mxu0 %v5226
  %v5567 = vpop.f32.mrf.mxu0
  %v5568 = vadd.f32 0.0, %v5567
  %v5569 = vpop.f32.mrf.mxu0
  %5570 = vmatprep.mubr.f32.mxu0 0.0
  %5571 = vmatmul.mubr.f32.gmra.mxu0 %v5229
  %v5572 = vpop.f32.mrf.mxu0
  %v5573 = vadd.f32 0.0, %v5572
  %v5574 = vpop.f32.mrf.mxu0
  %5575 = vmatprep.mubr.f32.mxu0 0.0
  %5576 = vmatmul.mubr.f32.gmra.mxu0 %v5232
  %v5577 = vpop.f32.mrf.mxu0
  %v5578 = vadd.f32 0.0, %v5577
  %v5579 = vpop.f32.mrf.mxu0
  %5580 = vmatprep.mubr.f32.mxu0 0.0
  %5581 = vmatmul.mubr.f32.gmra.mxu0 %v5235
  %v5582 = vpop.f32.mrf.mxu0
  %v5583 = vadd.f32 0.0, %v5582
  %v5584 = vpop.f32.mrf.mxu0
  %5585 = vmatprep.mubr.f32.mxu0 0.0
  %5586 = vmatmul.mubr.f32.gmra.mxu0 %v5238
  %v5587 = vpop.f32.mrf.mxu0
  %v5588 = vadd.f32 0.0, %v5587
  %v5589 = vpop.f32.mrf.mxu0
  %5590 = vmatprep.mubr.f32.mxu0 0.0
  %5591 = vmatmul.mubr.f32.gmra.mxu0 %v5241
  %v5592 = vpop.f32.mrf.mxu0
  %v5593 = vadd.f32 0.0, %v5592
  %v5594 = vpop.f32.mrf.mxu0
  %5595 = vmatprep.mubr.f32.mxu0 0.0
  %5596 = vmatmul.mubr.f32.gmra.mxu0 %v5244
  %v5597 = vpop.f32.mrf.mxu0
  %v5598 = vadd.f32 0.0, %v5597
  %v5599 = vpop.f32.mrf.mxu0
  %5600 = vmatprep.mubr.f32.mxu0 0.0
  %5601 = vmatmul.mubr.f32.gmra.mxu0 %v5247
  %v5602 = vpop.f32.mrf.mxu0
  %v5603 = vadd.f32 0.0, %v5602
  %v5604 = vpop.f32.mrf.mxu0
  %5605 = vmatprep.mubr.f32.mxu0 0.0
  %5606 = vmatmul.mubr.f32.gmra.mxu0 %v5250
  %v5607 = vpop.f32.mrf.mxu0
  %v5608 = vadd.f32 0.0, %v5607
  %v5609 = vpop.f32.mrf.mxu0
  %5610 = vmatprep.mubr.f32.mxu0 0.0
  %5611 = vmatmul.mubr.f32.gmra.mxu0 %v5253
  %v5612 = vpop.f32.mrf.mxu0
  %v5613 = vadd.f32 0.0, %v5612
  %v5614 = vpop.f32.mrf.mxu0
  %5615 = vmatprep.mubr.f32.mxu0 0.0
  %5616 = vmatmul.mubr.f32.gmra.mxu0 %v5256
  %v5617 = vpop.f32.mrf.mxu0
  %v5618 = vadd.f32 0.0, %v5617
  %v5619 = vpop.f32.mrf.mxu0
  %5620 = vmatprep.mubr.f32.mxu0 0.0
  %5621 = vmatmul.mubr.f32.gmra.mxu0 %v5259
  %v5622 = vpop.f32.mrf.mxu0
  %v5623 = vadd.f32 0.0, %v5622
  %v5624 = vpop.f32.mrf.mxu0
  %5625 = vmatprep.mubr.f32.mxu0 0.0
  %5626 = vmatmul.mubr.f32.gmra.mxu0 %v5262
  %v5627 = vpop.f32.mrf.mxu0
  %v5628 = vadd.f32 0.0, %v5627
  %v5629 = vpop.f32.mrf.mxu0
  %5630 = vmatprep.mubr.f32.mxu0 0.0
  %5631 = vmatmul.mubr.f32.gmra.mxu0 %v5265
  %v5632 = vpop.f32.mrf.mxu0
  %v5633 = vadd.f32 0.0, %v5632
  %v5634 = vpop.f32.mrf.mxu0
  %5635 = vmatprep.mubr.f32.mxu0 0.0
  %5636 = vmatmul.mubr.f32.gmra.mxu0 %v5268
  %v5637 = vpop.f32.mrf.mxu0
  %v5638 = vadd.f32 0.0, %v5637
  %v5639 = vpop.f32.mrf.mxu0
  %5640 = vmatprep.mubr.f32.mxu0 0.0
  %5641 = vmatmul.mubr.f32.gmra.mxu0 %v5271
  %v5642 = vpop.f32.mrf.mxu0
  %v5643 = vadd.f32 0.0, %v5642
  %v5644 = vpop.f32.mrf.mxu0
  %5645 = vmatprep.mubr.f32.mxu0 0.0
  %5646 = vmatmul.mubr.f32.gmra.mxu0 %v5274
  %v5647 = vpop.f32.mrf.mxu0
  %v5648 = vadd.f32 0.0, %v5647
  %v5649 = vpop.f32.mrf.mxu0
  %5650 = vmatprep.mubr.f32.mxu0 0.0
  %5651 = vmatmul.mubr.f32.gmra.mxu0 %v5277
  %v5652 = vpop.f32.mrf.mxu0
  %v5653 = vadd.f32 0.0, %v5652
  %v5654 = vpop.f32.mrf.mxu0
  %5655 = vmatprep.mubr.f32.mxu0 0.0
  %5656 = vmatmul.mubr.f32.gmra.mxu0 %v5280
  %v5657 = vpop.f32.mrf.mxu0
  %v5658 = vadd.f32 0.0, %v5657
  %v5659 = vpop.f32.mrf.mxu0
  %5660 = vmatprep.mubr.f32.mxu0 0.0
  %5661 = vmatmul.mubr.f32.gmra.mxu0 %v5283
  %v5662 = vpop.f32.mrf.mxu0
  %v5663 = vadd.f32 0.0, %v5662
  %v5664 = vpop.f32.mrf.mxu0
  %5665 = vmatprep.mubr.f32.mxu0 0.0
  %5666 = vmatmul.mubr.f32.gmra.mxu0 %v5286
  %v5667 = vpop.f32.mrf.mxu0
  %v5668 = vadd.f32 0.0, %v5667
  %v5669 = vpop.f32.mrf.mxu0
  %5670 = vmatprep.mubr.f32.mxu0 0.0
  %5671 = vmatmul.mubr.f32.gmra.mxu0 %v5289
  %v5672 = vpop.f32.mrf.mxu0
  %v5673 = vadd.f32 0.0, %v5672
  %v5674 = vpop.f32.mrf.mxu0
  %5675 = vdwg.mxu0
  %v5676 = vadd.f32 %v4968, %v5358
  %v5677 = vadd.f32 %v4969, %v5363
  %v5678 = vadd.f32 %v4970, %v5368
  %v5679 = vadd.f32 %v4971, %v5373
  %v5680 = vadd.f32 %v4972, %v5378
  %v5681 = vadd.f32 %v4973, %v5383
  %v5682 = vadd.f32 %v4974, %v5388
  %v5683 = vadd.f32 %v4975, %v5393
  %v5684 = vadd.f32 %v4976, %v5398
  %v5685 = vadd.f32 %v4977, %v5403
  %v5686 = vadd.f32 %v4978, %v5408
  %v5687 = vadd.f32 %v4979, %v5413
  %v5688 = vadd.f32 %v4980, %v5418
  %v5689 = vadd.f32 %v4981, %v5423
  %v5690 = vadd.f32 %v4982, %v5428
  %v5691 = vadd.f32 %v4983, %v5433
  %v5692 = vadd.f32 %v4984, %v5438
  %v5693 = vadd.f32 %v4985, %v5443
  %v5694 = vadd.f32 %v4986, %v5448
  %v5695 = vadd.f32 %v4987, %v5453
  %v5696 = vadd.f32 %v4988, %v5458
  %v5697 = vadd.f32 %v4989, %v5463
  %v5698 = vadd.f32 %v4990, %v5468
  %v5699 = vadd.f32 %v4991, %v5473
  %v5700 = vadd.f32 %v4992, %v5478
  %v5701 = vadd.f32 %v4993, %v5483
  %v5702 = vadd.f32 %v4994, %v5488
  %v5703 = vadd.f32 %v4995, %v5493
  %v5704 = vadd.f32 %v4996, %v5498
  %v5705 = vadd.f32 %v4997, %v5503
  %v5706 = vadd.f32 %v4998, %v5508
  %v5707 = vadd.f32 %v4999, %v5513
  %v5708 = vadd.f32 %v5000, %v5518
  %v5709 = vadd.f32 %v5001, %v5523
  %v5710 = vadd.f32 %v5002, %v5528
  %v5711 = vadd.f32 %v5003, %v5533
  %v5712 = vadd.f32 %v5004, %v5538
  %v5713 = vadd.f32 %v5005, %v5543
  %v5714 = vadd.f32 %v5006, %v5548
  %v5715 = vadd.f32 %v5007, %v5553
  %v5716 = vadd.f32 %v5008, %v5558
  %v5717 = vadd.f32 %v5009, %v5563
  %v5718 = vadd.f32 %v5010, %v5568
  %v5719 = vadd.f32 %v5011, %v5573
  %v5720 = vadd.f32 %v5012, %v5578
  %v5721 = vadd.f32 %v5013, %v5583
  %v5722 = vadd.f32 %v5014, %v5588
  %v5723 = vadd.f32 %v5015, %v5593
  %v5724 = vadd.f32 %v5016, %v5598
  %v5725 = vadd.f32 %v5017, %v5603
  %v5726 = vadd.f32 %v5018, %v5608
  %v5727 = vadd.f32 %v5019, %v5613
  %v5728 = vadd.f32 %v5020, %v5618
  %v5729 = vadd.f32 %v5021, %v5623
  %v5730 = vadd.f32 %v5022, %v5628
  %v5731 = vadd.f32 %v5023, %v5633
  %v5732 = vadd.f32 %v5024, %v5638
  %v5733 = vadd.f32 %v5025, %v5643
  %v5734 = vadd.f32 %v5026, %v5648
  %v5735 = vadd.f32 %v5027, %v5653
  %v5736 = vadd.f32 %v5028, %v5658
  %v5737 = vadd.f32 %v5029, %v5663
  %v5738 = vadd.f32 %v5030, %v5668
  %v5739 = vadd.f32 %v5031, %v5673
  %v5740 = vld [vmem:[#allocation2 + $0x1c] sm:$0xff]
  %v5741 = vld [vmem:[#allocation2 + $0x24] sm:$0xff]
  %v5742 = vld [vmem:[#allocation2 + $0x2c] sm:$0xff]
  %v5743 = vld [vmem:[#allocation2 + $0x34] sm:$0xff]
  %v5744 = vld [vmem:[#allocation2 + $0x3c] sm:$0xff]
  %v5745 = vld [vmem:[#allocation2 + $0x44] sm:$0xff]
  %v5746 = vld [vmem:[#allocation2 + $0x4c] sm:$0xff]
  %v5747 = vld [vmem:[#allocation2 + $0x54] sm:$0xff]
  %v5748 = vld [vmem:[#allocation2 + $0x5c] sm:$0xff]
  %v5749 = vld [vmem:[#allocation2 + $0x64] sm:$0xff]
  %v5750 = vld [vmem:[#allocation2 + $0x6c] sm:$0xff]
  %v5751 = vld [vmem:[#allocation2 + $0x74] sm:$0xff]
  %v5752 = vld [vmem:[#allocation2 + $0x7c] sm:$0xff]
  %v5753 = vld [vmem:[#allocation2 + $0x84] sm:$0xff]
  %v5754 = vld [vmem:[#allocation2 + $0x8c] sm:$0xff]
  %v5755 = vld [vmem:[#allocation2 + $0x94] sm:$0xff]
  %v5756 = vld [vmem:[#allocation2 + $0x9c] sm:$0xff]
  %v5757 = vld [vmem:[#allocation2 + $0xa4] sm:$0xff]
  %v5758 = vld [vmem:[#allocation2 + $0xac] sm:$0xff]
  %v5759 = vld [vmem:[#allocation2 + $0xb4] sm:$0xff]
  %v5760 = vld [vmem:[#allocation2 + $0xbc] sm:$0xff]
  %v5761 = vld [vmem:[#allocation2 + $0xc4] sm:$0xff]
  %v5762 = vld [vmem:[#allocation2 + $0xcc] sm:$0xff]
  %v5763 = vld [vmem:[#allocation2 + $0xd4] sm:$0xff]
  %v5764 = vld [vmem:[#allocation2 + $0xdc] sm:$0xff]
  %v5765 = vld [vmem:[#allocation2 + $0xe4] sm:$0xff]
  %v5766 = vld [vmem:[#allocation2 + $0xec] sm:$0xff]
  %v5767 = vld [vmem:[#allocation2 + $0xf4] sm:$0xff]
  %v5768 = vld [vmem:[#allocation2 + $0xfc] sm:$0xff]
  %v5769 = vld [vmem:[#allocation2 + $0x104] sm:$0xff]
  %v5770 = vld [vmem:[#allocation2 + $0x10c] sm:$0xff]
  %v5771 = vld [vmem:[#allocation2 + $0x114] sm:$0xff]
  %v5772 = vld [vmem:[#allocation2 + $0x11c] sm:$0xff]
  %v5773 = vld [vmem:[#allocation2 + $0x124] sm:$0xff]
  %v5774 = vld [vmem:[#allocation2 + $0x12c] sm:$0xff]
  %v5775 = vld [vmem:[#allocation2 + $0x134] sm:$0xff]
  %v5776 = vld [vmem:[#allocation2 + $0x13c] sm:$0xff]
  %v5777 = vld [vmem:[#allocation2 + $0x144] sm:$0xff]
  %v5778 = vld [vmem:[#allocation2 + $0x14c] sm:$0xff]
  %v5779 = vld [vmem:[#allocation2 + $0x154] sm:$0xff]
  %v5780 = vld [vmem:[#allocation2 + $0x15c] sm:$0xff]
  %v5781 = vld [vmem:[#allocation2 + $0x164] sm:$0xff]
  %v5782 = vld [vmem:[#allocation2 + $0x16c] sm:$0xff]
  %v5783 = vld [vmem:[#allocation2 + $0x174] sm:$0xff]
  %v5784 = vld [vmem:[#allocation2 + $0x17c] sm:$0xff]
  %v5785 = vld [vmem:[#allocation2 + $0x184] sm:$0xff]
  %v5786 = vld [vmem:[#allocation2 + $0x18c] sm:$0xff]
  %v5787 = vld [vmem:[#allocation2 + $0x194] sm:$0xff]
  %v5788 = vld [vmem:[#allocation2 + $0x19c] sm:$0xff]
  %v5789 = vld [vmem:[#allocation2 + $0x1a4] sm:$0xff]
  %v5790 = vld [vmem:[#allocation2 + $0x1ac] sm:$0xff]
  %v5791 = vld [vmem:[#allocation2 + $0x1b4] sm:$0xff]
  %v5792 = vld [vmem:[#allocation2 + $0x1bc] sm:$0xff]
  %v5793 = vld [vmem:[#allocation2 + $0x1c4] sm:$0xff]
  %v5794 = vld [vmem:[#allocation2 + $0x1cc] sm:$0xff]
  %v5795 = vld [vmem:[#allocation2 + $0x1d4] sm:$0xff]
  %v5796 = vld [vmem:[#allocation2 + $0x1dc] sm:$0xff]
  %v5797 = vld [vmem:[#allocation2 + $0x1e4] sm:$0xff]
  %v5798 = vld [vmem:[#allocation2 + $0x1ec] sm:$0xff]
  %v5799 = vld [vmem:[#allocation2 + $0x1f4] sm:$0xff]
  %v5800 = vld [vmem:[#allocation2 + $0x1fc] sm:$0xff]
  %v5801 = vld [vmem:[#allocation2 + $0x204] sm:$0xff]
  %v5802 = vld [vmem:[#allocation2 + $0x20c] sm:$0xff]
  %v5803 = vld [vmem:[#allocation2 + $0x214] sm:$0xff]
  %s5804 = scalar_lea.vmem %s2, 128
  %v5805 = vld [vmem:[%s5804] sm:$0xff]
  %v5806 = vld [vmem:[%s5804 + $0x8] sm:$0xff]
  %v5808 = vsel %vm108, %v5740, 0
  %v5811 = vsel %vm108, %v5741, 0
  %v5814 = vsel %vm108, %v5742, 0
  %v5817 = vsel %vm108, %v5743, 0
  %v5820 = vsel %vm108, %v5744, 0
  %v5823 = vsel %vm108, %v5745, 0
  %v5826 = vsel %vm108, %v5746, 0
  %v5829 = vsel %vm108, %v5747, 0
  %v5832 = vsel %vm108, %v5748, 0
  %v5835 = vsel %vm108, %v5749, 0
  %v5838 = vsel %vm108, %v5750, 0
  %v5841 = vsel %vm108, %v5751, 0
  %v5844 = vsel %vm108, %v5752, 0
  %v5847 = vsel %vm108, %v5753, 0
  %v5850 = vsel %vm108, %v5754, 0
  %v5853 = vsel %vm108, %v5755, 0
  %v5856 = vsel %vm108, %v5756, 0
  %v5859 = vsel %vm108, %v5757, 0
  %v5862 = vsel %vm108, %v5758, 0
  %v5865 = vsel %vm108, %v5759, 0
  %v5868 = vsel %vm108, %v5760, 0
  %v5871 = vsel %vm108, %v5761, 0
  %v5874 = vsel %vm108, %v5762, 0
  %v5877 = vsel %vm108, %v5763, 0
  %v5880 = vsel %vm108, %v5764, 0
  %v5883 = vsel %vm108, %v5765, 0
  %v5886 = vsel %vm108, %v5766, 0
  %v5889 = vsel %vm108, %v5767, 0
  %v5892 = vsel %vm108, %v5768, 0
  %v5895 = vsel %vm108, %v5769, 0
  %v5898 = vsel %vm108, %v5770, 0
  %v5901 = vsel %vm108, %v5771, 0
  %v5904 = vsel %vm108, %v5772, 0
  %v5907 = vsel %vm108, %v5773, 0
  %v5910 = vsel %vm108, %v5774, 0
  %v5913 = vsel %vm108, %v5775, 0
  %v5916 = vsel %vm108, %v5776, 0
  %v5919 = vsel %vm108, %v5777, 0
  %v5922 = vsel %vm108, %v5778, 0
  %v5925 = vsel %vm108, %v5779, 0
  %v5928 = vsel %vm108, %v5780, 0
  %v5931 = vsel %vm108, %v5781, 0
  %v5934 = vsel %vm108, %v5782, 0
  %v5937 = vsel %vm108, %v5783, 0
  %v5940 = vsel %vm108, %v5784, 0
  %v5943 = vsel %vm108, %v5785, 0
  %v5946 = vsel %vm108, %v5786, 0
  %v5949 = vsel %vm108, %v5787, 0
  %v5952 = vsel %vm108, %v5788, 0
  %v5955 = vsel %vm108, %v5789, 0
  %v5958 = vsel %vm108, %v5790, 0
  %v5961 = vsel %vm108, %v5791, 0
  %v5964 = vsel %vm108, %v5792, 0
  %v5967 = vsel %vm108, %v5793, 0
  %v5970 = vsel %vm108, %v5794, 0
  %v5973 = vsel %vm108, %v5795, 0
  %v5976 = vsel %vm108, %v5796, 0
  %v5979 = vsel %vm108, %v5797, 0
  %v5982 = vsel %vm108, %v5798, 0
  %v5985 = vsel %vm108, %v5799, 0
  %v5988 = vsel %vm108, %v5800, 0
  %v5991 = vsel %vm108, %v5801, 0
  %v5994 = vsel %vm108, %v5802, 0
  %v5997 = vsel %vm108, %v5803, 0
  %5999 = vmatprep.subr.mxu0 0.0
  %6000 = vmatpush1.msra.mxu0 0.0
  %6001 = vmatprep.subr.mxu0 0.0
  %6002 = vmatpush1.msra.mxu0 0.0
  %6003 = vmatprep.subr.mxu0 0.0
  %6004 = vmatpush1.msra.mxu0 0.0
  %6005 = vmatprep.subr.mxu0 0.0
  %6006 = vmatpush1.msra.mxu0 0.0
  %6007 = vmatprep.subr.mxu0 0.0
  %6008 = vmatpush1.msra.mxu0 0.0
  %6009 = vmatprep.subr.mxu0 0.0
  %6010 = vmatpush1.msra.mxu0 0.0
  %6011 = vmatprep.subr.mxu0 0.0
  %6012 = vmatpush1.msra.mxu0 0.0
  %6013 = vmatprep.subr.mxu0 0.0
  %6014 = vmatpush1.msra.mxu0 0.0
  %6015 = vmatprep.subr.mxu0 0.0
  %6016 = vmatpush1.msra.mxu0 0.0
  %6017 = vmatprep.subr.mxu0 0.0
  %6018 = vmatpush1.msra.mxu0 0.0
  %6019 = vmatprep.subr.mxu0 0.0
  %6020 = vmatpush1.msra.mxu0 0.0
  %6021 = vmatprep.subr.mxu0 0.0
  %6022 = vmatpush1.msra.mxu0 0.0
  %6023 = vmatprep.subr.mxu0 0.0
  %6024 = vmatpush1.msra.mxu0 0.0
  %6025 = vmatprep.subr.mxu0 0.0
  %6026 = vmatpush1.msra.mxu0 0.0
  %6027 = vmatprep.subr.mxu0 0.0
  %6028 = vmatpush1.msra.mxu0 %v5806
  %6029 = vmatprep.subr.mxu0 0.0
  %6030 = vmatpush1.msra.mxu0 %v5805
  %6031 = vmatprep.subr.mxu0 0.0
  %6032 = vmatpush2.msra.mxu0 0.0
  %6033 = vmatprep.subr.mxu0 0.0
  %6034 = vmatpush2.msra.mxu0 0.0
  %6035 = vmatprep.subr.mxu0 0.0
  %6036 = vmatpush2.msra.mxu0 0.0
  %6037 = vmatprep.subr.mxu0 0.0
  %6038 = vmatpush2.msra.mxu0 0.0
  %6039 = vmatprep.subr.mxu0 0.0
  %6040 = vmatpush2.msra.mxu0 0.0
  %6041 = vmatprep.subr.mxu0 0.0
  %6042 = vmatpush2.msra.mxu0 0.0
  %6043 = vmatprep.subr.mxu0 0.0
  %6044 = vmatpush2.msra.mxu0 0.0
  %6045 = vmatprep.subr.mxu0 0.0
  %6046 = vmatpush2.msra.mxu0 0.0
  %6047 = vmatprep.subr.mxu0 0.0
  %6048 = vmatpush2.msra.mxu0 0.0
  %6049 = vmatprep.subr.mxu0 0.0
  %6050 = vmatpush2.msra.mxu0 0.0
  %6051 = vmatprep.subr.mxu0 0.0
  %6052 = vmatpush2.msra.mxu0 0.0
  %6053 = vmatprep.subr.mxu0 0.0
  %6054 = vmatpush2.msra.mxu0 0.0
  %6055 = vmatprep.subr.mxu0 0.0
  %6056 = vmatpush2.msra.mxu0 0.0
  %6057 = vmatprep.subr.mxu0 0.0
  %6058 = vmatpush2.msra.mxu0 0.0
  %6059 = vmatprep.subr.mxu0 0.0
  %6060 = vmatpush2.msra.mxu0 0.0
  %6061 = vmatprep.subr.mxu0 0.0
  %6062 = vmatpush2.msra.mxu0 0.0
  %6063 = vmatprep.mubr.f32.mxu0 0.0
  %6064 = vmatmul.mubr.f32.gmra.mxu0 %v5808
  %v6065 = vpop.f32.mrf.mxu0
  %v6066 = vadd.f32 0.0, %v6065
  %v6067 = vpop.f32.mrf.mxu0
  %6068 = vmatprep.mubr.f32.mxu0 0.0
  %6069 = vmatmul.mubr.f32.gmra.mxu0 %v5811
  %v6070 = vpop.f32.mrf.mxu0
  %v6071 = vadd.f32 0.0, %v6070
  %v6072 = vpop.f32.mrf.mxu0
  %6073 = vmatprep.mubr.f32.mxu0 0.0
  %6074 = vmatmul.mubr.f32.gmra.mxu0 %v5814
  %v6075 = vpop.f32.mrf.mxu0
  %v6076 = vadd.f32 0.0, %v6075
  %v6077 = vpop.f32.mrf.mxu0
  %6078 = vmatprep.mubr.f32.mxu0 0.0
  %6079 = vmatmul.mubr.f32.gmra.mxu0 %v5817
  %v6080 = vpop.f32.mrf.mxu0
  %v6081 = vadd.f32 0.0, %v6080
  %v6082 = vpop.f32.mrf.mxu0
  %6083 = vmatprep.mubr.f32.mxu0 0.0
  %6084 = vmatmul.mubr.f32.gmra.mxu0 %v5820
  %v6085 = vpop.f32.mrf.mxu0
  %v6086 = vadd.f32 0.0, %v6085
  %v6087 = vpop.f32.mrf.mxu0
  %6088 = vmatprep.mubr.f32.mxu0 0.0
  %6089 = vmatmul.mubr.f32.gmra.mxu0 %v5823
  %v6090 = vpop.f32.mrf.mxu0
  %v6091 = vadd.f32 0.0, %v6090
  %v6092 = vpop.f32.mrf.mxu0
  %6093 = vmatprep.mubr.f32.mxu0 0.0
  %6094 = vmatmul.mubr.f32.gmra.mxu0 %v5826
  %v6095 = vpop.f32.mrf.mxu0
  %v6096 = vadd.f32 0.0, %v6095
  %v6097 = vpop.f32.mrf.mxu0
  %6098 = vmatprep.mubr.f32.mxu0 0.0
  %6099 = vmatmul.mubr.f32.gmra.mxu0 %v5829
  %v6100 = vpop.f32.mrf.mxu0
  %v6101 = vadd.f32 0.0, %v6100
  %v6102 = vpop.f32.mrf.mxu0
  %6103 = vmatprep.mubr.f32.mxu0 0.0
  %6104 = vmatmul.mubr.f32.gmra.mxu0 %v5832
  %v6105 = vpop.f32.mrf.mxu0
  %v6106 = vadd.f32 0.0, %v6105
  %v6107 = vpop.f32.mrf.mxu0
  %6108 = vmatprep.mubr.f32.mxu0 0.0
  %6109 = vmatmul.mubr.f32.gmra.mxu0 %v5835
  %v6110 = vpop.f32.mrf.mxu0
  %v6111 = vadd.f32 0.0, %v6110
  %v6112 = vpop.f32.mrf.mxu0
  %6113 = vmatprep.mubr.f32.mxu0 0.0
  %6114 = vmatmul.mubr.f32.gmra.mxu0 %v5838
  %v6115 = vpop.f32.mrf.mxu0
  %v6116 = vadd.f32 0.0, %v6115
  %v6117 = vpop.f32.mrf.mxu0
  %6118 = vmatprep.mubr.f32.mxu0 0.0
  %6119 = vmatmul.mubr.f32.gmra.mxu0 %v5841
  %v6120 = vpop.f32.mrf.mxu0
  %v6121 = vadd.f32 0.0, %v6120
  %v6122 = vpop.f32.mrf.mxu0
  %6123 = vmatprep.mubr.f32.mxu0 0.0
  %6124 = vmatmul.mubr.f32.gmra.mxu0 %v5844
  %v6125 = vpop.f32.mrf.mxu0
  %v6126 = vadd.f32 0.0, %v6125
  %v6127 = vpop.f32.mrf.mxu0
  %6128 = vmatprep.mubr.f32.mxu0 0.0
  %6129 = vmatmul.mubr.f32.gmra.mxu0 %v5847
  %v6130 = vpop.f32.mrf.mxu0
  %v6131 = vadd.f32 0.0, %v6130
  %v6132 = vpop.f32.mrf.mxu0
  %6133 = vmatprep.mubr.f32.mxu0 0.0
  %6134 = vmatmul.mubr.f32.gmra.mxu0 %v5850
  %v6135 = vpop.f32.mrf.mxu0
  %v6136 = vadd.f32 0.0, %v6135
  %v6137 = vpop.f32.mrf.mxu0
  %6138 = vmatprep.mubr.f32.mxu0 0.0
  %6139 = vmatmul.mubr.f32.gmra.mxu0 %v5853
  %v6140 = vpop.f32.mrf.mxu0
  %v6141 = vadd.f32 0.0, %v6140
  %v6142 = vpop.f32.mrf.mxu0
  %6143 = vmatprep.mubr.f32.mxu0 0.0
  %6144 = vmatmul.mubr.f32.gmra.mxu0 %v5856
  %v6145 = vpop.f32.mrf.mxu0
  %v6146 = vadd.f32 0.0, %v6145
  %v6147 = vpop.f32.mrf.mxu0
  %6148 = vmatprep.mubr.f32.mxu0 0.0
  %6149 = vmatmul.mubr.f32.gmra.mxu0 %v5859
  %v6150 = vpop.f32.mrf.mxu0
  %v6151 = vadd.f32 0.0, %v6150
  %v6152 = vpop.f32.mrf.mxu0
  %6153 = vmatprep.mubr.f32.mxu0 0.0
  %6154 = vmatmul.mubr.f32.gmra.mxu0 %v5862
  %v6155 = vpop.f32.mrf.mxu0
  %v6156 = vadd.f32 0.0, %v6155
  %v6157 = vpop.f32.mrf.mxu0
  %6158 = vmatprep.mubr.f32.mxu0 0.0
  %6159 = vmatmul.mubr.f32.gmra.mxu0 %v5865
  %v6160 = vpop.f32.mrf.mxu0
  %v6161 = vadd.f32 0.0, %v6160
  %v6162 = vpop.f32.mrf.mxu0
  %6163 = vmatprep.mubr.f32.mxu0 0.0
  %6164 = vmatmul.mubr.f32.gmra.mxu0 %v5868
  %v6165 = vpop.f32.mrf.mxu0
  %v6166 = vadd.f32 0.0, %v6165
  %v6167 = vpop.f32.mrf.mxu0
  %6168 = vmatprep.mubr.f32.mxu0 0.0
  %6169 = vmatmul.mubr.f32.gmra.mxu0 %v5871
  %v6170 = vpop.f32.mrf.mxu0
  %v6171 = vadd.f32 0.0, %v6170
  %v6172 = vpop.f32.mrf.mxu0
  %6173 = vmatprep.mubr.f32.mxu0 0.0
  %6174 = vmatmul.mubr.f32.gmra.mxu0 %v5874
  %v6175 = vpop.f32.mrf.mxu0
  %v6176 = vadd.f32 0.0, %v6175
  %v6177 = vpop.f32.mrf.mxu0
  %6178 = vmatprep.mubr.f32.mxu0 0.0
  %6179 = vmatmul.mubr.f32.gmra.mxu0 %v5877
  %v6180 = vpop.f32.mrf.mxu0
  %v6181 = vadd.f32 0.0, %v6180
  %v6182 = vpop.f32.mrf.mxu0
  %6183 = vmatprep.mubr.f32.mxu0 0.0
  %6184 = vmatmul.mubr.f32.gmra.mxu0 %v5880
  %v6185 = vpop.f32.mrf.mxu0
  %v6186 = vadd.f32 0.0, %v6185
  %v6187 = vpop.f32.mrf.mxu0
  %6188 = vmatprep.mubr.f32.mxu0 0.0
  %6189 = vmatmul.mubr.f32.gmra.mxu0 %v5883
  %v6190 = vpop.f32.mrf.mxu0
  %v6191 = vadd.f32 0.0, %v6190
  %v6192 = vpop.f32.mrf.mxu0
  %6193 = vmatprep.mubr.f32.mxu0 0.0
  %6194 = vmatmul.mubr.f32.gmra.mxu0 %v5886
  %v6195 = vpop.f32.mrf.mxu0
  %v6196 = vadd.f32 0.0, %v6195
  %v6197 = vpop.f32.mrf.mxu0
  %6198 = vmatprep.mubr.f32.mxu0 0.0
  %6199 = vmatmul.mubr.f32.gmra.mxu0 %v5889
  %v6200 = vpop.f32.mrf.mxu0
  %v6201 = vadd.f32 0.0, %v6200
  %v6202 = vpop.f32.mrf.mxu0
  %6203 = vmatprep.mubr.f32.mxu0 0.0
  %6204 = vmatmul.mubr.f32.gmra.mxu0 %v5892
  %v6205 = vpop.f32.mrf.mxu0
  %v6206 = vadd.f32 0.0, %v6205
  %v6207 = vpop.f32.mrf.mxu0
  %6208 = vmatprep.mubr.f32.mxu0 0.0
  %6209 = vmatmul.mubr.f32.gmra.mxu0 %v5895
  %v6210 = vpop.f32.mrf.mxu0
  %v6211 = vadd.f32 0.0, %v6210
  %v6212 = vpop.f32.mrf.mxu0
  %6213 = vmatprep.mubr.f32.mxu0 0.0
  %6214 = vmatmul.mubr.f32.gmra.mxu0 %v5898
  %v6215 = vpop.f32.mrf.mxu0
  %v6216 = vadd.f32 0.0, %v6215
  %v6217 = vpop.f32.mrf.mxu0
  %6218 = vmatprep.mubr.f32.mxu0 0.0
  %6219 = vmatmul.mubr.f32.gmra.mxu0 %v5901
  %v6220 = vpop.f32.mrf.mxu0
  %v6221 = vadd.f32 0.0, %v6220
  %v6222 = vpop.f32.mrf.mxu0
  %6223 = vmatprep.mubr.f32.mxu0 0.0
  %6224 = vmatmul.mubr.f32.gmra.mxu0 %v5904
  %v6225 = vpop.f32.mrf.mxu0
  %v6226 = vadd.f32 0.0, %v6225
  %v6227 = vpop.f32.mrf.mxu0
  %6228 = vmatprep.mubr.f32.mxu0 0.0
  %6229 = vmatmul.mubr.f32.gmra.mxu0 %v5907
  %v6230 = vpop.f32.mrf.mxu0
  %v6231 = vadd.f32 0.0, %v6230
  %v6232 = vpop.f32.mrf.mxu0
  %6233 = vmatprep.mubr.f32.mxu0 0.0
  %6234 = vmatmul.mubr.f32.gmra.mxu0 %v5910
  %v6235 = vpop.f32.mrf.mxu0
  %v6236 = vadd.f32 0.0, %v6235
  %v6237 = vpop.f32.mrf.mxu0
  %6238 = vmatprep.mubr.f32.mxu0 0.0
  %6239 = vmatmul.mubr.f32.gmra.mxu0 %v5913
  %v6240 = vpop.f32.mrf.mxu0
  %v6241 = vadd.f32 0.0, %v6240
  %v6242 = vpop.f32.mrf.mxu0
  %6243 = vmatprep.mubr.f32.mxu0 0.0
  %6244 = vmatmul.mubr.f32.gmra.mxu0 %v5916
  %v6245 = vpop.f32.mrf.mxu0
  %v6246 = vadd.f32 0.0, %v6245
  %v6247 = vpop.f32.mrf.mxu0
  %6248 = vmatprep.mubr.f32.mxu0 0.0
  %6249 = vmatmul.mubr.f32.gmra.mxu0 %v5919
  %v6250 = vpop.f32.mrf.mxu0
  %v6251 = vadd.f32 0.0, %v6250
  %v6252 = vpop.f32.mrf.mxu0
  %6253 = vmatprep.mubr.f32.mxu0 0.0
  %6254 = vmatmul.mubr.f32.gmra.mxu0 %v5922
  %v6255 = vpop.f32.mrf.mxu0
  %v6256 = vadd.f32 0.0, %v6255
  %v6257 = vpop.f32.mrf.mxu0
  %6258 = vmatprep.mubr.f32.mxu0 0.0
  %6259 = vmatmul.mubr.f32.gmra.mxu0 %v5925
  %v6260 = vpop.f32.mrf.mxu0
  %v6261 = vadd.f32 0.0, %v6260
  %v6262 = vpop.f32.mrf.mxu0
  %6263 = vmatprep.mubr.f32.mxu0 0.0
  %6264 = vmatmul.mubr.f32.gmra.mxu0 %v5928
  %v6265 = vpop.f32.mrf.mxu0
  %v6266 = vadd.f32 0.0, %v6265
  %v6267 = vpop.f32.mrf.mxu0
  %6268 = vmatprep.mubr.f32.mxu0 0.0
  %6269 = vmatmul.mubr.f32.gmra.mxu0 %v5931
  %v6270 = vpop.f32.mrf.mxu0
  %v6271 = vadd.f32 0.0, %v6270
  %v6272 = vpop.f32.mrf.mxu0
  %6273 = vmatprep.mubr.f32.mxu0 0.0
  %6274 = vmatmul.mubr.f32.gmra.mxu0 %v5934
  %v6275 = vpop.f32.mrf.mxu0
  %v6276 = vadd.f32 0.0, %v6275
  %v6277 = vpop.f32.mrf.mxu0
  %6278 = vmatprep.mubr.f32.mxu0 0.0
  %6279 = vmatmul.mubr.f32.gmra.mxu0 %v5937
  %v6280 = vpop.f32.mrf.mxu0
  %v6281 = vadd.f32 0.0, %v6280
  %v6282 = vpop.f32.mrf.mxu0
  %6283 = vmatprep.mubr.f32.mxu0 0.0
  %6284 = vmatmul.mubr.f32.gmra.mxu0 %v5940
  %v6285 = vpop.f32.mrf.mxu0
  %v6286 = vadd.f32 0.0, %v6285
  %v6287 = vpop.f32.mrf.mxu0
  %6288 = vmatprep.mubr.f32.mxu0 0.0
  %6289 = vmatmul.mubr.f32.gmra.mxu0 %v5943
  %v6290 = vpop.f32.mrf.mxu0
  %v6291 = vadd.f32 0.0, %v6290
  %v6292 = vpop.f32.mrf.mxu0
  %6293 = vmatprep.mubr.f32.mxu0 0.0
  %6294 = vmatmul.mubr.f32.gmra.mxu0 %v5946
  %v6295 = vpop.f32.mrf.mxu0
  %v6296 = vadd.f32 0.0, %v6295
  %v6297 = vpop.f32.mrf.mxu0
  %6298 = vmatprep.mubr.f32.mxu0 0.0
  %6299 = vmatmul.mubr.f32.gmra.mxu0 %v5949
  %v6300 = vpop.f32.mrf.mxu0
  %v6301 = vadd.f32 0.0, %v6300
  %v6302 = vpop.f32.mrf.mxu0
  %6303 = vmatprep.mubr.f32.mxu0 0.0
  %6304 = vmatmul.mubr.f32.gmra.mxu0 %v5952
  %v6305 = vpop.f32.mrf.mxu0
  %v6306 = vadd.f32 0.0, %v6305
  %v6307 = vpop.f32.mrf.mxu0
  %6308 = vmatprep.mubr.f32.mxu0 0.0
  %6309 = vmatmul.mubr.f32.gmra.mxu0 %v5955
  %v6310 = vpop.f32.mrf.mxu0
  %v6311 = vadd.f32 0.0, %v6310
  %v6312 = vpop.f32.mrf.mxu0
  %6313 = vmatprep.mubr.f32.mxu0 0.0
  %6314 = vmatmul.mubr.f32.gmra.mxu0 %v5958
  %v6315 = vpop.f32.mrf.mxu0
  %v6316 = vadd.f32 0.0, %v6315
  %v6317 = vpop.f32.mrf.mxu0
  %6318 = vmatprep.mubr.f32.mxu0 0.0
  %6319 = vmatmul.mubr.f32.gmra.mxu0 %v5961
  %v6320 = vpop.f32.mrf.mxu0
  %v6321 = vadd.f32 0.0, %v6320
  %v6322 = vpop.f32.mrf.mxu0
  %6323 = vmatprep.mubr.f32.mxu0 0.0
  %6324 = vmatmul.mubr.f32.gmra.mxu0 %v5964
  %v6325 = vpop.f32.mrf.mxu0
  %v6326 = vadd.f32 0.0, %v6325
  %v6327 = vpop.f32.mrf.mxu0
  %6328 = vmatprep.mubr.f32.mxu0 0.0
  %6329 = vmatmul.mubr.f32.gmra.mxu0 %v5967
  %v6330 = vpop.f32.mrf.mxu0
  %v6331 = vadd.f32 0.0, %v6330
  %v6332 = vpop.f32.mrf.mxu0
  %6333 = vmatprep.mubr.f32.mxu0 0.0
  %6334 = vmatmul.mubr.f32.gmra.mxu0 %v5970
  %v6335 = vpop.f32.mrf.mxu0
  %v6336 = vadd.f32 0.0, %v6335
  %v6337 = vpop.f32.mrf.mxu0
  %6338 = vmatprep.mubr.f32.mxu0 0.0
  %6339 = vmatmul.mubr.f32.gmra.mxu0 %v5973
  %v6340 = vpop.f32.mrf.mxu0
  %v6341 = vadd.f32 0.0, %v6340
  %v6342 = vpop.f32.mrf.mxu0
  %6343 = vmatprep.mubr.f32.mxu0 0.0
  %6344 = vmatmul.mubr.f32.gmra.mxu0 %v5976
  %v6345 = vpop.f32.mrf.mxu0
  %v6346 = vadd.f32 0.0, %v6345
  %v6347 = vpop.f32.mrf.mxu0
  %6348 = vmatprep.mubr.f32.mxu0 0.0
  %6349 = vmatmul.mubr.f32.gmra.mxu0 %v5979
  %v6350 = vpop.f32.mrf.mxu0
  %v6351 = vadd.f32 0.0, %v6350
  %v6352 = vpop.f32.mrf.mxu0
  %6353 = vmatprep.mubr.f32.mxu0 0.0
  %6354 = vmatmul.mubr.f32.gmra.mxu0 %v5982
  %v6355 = vpop.f32.mrf.mxu0
  %v6356 = vadd.f32 0.0, %v6355
  %v6357 = vpop.f32.mrf.mxu0
  %6358 = vmatprep.mubr.f32.mxu0 0.0
  %6359 = vmatmul.mubr.f32.gmra.mxu0 %v5985
  %v6360 = vpop.f32.mrf.mxu0
  %v6361 = vadd.f32 0.0, %v6360
  %v6362 = vpop.f32.mrf.mxu0
  %6363 = vmatprep.mubr.f32.mxu0 0.0
  %6364 = vmatmul.mubr.f32.gmra.mxu0 %v5988
  %v6365 = vpop.f32.mrf.mxu0
  %v6366 = vadd.f32 0.0, %v6365
  %v6367 = vpop.f32.mrf.mxu0
  %6368 = vmatprep.mubr.f32.mxu0 0.0
  %6369 = vmatmul.mubr.f32.gmra.mxu0 %v5991
  %v6370 = vpop.f32.mrf.mxu0
  %v6371 = vadd.f32 0.0, %v6370
  %v6372 = vpop.f32.mrf.mxu0
  %6373 = vmatprep.mubr.f32.mxu0 0.0
  %6374 = vmatmul.mubr.f32.gmra.mxu0 %v5994
  %v6375 = vpop.f32.mrf.mxu0
  %v6376 = vadd.f32 0.0, %v6375
  %v6377 = vpop.f32.mrf.mxu0
  %6378 = vmatprep.mubr.f32.mxu0 0.0
  %6379 = vmatmul.mubr.f32.gmra.mxu0 %v5997
  %v6380 = vpop.f32.mrf.mxu0
  %v6381 = vadd.f32 0.0, %v6380
  %v6382 = vpop.f32.mrf.mxu0
  %6383 = vdwg.mxu0
  %v6384 = vadd.f32 %v5676, %v6066
  %v6385 = vadd.f32 %v5677, %v6071
  %v6386 = vadd.f32 %v5678, %v6076
  %v6387 = vadd.f32 %v5679, %v6081
  %v6388 = vadd.f32 %v5680, %v6086
  %v6389 = vadd.f32 %v5681, %v6091
  %v6390 = vadd.f32 %v5682, %v6096
  %v6391 = vadd.f32 %v5683, %v6101
  %v6392 = vadd.f32 %v5684, %v6106
  %v6393 = vadd.f32 %v5685, %v6111
  %v6394 = vadd.f32 %v5686, %v6116
  %v6395 = vadd.f32 %v5687, %v6121
  %v6396 = vadd.f32 %v5688, %v6126
  %v6397 = vadd.f32 %v5689, %v6131
  %v6398 = vadd.f32 %v5690, %v6136
  %v6399 = vadd.f32 %v5691, %v6141
  %v6400 = vadd.f32 %v5692, %v6146
  %v6401 = vadd.f32 %v5693, %v6151
  %v6402 = vadd.f32 %v5694, %v6156
  %v6403 = vadd.f32 %v5695, %v6161
  %v6404 = vadd.f32 %v5696, %v6166
  %v6405 = vadd.f32 %v5697, %v6171
  %v6406 = vadd.f32 %v5698, %v6176
  %v6407 = vadd.f32 %v5699, %v6181
  %v6408 = vadd.f32 %v5700, %v6186
  %v6409 = vadd.f32 %v5701, %v6191
  %v6410 = vadd.f32 %v5702, %v6196
  %v6411 = vadd.f32 %v5703, %v6201
  %v6412 = vadd.f32 %v5704, %v6206
  %v6413 = vadd.f32 %v5705, %v6211
  %v6414 = vadd.f32 %v5706, %v6216
  %v6415 = vadd.f32 %v5707, %v6221
  %v6416 = vadd.f32 %v5708, %v6226
  %v6417 = vadd.f32 %v5709, %v6231
  %v6418 = vadd.f32 %v5710, %v6236
  %v6419 = vadd.f32 %v5711, %v6241
  %v6420 = vadd.f32 %v5712, %v6246
  %v6421 = vadd.f32 %v5713, %v6251
  %v6422 = vadd.f32 %v5714, %v6256
  %v6423 = vadd.f32 %v5715, %v6261
  %v6424 = vadd.f32 %v5716, %v6266
  %v6425 = vadd.f32 %v5717, %v6271
  %v6426 = vadd.f32 %v5718, %v6276
  %v6427 = vadd.f32 %v5719, %v6281
  %v6428 = vadd.f32 %v5720, %v6286
  %v6429 = vadd.f32 %v5721, %v6291
  %v6430 = vadd.f32 %v5722, %v6296
  %v6431 = vadd.f32 %v5723, %v6301
  %v6432 = vadd.f32 %v5724, %v6306
  %v6433 = vadd.f32 %v5725, %v6311
  %v6434 = vadd.f32 %v5726, %v6316
  %v6435 = vadd.f32 %v5727, %v6321
  %v6436 = vadd.f32 %v5728, %v6326
  %v6437 = vadd.f32 %v5729, %v6331
  %v6438 = vadd.f32 %v5730, %v6336
  %v6439 = vadd.f32 %v5731, %v6341
  %v6440 = vadd.f32 %v5732, %v6346
  %v6441 = vadd.f32 %v5733, %v6351
  %v6442 = vadd.f32 %v5734, %v6356
  %v6443 = vadd.f32 %v5735, %v6361
  %v6444 = vadd.f32 %v5736, %v6366
  %v6445 = vadd.f32 %v5737, %v6371
  %v6446 = vadd.f32 %v5738, %v6376
  %v6447 = vadd.f32 %v5739, %v6381
  %v6448 = vld [vmem:[%s3] sm:$0x1]
  %v6450 = vlaneseq
  %v6451 = vshrl.u32 %v6450, 7
  %v6452 = vsub.s32 0, %v6451
  %v6453 = vrot.slane %v6448, %v6452
  %v6455 = vadd.f32 %v6384, %v6453
  %v6456 = vadd.f32 %v6385, %v6453
  %v6457 = vadd.f32 %v6386, %v6453
  %v6458 = vadd.f32 %v6387, %v6453
  %v6459 = vadd.f32 %v6388, %v6453
  %v6460 = vadd.f32 %v6389, %v6453
  %v6461 = vadd.f32 %v6390, %v6453
  %v6462 = vadd.f32 %v6391, %v6453
  %v6463 = vadd.f32 %v6392, %v6453
  %v6464 = vadd.f32 %v6393, %v6453
  %v6465 = vadd.f32 %v6394, %v6453
  %v6466 = vadd.f32 %v6395, %v6453
  %v6467 = vadd.f32 %v6396, %v6453
  %v6468 = vadd.f32 %v6397, %v6453
  %v6469 = vadd.f32 %v6398, %v6453
  %v6470 = vadd.f32 %v6399, %v6453
  %v6471 = vadd.f32 %v6400, %v6453
  %v6472 = vadd.f32 %v6401, %v6453
  %v6473 = vadd.f32 %v6402, %v6453
  %v6474 = vadd.f32 %v6403, %v6453
  %v6475 = vadd.f32 %v6404, %v6453
  %v6476 = vadd.f32 %v6405, %v6453
  %v6477 = vadd.f32 %v6406, %v6453
  %v6478 = vadd.f32 %v6407, %v6453
  %v6479 = vadd.f32 %v6408, %v6453
  %v6480 = vadd.f32 %v6409, %v6453
  %v6481 = vadd.f32 %v6410, %v6453
  %v6482 = vadd.f32 %v6411, %v6453
  %v6483 = vadd.f32 %v6412, %v6453
  %v6484 = vadd.f32 %v6413, %v6453
  %v6485 = vadd.f32 %v6414, %v6453
  %v6486 = vadd.f32 %v6415, %v6453
  %v6487 = vadd.f32 %v6416, %v6453
  %v6488 = vadd.f32 %v6417, %v6453
  %v6489 = vadd.f32 %v6418, %v6453
  %v6490 = vadd.f32 %v6419, %v6453
  %v6491 = vadd.f32 %v6420, %v6453
  %v6492 = vadd.f32 %v6421, %v6453
  %v6493 = vadd.f32 %v6422, %v6453
  %v6494 = vadd.f32 %v6423, %v6453
  %v6495 = vadd.f32 %v6424, %v6453
  %v6496 = vadd.f32 %v6425, %v6453
  %v6497 = vadd.f32 %v6426, %v6453
  %v6498 = vadd.f32 %v6427, %v6453
  %v6499 = vadd.f32 %v6428, %v6453
  %v6500 = vadd.f32 %v6429, %v6453
  %v6501 = vadd.f32 %v6430, %v6453
  %v6502 = vadd.f32 %v6431, %v6453
  %v6503 = vadd.f32 %v6432, %v6453
  %v6504 = vadd.f32 %v6433, %v6453
  %v6505 = vadd.f32 %v6434, %v6453
  %v6506 = vadd.f32 %v6435, %v6453
  %v6507 = vadd.f32 %v6436, %v6453
  %v6508 = vadd.f32 %v6437, %v6453
  %v6509 = vadd.f32 %v6438, %v6453
  %v6510 = vadd.f32 %v6439, %v6453
  %v6511 = vadd.f32 %v6440, %v6453
  %v6512 = vadd.f32 %v6441, %v6453
  %v6513 = vadd.f32 %v6442, %v6453
  %v6514 = vadd.f32 %v6443, %v6453
  %v6515 = vadd.f32 %v6444, %v6453
  %v6516 = vadd.f32 %v6445, %v6453
  %v6517 = vadd.f32 %v6446, %v6453
  %v6518 = vadd.f32 %v6447, %v6453
  %v6519 = vmax.f32 %v6455, 0.0
  %v6520 = vmax.f32 %v6456, 0.0
  %v6521 = vmax.f32 %v6457, 0.0
  %v6522 = vmax.f32 %v6458, 0.0
  %v6523 = vmax.f32 %v6459, 0.0
  %v6524 = vmax.f32 %v6460, 0.0
  %v6525 = vmax.f32 %v6461, 0.0
  %v6526 = vmax.f32 %v6462, 0.0
  %v6527 = vmax.f32 %v6463, 0.0
  %v6528 = vmax.f32 %v6464, 0.0
  %v6529 = vmax.f32 %v6465, 0.0
  %v6530 = vmax.f32 %v6466, 0.0
  %v6531 = vmax.f32 %v6467, 0.0
  %v6532 = vmax.f32 %v6468, 0.0
  %v6533 = vmax.f32 %v6469, 0.0
  %v6534 = vmax.f32 %v6470, 0.0
  %v6535 = vmax.f32 %v6471, 0.0
  %v6536 = vmax.f32 %v6472, 0.0
  %v6537 = vmax.f32 %v6473, 0.0
  %v6538 = vmax.f32 %v6474, 0.0
  %v6539 = vmax.f32 %v6475, 0.0
  %v6540 = vmax.f32 %v6476, 0.0
  %v6541 = vmax.f32 %v6477, 0.0
  %v6542 = vmax.f32 %v6478, 0.0
  %v6543 = vmax.f32 %v6479, 0.0
  %v6544 = vmax.f32 %v6480, 0.0
  %v6545 = vmax.f32 %v6481, 0.0
  %v6546 = vmax.f32 %v6482, 0.0
  %v6547 = vmax.f32 %v6483, 0.0
  %v6548 = vmax.f32 %v6484, 0.0
  %v6549 = vmax.f32 %v6485, 0.0
  %v6550 = vmax.f32 %v6486, 0.0
  %v6551 = vmax.f32 %v6487, 0.0
  %v6552 = vmax.f32 %v6488, 0.0
  %v6553 = vmax.f32 %v6489, 0.0
  %v6554 = vmax.f32 %v6490, 0.0
  %v6555 = vmax.f32 %v6491, 0.0
  %v6556 = vmax.f32 %v6492, 0.0
  %v6557 = vmax.f32 %v6493, 0.0
  %v6558 = vmax.f32 %v6494, 0.0
  %v6559 = vmax.f32 %v6495, 0.0
  %v6560 = vmax.f32 %v6496, 0.0
  %v6561 = vmax.f32 %v6497, 0.0
  %v6562 = vmax.f32 %v6498, 0.0
  %v6563 = vmax.f32 %v6499, 0.0
  %v6564 = vmax.f32 %v6500, 0.0
  %v6565 = vmax.f32 %v6501, 0.0
  %v6566 = vmax.f32 %v6502, 0.0
  %v6567 = vmax.f32 %v6503, 0.0
  %v6568 = vmax.f32 %v6504, 0.0
  %v6569 = vmax.f32 %v6505, 0.0
  %v6570 = vmax.f32 %v6506, 0.0
  %v6571 = vmax.f32 %v6507, 0.0
  %v6572 = vmax.f32 %v6508, 0.0
  %v6573 = vmax.f32 %v6509, 0.0
  %v6574 = vmax.f32 %v6510, 0.0
  %v6575 = vmax.f32 %v6511, 0.0
  %v6576 = vmax.f32 %v6512, 0.0
  %v6577 = vmax.f32 %v6513, 0.0
  %v6578 = vmax.f32 %v6514, 0.0
  %v6579 = vmax.f32 %v6515, 0.0
  %v6580 = vmax.f32 %v6516, 0.0
  %v6581 = vmax.f32 %v6517, 0.0
  %v6582 = vmax.f32 %v6518, 0.0
  %vm6583 = vcmask 261120
  %6584 = vst.msk [vmem:[%s4] sm:$0xff] %vm6583, %v6519
  %6585 = vst.msk [vmem:[%s4 + $0x8] sm:$0xff] %vm6583, %v6520
  %6586 = vst.msk [vmem:[%s4 + $0x10] sm:$0xff] %vm6583, %v6521
  %6587 = vst.msk [vmem:[%s4 + $0x18] sm:$0xff] %vm6583, %v6522
  %6588 = vst.msk [vmem:[%s4 + $0x20] sm:$0xff] %vm6583, %v6523
  %6589 = vst.msk [vmem:[%s4 + $0x28] sm:$0xff] %vm6583, %v6524
  %6590 = vst.msk [vmem:[%s4 + $0x30] sm:$0xff] %vm6583, %v6525
  %6591 = vst.msk [vmem:[%s4 + $0x38] sm:$0xff] %vm6583, %v6526
  %6592 = vst.msk [vmem:[%s4 + $0x40] sm:$0xff] %vm6583, %v6527
  %6593 = vst.msk [vmem:[%s4 + $0x48] sm:$0xff] %vm6583, %v6528
  %6594 = vst.msk [vmem:[%s4 + $0x50] sm:$0xff] %vm6583, %v6529
  %6595 = vst.msk [vmem:[%s4 + $0x58] sm:$0xff] %vm6583, %v6530
  %6596 = vst.msk [vmem:[%s4 + $0x60] sm:$0xff] %vm6583, %v6531
  %6597 = vst.msk [vmem:[%s4 + $0x68] sm:$0xff] %vm6583, %v6532
  %6598 = vst.msk [vmem:[%s4 + $0x70] sm:$0xff] %vm6583, %v6533
  %6599 = vst.msk [vmem:[%s4 + $0x78] sm:$0xff] %vm6583, %v6534
  %6600 = vst.msk [vmem:[%s4 + $0x80] sm:$0xff] %vm6583, %v6535
  %6601 = vst.msk [vmem:[%s4 + $0x88] sm:$0xff] %vm6583, %v6536
  %6602 = vst.msk [vmem:[%s4 + $0x90] sm:$0xff] %vm6583, %v6537
  %6603 = vst.msk [vmem:[%s4 + $0x98] sm:$0xff] %vm6583, %v6538
  %6604 = vst.msk [vmem:[%s4 + $0xa0] sm:$0xff] %vm6583, %v6539
  %6605 = vst.msk [vmem:[%s4 + $0xa8] sm:$0xff] %vm6583, %v6540
  %6606 = vst.msk [vmem:[%s4 + $0xb0] sm:$0xff] %vm6583, %v6541
  %6607 = vst.msk [vmem:[%s4 + $0xb8] sm:$0xff] %vm6583, %v6542
  %6608 = vst.msk [vmem:[%s4 + $0xc0] sm:$0xff] %vm6583, %v6543
  %6609 = vst.msk [vmem:[%s4 + $0xc8] sm:$0xff] %vm6583, %v6544
  %6610 = vst.msk [vmem:[%s4 + $0xd0] sm:$0xff] %vm6583, %v6545
  %6611 = vst.msk [vmem:[%s4 + $0xd8] sm:$0xff] %vm6583, %v6546
  %6612 = vst.msk [vmem:[%s4 + $0xe0] sm:$0xff] %vm6583, %v6547
  %6613 = vst.msk [vmem:[%s4 + $0xe8] sm:$0xff] %vm6583, %v6548
  %6614 = vst.msk [vmem:[%s4 + $0xf0] sm:$0xff] %vm6583, %v6549
  %6615 = vst.msk [vmem:[%s4 + $0xf8] sm:$0xff] %vm6583, %v6550
  %6616 = vst.msk [vmem:[%s4 + $0x100] sm:$0xff] %vm6583, %v6551
  %6617 = vst.msk [vmem:[%s4 + $0x108] sm:$0xff] %vm6583, %v6552
  %6618 = vst.msk [vmem:[%s4 + $0x110] sm:$0xff] %vm6583, %v6553
  %6619 = vst.msk [vmem:[%s4 + $0x118] sm:$0xff] %vm6583, %v6554
  %6620 = vst.msk [vmem:[%s4 + $0x120] sm:$0xff] %vm6583, %v6555
  %6621 = vst.msk [vmem:[%s4 + $0x128] sm:$0xff] %vm6583, %v6556
  %6622 = vst.msk [vmem:[%s4 + $0x130] sm:$0xff] %vm6583, %v6557
  %6623 = vst.msk [vmem:[%s4 + $0x138] sm:$0xff] %vm6583, %v6558
  %6624 = vst.msk [vmem:[%s4 + $0x140] sm:$0xff] %vm6583, %v6559
  %6625 = vst.msk [vmem:[%s4 + $0x148] sm:$0xff] %vm6583, %v6560
  %6626 = vst.msk [vmem:[%s4 + $0x150] sm:$0xff] %vm6583, %v6561
  %6627 = vst.msk [vmem:[%s4 + $0x158] sm:$0xff] %vm6583, %v6562
  %6628 = vst.msk [vmem:[%s4 + $0x160] sm:$0xff] %vm6583, %v6563
  %6629 = vst.msk [vmem:[%s4 + $0x168] sm:$0xff] %vm6583, %v6564
  %6630 = vst.msk [vmem:[%s4 + $0x170] sm:$0xff] %vm6583, %v6565
  %6631 = vst.msk [vmem:[%s4 + $0x178] sm:$0xff] %vm6583, %v6566
  %6632 = vst.msk [vmem:[%s4 + $0x180] sm:$0xff] %vm6583, %v6567
  %6633 = vst.msk [vmem:[%s4 + $0x188] sm:$0xff] %vm6583, %v6568
  %6634 = vst.msk [vmem:[%s4 + $0x190] sm:$0xff] %vm6583, %v6569
  %6635 = vst.msk [vmem:[%s4 + $0x198] sm:$0xff] %vm6583, %v6570
  %6636 = vst.msk [vmem:[%s4 + $0x1a0] sm:$0xff] %vm6583, %v6571
  %6637 = vst.msk [vmem:[%s4 + $0x1a8] sm:$0xff] %vm6583, %v6572
  %6638 = vst.msk [vmem:[%s4 + $0x1b0] sm:$0xff] %vm6583, %v6573
  %6639 = vst.msk [vmem:[%s4 + $0x1b8] sm:$0xff] %vm6583, %v6574
  %6640 = vst.msk [vmem:[%s4 + $0x1c0] sm:$0xff] %vm6583, %v6575
  %6641 = vst.msk [vmem:[%s4 + $0x1c8] sm:$0xff] %vm6583, %v6576
  %6642 = vst.msk [vmem:[%s4 + $0x1d0] sm:$0xff] %vm6583, %v6577
  %6643 = vst.msk [vmem:[%s4 + $0x1d8] sm:$0xff] %vm6583, %v6578
  %6644 = vst.msk [vmem:[%s4 + $0x1e0] sm:$0xff] %vm6583, %v6579
  %6645 = vst.msk [vmem:[%s4 + $0x1e8] sm:$0xff] %vm6583, %v6580
  %6646 = vst.msk [vmem:[%s4 + $0x1f0] sm:$0xff] %vm6583, %v6581
  %6647 = vst.msk [vmem:[%s4 + $0x1f8] sm:$0xff] %vm6583, %v6582
  // Predicated region
  $region18: #{tpu_custom_call.1} parent=0 // pred_check
    _
  $region19: #{tpu_custom_call.1} parent=0 // pred_check_branch
    %6649 = sbr.rel (0) target = $region21
  $region20: #{tpu_custom_call.1} parent=0 // pred_region
    _
  $region21: #{tpu_custom_call.1} parent=0 // pred_fallthru
    _
  // Predicated region
  $region22: #{tpu_custom_call.1} parent=0 // pred_check
    _
  $region23: #{tpu_custom_call.1} parent=0 // pred_check_branch
    %6651 = sbr.rel (0) target = $region25
  $region24: #{tpu_custom_call.1} parent=0 // pred_region
    _
  $region25: #{tpu_custom_call.1} parent=0 // pred_fallthru
    _

</llo_original>
